<compile_context>
chip_gen: v5e
topology: v5e:2x2
jax: 0.10.0
libtpu: 0.0.40
codegen_flags: <defaults>
</compile_context>

<pallas_src>
import jax
import jax.numpy as jnp
from jax.experimental import pallas as pl
from jax.experimental.pallas import tpu as pltpu


# ------------------------------- Pallas kernel ------------------------------ #

def _disc_kernel(patches_ref, wcb_ref, enc_small_ref, w1r_ref, mlp_small_ref,
                 out_ref):
    """Fused Discriminator forward (conv=True branch).

    patches_ref:   (S=64, B, 64)   bf16  im2col patches, spatial-leading
    wcb_ref:       (S=64, 64, 16)  bf16  conv weight broadcast over s
    enc_small_ref: (3, 1, 16)      f32   row0=conv bias, row1=BN gamma, row2=BN beta
    w1r_ref:       (S=64, 16, 128) bf16  w1r[s, c, j] = w1[j, c*64 + s]
    mlp_small_ref: (3, 128)        f32   row0=b1, row1=w2 row, row2=b2 (broadcast)
    out_ref:       (B, 1)          f32
    """
    # Batched matmul: batch over s (leading on both operands), contract the
    # last lhs dim against the middle rhs dim.
    bmm = (((2,), (1,)), ((0,), (0,)))

    # ---- encoder: conv (as spatial-batched matmul) + bias + LeakyReLU(0.1) ----
    z = jax.lax.dot_general(patches_ref[...], wcb_ref[...],
                            dimension_numbers=bmm,
                            preferred_element_type=jnp.float32)       # (S, B, 16)
    z = z + enc_small_ref[0:1, :, :]                                  # conv bias
    z = jnp.where(z > 0, z, 0.1 * z)                                  # LeakyReLU

    # ---- BatchNorm2d(16), training statistics over (S, B) per channel ----
    # Correct only because this kernel is grid-less (sees the full extent).
    m = jnp.mean(jnp.mean(z, axis=0, keepdims=True), axis=1, keepdims=True)
    d = z - m
    v = jnp.mean(jnp.mean(d * d, axis=0, keepdims=True), axis=1, keepdims=True)
    scale = enc_small_ref[1:2, :, :] * jax.lax.rsqrt(v + 1e-5)        # gamma*rsqrt
    shift = enc_small_ref[2:3, :, :] - m * scale                      # beta - m*scale
    zn = z * scale + shift                                            # (S, B, 16) f32

    # ---- reason: Linear(1024,128) as spatial-batched matmul + sum over s ----
    g = jax.lax.dot_general(zn.astype(jnp.bfloat16), w1r_ref[...],
                            dimension_numbers=bmm,
                            preferred_element_type=jnp.float32)       # (S, B, 128)
    h = jnp.sum(g, axis=0) + mlp_small_ref[0:1, :]                    # (B, 128)
    h = jnp.where(h > 0, h, 0.1 * h)                                  # LeakyReLU

    # Linear(128, 1) as VPU multiply + lane reduction (no N=1 MXU matmul).
    o = jnp.sum(h * mlp_small_ref[1:2, :], axis=-1, keepdims=True)
    o = o + mlp_small_ref[2:3, 0:1]                                   # b2
    out_ref[...] = jax.nn.sigmoid(o)


_VMEM_SPEC = pl.BlockSpec(memory_space=pltpu.MemorySpace.VMEM)


def _call_fused(patches, wcb, enc_small, w1r, mlp_small):
    bsz = patches.shape[1]
    return pl.pallas_call(
        _disc_kernel,
        out_shape=jax.ShapeDtypeStruct((bsz, 1), jnp.float32),
        in_specs=[_VMEM_SPEC] * 5,
        out_specs=_VMEM_SPEC,
    )(patches, wcb, enc_small, w1r, mlp_small)


# ---------------------------------- Glue ------------------------------------ #

def _im2col_sbk(x, k=4, stride=2, pad=1):
    """(B, C, H, W) -> patches (OH*OW, B, C*k*k); feature order (C, KH, KW)."""
    b, c, h, w = x.shape
    xp = jnp.pad(x, ((0, 0), (0, 0), (pad, pad), (pad, pad)))
    oh = (h + 2 * pad - k) // stride + 1
    ow = (w + 2 * pad - k) // stride + 1
    cols = []
    for kh in range(k):
        for kw in range(k):
            cols.append(xp[:, :, kh:kh + stride * oh:stride,
                           kw:kw + stride * ow:stride])               # (B, C, OH, OW)
    p = jnp.stack(cols, axis=0).reshape(k, k, b, c, oh, ow)
    p = p.transpose(4, 5, 2, 3, 0, 1)                                 # (OH,OW,B,C,KH,KW)
    return p.reshape(oh * ow, b, c * k * k), oh, ow


def init_params(key, in_chan, enc_width):
    """Deterministic synthetic parameters in PyTorch layouts."""
    ks = jax.random.split(key, 6)

    def uni(k, shape, fan_in):
        bound = 1.0 / jnp.sqrt(float(fan_in))
        return jax.random.uniform(k, shape, jnp.float32, -bound, bound)

    conv_w = uni(ks[0], (16, in_chan, 4, 4), in_chan * 16)    # (Cout, Cin, KH, KW)
    conv_b = uni(ks[1], (16,), in_chan * 16)
    gamma = jnp.ones((16,), jnp.float32)                      # BatchNorm2d affine
    beta = jnp.zeros((16,), jnp.float32)
    d_in = 16 * enc_width * enc_width
    w1 = uni(ks[2], (128, d_in), d_in)                        # (out, in)
    b1 = uni(ks[3], (128,), d_in)
    w2 = uni(ks[4], (1, 128), 128)
    b2 = uni(ks[5], (1,), 128)
    return conv_w, conv_b, gamma, beta, w1, b1, w2, b2


def prepare_params(conv_w, conv_b, gamma, beta, w1, b1, w2, b2, oh, ow):
    """One-time conversion of PyTorch-layout params into kernel layouts.

    Folds the conv-weight flatten, the spatial broadcast (for the batched conv
    matmul), the PyTorch (C, OH, OW) flatten order of `flatten(start_dim=1)`,
    and the w1 permutation into the stored parameters (matmul weights in bf16),
    so the per-call forward needs no XLA-side transposes or weight casts.
    """
    cout, cin, kh, kw = conv_w.shape
    kdim = cin * kh * kw
    n_sp = oh * ow

    wc = conv_w.reshape(cout, kdim).T                         # (kdim, 16), k=(ci,kh,kw)
    wcb = jnp.broadcast_to(wc, (n_sp, kdim, cout)).astype(jnp.bfloat16)   # (S, kdim, 16)
    enc_small = jnp.stack([conv_b, gamma, beta], axis=0).reshape(3, 1, cout)

    # PyTorch flatten index = c*n_sp + s ; w1r[s, c, j] = w1[j, c*n_sp + s]
    w1r = (w1.reshape(128, cout, n_sp)                        # (j, c, s)
             .transpose(2, 1, 0)                              # (s, c, j)
             .astype(jnp.bfloat16))                           # (S, 16, 128)
    mlp_small = jnp.stack(
        [b1, w2.reshape(128),
         jnp.full((128,), b2.reshape(()), jnp.float32)], axis=0)          # (3, 128)
    return wcb, enc_small, w1r, mlp_small


@jax.jit
def discriminator_forward(scenes, wcb, enc_small, w1r, mlp_small):
    """Discriminator.forward, conv=True branch. scenes: (B, s+a chan, W, W)."""
    # TODO(synk): the conv=False lin_model branch is not implemented (unused here).
    patches, _, _ = _im2col_sbk(scenes, k=4, stride=2, pad=1)  # (S, B, kdim) f32
    patches = patches.astype(jnp.bfloat16)                     # MXU operand dtype
    return _call_fused(patches, wcb, enc_small, w1r, mlp_small)


# ----------------------------- Pure-JAX reference --------------------------- #

def reference_forward(scenes, conv_w, conv_b, gamma, beta, w1, b1, w2, b2):
    z = jax.lax.conv_general_dilated(
        scenes, conv_w, window_strides=(2, 2), padding=((1, 1), (1, 1)),
        dimension_numbers=("NCHW", "OIHW", "NCHW"),
        precision=jax.lax.Precision.HIGHEST)
    z = z + conv_b.reshape(1, -1, 1, 1)
    z = jnp.where(z > 0, z, 0.1 * z)
    mean = jnp.mean(z, axis=(0, 2, 3), keepdims=True)
    var = jnp.mean((z - mean) ** 2, axis=(0, 2, 3), keepdims=True)
    z = (z - mean) * jax.lax.rsqrt(var + 1e-5)
    z = z * gamma.reshape(1, -1, 1, 1) + beta.reshape(1, -1, 1, 1)
    x = z.reshape(z.shape[0], -1)                             # (C, OH, OW) order
    h = jnp.dot(x, w1.T, precision=jax.lax.Precision.HIGHEST) + b1
    h = jnp.where(h > 0, h, 0.1 * h)
    o = jnp.dot(h, w2.T, precision=jax.lax.Precision.HIGHEST) + b2
    return jax.nn.sigmoid(o)


# --------------------------------- Main ------------------------------------ #

if __name__ == "__main__":
    # Discriminator(width=16, s_chan=3, a_chan=1, conv=True, folds=1)
    width, s_chan, a_chan, folds = 16, 3, 1, 1
    enc_width = width // 2 ** folds            # 8
    in_chan = s_chan + a_chan                  # 4
    batch = 2

    key = jax.random.PRNGKey(0)
    k_x, k_p = jax.random.split(key)
    scenes = jax.random.normal(k_x, (batch, in_chan, width, width), jnp.float32)
    raw = init_params(k_p, in_chan, enc_width)
    prepared = prepare_params(*raw, oh=enc_width, ow=enc_width)

    out = discriminator_forward(scenes, *prepared)
    out = jax.block_until_ready(out)
    assert out.shape == (batch, 1), out.shape
    assert bool(jnp.all((out >= 0.0) & (out <= 1.0)))

    ref = reference_forward(scenes, *raw)
    assert bool(jnp.allclose(out, ref, atol=5e-2, rtol=5e-2)), (out, ref)
    print("KERNEL_OK")
</pallas_src>

<mosaic_0001>
module attributes {stable_mosaic.version = 11 : i64} {
  func.func @_disc_kernel(%arg0: memref<64x2x64xbf16, #tpu.memory_space<vmem>>, %arg1: memref<64x64x16xbf16, #tpu.memory_space<vmem>>, %arg2: memref<3x1x16xf32, #tpu.memory_space<vmem>>, %arg3: memref<64x16x128xbf16, #tpu.memory_space<vmem>>, %arg4: memref<3x128xf32, #tpu.memory_space<vmem>>, %arg5: memref<2x1xf32, #tpu.memory_space<vmem>>) attributes {dimension_semantics = [], scalar_prefetch = 0 : i64, scratch_operands = 0 : i64, tpu.core_type = #tpu.core_type<tc>} {
    %c0 = arith.constant 0 : index
    %c0_0 = arith.constant 0 : index
    %c0_1 = arith.constant 0 : index
    %0 = vector.load %arg0[%c0, %c0_0, %c0_1] : memref<64x2x64xbf16, #tpu.memory_space<vmem>>, vector<64x2x64xbf16>
    %c0_2 = arith.constant 0 : index
    %c0_3 = arith.constant 0 : index
    %c0_4 = arith.constant 0 : index
    %1 = vector.load %arg1[%c0_2, %c0_3, %c0_4] : memref<64x64x16xbf16, #tpu.memory_space<vmem>>, vector<64x64x16xbf16>
    %cst = arith.constant dense<0.000000e+00> : vector<64x2x16xf32>
    %2 = tpu.matmul %0, %1, %cst {dimension_numbers = #tpu.dot_dimension_numbers<[2], [1], [1], [2], [0, 0, 0, 1, 1, 2], [0], [0]>} : vector<64x2x64xbf16>, vector<64x64x16xbf16>, vector<64x2x16xf32> -> vector<64x2x16xf32>
    %c0_5 = arith.constant 0 : index
    %c0_6 = arith.constant 0 : index
    %c0_7 = arith.constant 0 : index
    %3 = vector.load %arg2[%c0_5, %c0_6, %c0_7] : memref<3x1x16xf32, #tpu.memory_space<vmem>>, vector<1x1x16xf32>
    %4 = vector.broadcast %3 : vector<1x1x16xf32> to vector<64x2x16xf32>
    %5 = arith.addf %2, %4 : vector<64x2x16xf32>
    %cst_8 = arith.constant 0.000000e+00 : f32
    %6 = vector.broadcast %cst_8 : f32 to vector<64x2x16xf32>
    %7 = arith.cmpf ogt, %5, %6 : vector<64x2x16xf32>
    %cst_9 = arith.constant 1.000000e-01 : f32
    %8 = vector.broadcast %cst_9 : f32 to vector<64x2x16xf32>
    %9 = arith.mulf %8, %5 : vector<64x2x16xf32>
    %10 = arith.select %7, %5, %9 : vector<64x2x16xi1>, vector<64x2x16xf32>
    %cst_10 = arith.constant dense<0.000000e+00> : vector<2x16xf32>
    %11 = vector.multi_reduction <add>, %10, %cst_10 [0] : vector<64x2x16xf32> to vector<2x16xf32>
    %12 = vector.shape_cast %11 : vector<2x16xf32> to vector<1x2x16xf32>
    %cst_11 = arith.constant 6.400000e+01 : f32
    %13 = vector.broadcast %cst_11 : f32 to vector<1x2x16xf32>
    %14 = arith.divf %12, %13 : vector<1x2x16xf32>
    %cst_12 = arith.constant dense<0.000000e+00> : vector<1x16xf32>
    %15 = vector.multi_reduction <add>, %14, %cst_12 [1] : vector<1x2x16xf32> to vector<1x16xf32>
    %16 = vector.shape_cast %15 : vector<1x16xf32> to vector<1x1x16xf32>
    %cst_13 = arith.constant 2.000000e+00 : f32
    %17 = vector.broadcast %cst_13 : f32 to vector<1x1x16xf32>
    %18 = arith.divf %16, %17 : vector<1x1x16xf32>
    %19 = vector.broadcast %18 : vector<1x1x16xf32> to vector<64x2x16xf32>
    %20 = arith.subf %10, %19 : vector<64x2x16xf32>
    %21 = arith.mulf %20, %20 : vector<64x2x16xf32>
    %cst_14 = arith.constant dense<0.000000e+00> : vector<2x16xf32>
    %22 = vector.multi_reduction <add>, %21, %cst_14 [0] : vector<64x2x16xf32> to vector<2x16xf32>
    %23 = vector.shape_cast %22 : vector<2x16xf32> to vector<1x2x16xf32>
    %cst_15 = arith.constant 6.400000e+01 : f32
    %24 = vector.broadcast %cst_15 : f32 to vector<1x2x16xf32>
    %25 = arith.divf %23, %24 : vector<1x2x16xf32>
    %cst_16 = arith.constant dense<0.000000e+00> : vector<1x16xf32>
    %26 = vector.multi_reduction <add>, %25, %cst_16 [1] : vector<1x2x16xf32> to vector<1x16xf32>
    %27 = vector.shape_cast %26 : vector<1x16xf32> to vector<1x1x16xf32>
    %cst_17 = arith.constant 2.000000e+00 : f32
    %28 = vector.broadcast %cst_17 : f32 to vector<1x1x16xf32>
    %29 = arith.divf %27, %28 : vector<1x1x16xf32>
    %c1 = arith.constant 1 : index
    %c0_18 = arith.constant 0 : index
    %c0_19 = arith.constant 0 : index
    %30 = vector.load %arg2[%c1, %c0_18, %c0_19] : memref<3x1x16xf32, #tpu.memory_space<vmem>>, vector<1x1x16xf32>
    %cst_20 = arith.constant 9.99999974E-6 : f32
    %31 = vector.broadcast %cst_20 : f32 to vector<1x1x16xf32>
    %32 = arith.addf %29, %31 : vector<1x1x16xf32>
    %33 = math.rsqrt %32 : vector<1x1x16xf32>
    %34 = arith.mulf %30, %33 : vector<1x1x16xf32>
    %c2 = arith.constant 2 : index
    %c0_21 = arith.constant 0 : index
    %c0_22 = arith.constant 0 : index
    %35 = vector.load %arg2[%c2, %c0_21, %c0_22] : memref<3x1x16xf32, #tpu.memory_space<vmem>>, vector<1x1x16xf32>
    %36 = arith.mulf %18, %34 : vector<1x1x16xf32>
    %37 = arith.subf %35, %36 : vector<1x1x16xf32>
    %38 = vector.broadcast %34 : vector<1x1x16xf32> to vector<64x2x16xf32>
    %39 = arith.mulf %10, %38 : vector<64x2x16xf32>
    %40 = vector.broadcast %37 : vector<1x1x16xf32> to vector<64x2x16xf32>
    %41 = arith.addf %39, %40 : vector<64x2x16xf32>
    %42 = arith.truncf %41 : vector<64x2x16xf32> to vector<64x2x16xbf16>
    %c0_23 = arith.constant 0 : index
    %c0_24 = arith.constant 0 : index
    %c0_25 = arith.constant 0 : index
    %43 = vector.load %arg3[%c0_23, %c0_24, %c0_25] : memref<64x16x128xbf16, #tpu.memory_space<vmem>>, vector<64x16x128xbf16>
    %cst_26 = arith.constant dense<0.000000e+00> : vector<64x2x128xf32>
    %44 = tpu.matmul %42, %43, %cst_26 {dimension_numbers = #tpu.dot_dimension_numbers<[2], [1], [1], [2], [0, 0, 0, 1, 1, 2], [0], [0]>} : vector<64x2x16xbf16>, vector<64x16x128xbf16>, vector<64x2x128xf32> -> vector<64x2x128xf32>
    %cst_27 = arith.constant dense<0.000000e+00> : vector<2x128xf32>
    %45 = vector.multi_reduction <add>, %44, %cst_27 [0] : vector<64x2x128xf32> to vector<2x128xf32>
    %c0_28 = arith.constant 0 : index
    %c0_29 = arith.constant 0 : index
    %46 = vector.load %arg4[%c0_28, %c0_29] : memref<3x128xf32, #tpu.memory_space<vmem>>, vector<1x128xf32>
    %47 = vector.broadcast %46 : vector<1x128xf32> to vector<2x128xf32>
    %48 = arith.addf %45, %47 : vector<2x128xf32>
    %cst_30 = arith.constant 0.000000e+00 : f32
    %49 = vector.broadcast %cst_30 : f32 to vector<2x128xf32>
    %50 = arith.cmpf ogt, %48, %49 : vector<2x128xf32>
    %cst_31 = arith.constant 1.000000e-01 : f32
    %51 = vector.broadcast %cst_31 : f32 to vector<2x128xf32>
    %52 = arith.mulf %51, %48 : vector<2x128xf32>
    %53 = arith.select %50, %48, %52 : vector<2x128xi1>, vector<2x128xf32>
    %c1_32 = arith.constant 1 : index
    %c0_33 = arith.constant 0 : index
    %54 = vector.load %arg4[%c1_32, %c0_33] : memref<3x128xf32, #tpu.memory_space<vmem>>, vector<1x128xf32>
    %55 = vector.broadcast %54 : vector<1x128xf32> to vector<2x128xf32>
    %56 = arith.mulf %53, %55 : vector<2x128xf32>
    %cst_34 = arith.constant dense<0.000000e+00> : vector<2xf32>
    %57 = vector.multi_reduction <add>, %56, %cst_34 [1] : vector<2x128xf32> to vector<2xf32>
    %58 = vector.shape_cast %57 : vector<2xf32> to vector<2x1xf32>
    %c2_35 = arith.constant 2 : index
    %c0_36 = arith.constant 0 : index
    %59 = vector.load %arg4[%c2_35, %c0_36] : memref<3x128xf32, #tpu.memory_space<vmem>>, vector<1x1xf32>
    %60 = vector.broadcast %59 : vector<1x1xf32> to vector<2x1xf32>
    %61 = arith.addf %58, %60 : vector<2x1xf32>
    %62 = arith.negf %61 : vector<2x1xf32>
    %63 = math.exp %62 : vector<2x1xf32>
    %cst_37 = arith.constant 1.000000e+00 : f32
    %64 = vector.broadcast %cst_37 : f32 to vector<2x1xf32>
    %65 = arith.addf %64, %63 : vector<2x1xf32>
    %66 = arith.divf %64, %65 : vector<2x1xf32>
    %c0_38 = arith.constant 0 : index
    %c0_39 = arith.constant 0 : index
    %67 = vector.load %arg5[%c0_38, %c0_39] : memref<2x1xf32, #tpu.memory_space<vmem>>, vector<2x1xf32>
    tpu.vector_store %arg5[%c0_38, %c0_39], %66 {strides = array<i32>} : memref<2x1xf32, #tpu.memory_space<vmem>>, vector<2x1xf32>,
    return
  }
}

</mosaic_0001>

<llo_original>
// kernel: discriminator_forward.1
$region0: #{discriminator_forward.1}
  #allocation0 [shape = 'u32[]', space=smem, size = 0x4, offset = 0x4, fixed_abs, tag = 'smem constant byte address 0x4 - core index']
  #allocation1 [shape = 'u32[72,128]{1,0:T(1,128)}', space=vmem, size = 0x9000, scoped, tag = 'internal scratch']
  %s0 = inlined_call_operand.vmem [shape: bf16[64,2,64], index: 0, kind: input, shape index: {}]
  %s1 = inlined_call_operand.vmem [shape: bf16[64,64,16], index: 1, kind: input, shape index: {}]
  %s2 = inlined_call_operand.vmem [shape: f32[3,1,16], index: 2, kind: input, shape index: {}]
  %s3 = inlined_call_operand.vmem [shape: bf16[64,16,128], index: 3, kind: input, shape index: {}]
  %s4 = inlined_call_operand.vmem [shape: f32[3,128], index: 4, kind: input, shape index: {}]
  %s5 = inlined_call_operand.vmem [shape: f32[2,1], index: 5, kind: output, shape index: {}]
  %s6 = sld [smem:[#allocation0]]
  $region30: #{discriminator_forward.1} parent=0
    _
  %s8 = ssub.s32 1, %s6
  %s9 = scalar_select 0, %s8, %s6
  // Predicated region
  $region2: #{discriminator_forward.1} parent=0 // pred_check
    _
  $region3: #{discriminator_forward.1} parent=0 // pred_check_branch
    %11 = sbr.rel (0) target = $region5
  $region4: #{discriminator_forward.1} parent=0 // pred_region
    _
  $region5: #{discriminator_forward.1} parent=0 // pred_fallthru
    _
  // Predicated region
  $region6: #{discriminator_forward.1} parent=0 // pred_check
    _
  $region7: #{discriminator_forward.1} parent=0 // pred_check_branch
    %13 = sbr.rel (0) target = $region9
  $region8: #{discriminator_forward.1} parent=0 // pred_region
    _
  $region9: #{discriminator_forward.1} parent=0 // pred_fallthru
    _
  // Predicated region
  $region10: #{discriminator_forward.1} parent=0 // pred_check
    _
  $region11: #{discriminator_forward.1} parent=0 // pred_check_branch
    %15 = sbr.rel (0) target = $region13
  $region12: #{discriminator_forward.1} parent=0 // pred_region
    _
  $region13: #{discriminator_forward.1} parent=0 // pred_fallthru
    _
  // Predicated region
  $region14: #{discriminator_forward.1} parent=0 // pred_check
    _
  $region15: #{discriminator_forward.1} parent=0 // pred_check_branch
    %17 = sbr.rel (0) target = $region17
  $region16: #{discriminator_forward.1} parent=0 // pred_region
    _
  $region17: #{discriminator_forward.1} parent=0 // pred_fallthru
    _
  // Predicated region
  $region18: #{discriminator_forward.1} parent=0 // pred_check
    _
  $region19: #{discriminator_forward.1} parent=0 // pred_check_branch
    %19 = sbr.rel (0) target = $region21
  $region20: #{discriminator_forward.1} parent=0 // pred_region
    _
  $region21: #{discriminator_forward.1} parent=0 // pred_fallthru
    _
  %v21 = vld [vmem:[%s0] sm:$0x1]
  %v22 = vld [vmem:[%s0 + $0x1] sm:$0x1]
  %v23 = vld [vmem:[%s0 + $0x2] sm:$0x1]
  %v24 = vld [vmem:[%s0 + $0x3] sm:$0x1]
  %v25 = vld [vmem:[%s0 + $0x4] sm:$0x1]
  %v26 = vld [vmem:[%s0 + $0x5] sm:$0x1]
  %v27 = vld [vmem:[%s0 + $0x6] sm:$0x1]
  %v28 = vld [vmem:[%s0 + $0x7] sm:$0x1]
  %v29 = vld [vmem:[%s0 + $0x8] sm:$0x1]
  %v30 = vld [vmem:[%s0 + $0x9] sm:$0x1]
  %v31 = vld [vmem:[%s0 + $0xa] sm:$0x1]
  %v32 = vld [vmem:[%s0 + $0xb] sm:$0x1]
  %v33 = vld [vmem:[%s0 + $0xc] sm:$0x1]
  %v34 = vld [vmem:[%s0 + $0xd] sm:$0x1]
  %v35 = vld [vmem:[%s0 + $0xe] sm:$0x1]
  %v36 = vld [vmem:[%s0 + $0xf] sm:$0x1]
  %v37 = vld [vmem:[%s0 + $0x10] sm:$0x1]
  %v38 = vld [vmem:[%s0 + $0x11] sm:$0x1]
  %v39 = vld [vmem:[%s0 + $0x12] sm:$0x1]
  %v40 = vld [vmem:[%s0 + $0x13] sm:$0x1]
  %v41 = vld [vmem:[%s0 + $0x14] sm:$0x1]
  %v42 = vld [vmem:[%s0 + $0x15] sm:$0x1]
  %v43 = vld [vmem:[%s0 + $0x16] sm:$0x1]
  %v44 = vld [vmem:[%s0 + $0x17] sm:$0x1]
  %v45 = vld [vmem:[%s0 + $0x18] sm:$0x1]
  %v46 = vld [vmem:[%s0 + $0x19] sm:$0x1]
  %v47 = vld [vmem:[%s0 + $0x1a] sm:$0x1]
  %v48 = vld [vmem:[%s0 + $0x1b] sm:$0x1]
  %v49 = vld [vmem:[%s0 + $0x1c] sm:$0x1]
  %v50 = vld [vmem:[%s0 + $0x1d] sm:$0x1]
  %v51 = vld [vmem:[%s0 + $0x1e] sm:$0x1]
  %v52 = vld [vmem:[%s0 + $0x1f] sm:$0x1]
  %v53 = vld [vmem:[%s0 + $0x20] sm:$0x1]
  %v54 = vld [vmem:[%s0 + $0x21] sm:$0x1]
  %v55 = vld [vmem:[%s0 + $0x22] sm:$0x1]
  %v56 = vld [vmem:[%s0 + $0x23] sm:$0x1]
  %v57 = vld [vmem:[%s0 + $0x24] sm:$0x1]
  %v58 = vld [vmem:[%s0 + $0x25] sm:$0x1]
  %v59 = vld [vmem:[%s0 + $0x26] sm:$0x1]
  %v60 = vld [vmem:[%s0 + $0x27] sm:$0x1]
  %v61 = vld [vmem:[%s0 + $0x28] sm:$0x1]
  %v62 = vld [vmem:[%s0 + $0x29] sm:$0x1]
  %v63 = vld [vmem:[%s0 + $0x2a] sm:$0x1]
  %v64 = vld [vmem:[%s0 + $0x2b] sm:$0x1]
  %v65 = vld [vmem:[%s0 + $0x2c] sm:$0x1]
  %v66 = vld [vmem:[%s0 + $0x2d] sm:$0x1]
  %v67 = vld [vmem:[%s0 + $0x2e] sm:$0x1]
  %v68 = vld [vmem:[%s0 + $0x2f] sm:$0x1]
  %v69 = vld [vmem:[%s0 + $0x30] sm:$0x1]
  %v70 = vld [vmem:[%s0 + $0x31] sm:$0x1]
  %v71 = vld [vmem:[%s0 + $0x32] sm:$0x1]
  %v72 = vld [vmem:[%s0 + $0x33] sm:$0x1]
  %v73 = vld [vmem:[%s0 + $0x34] sm:$0x1]
  %v74 = vld [vmem:[%s0 + $0x35] sm:$0x1]
  %v75 = vld [vmem:[%s0 + $0x36] sm:$0x1]
  %v76 = vld [vmem:[%s0 + $0x37] sm:$0x1]
  %v77 = vld [vmem:[%s0 + $0x38] sm:$0x1]
  %v78 = vld [vmem:[%s0 + $0x39] sm:$0x1]
  %v79 = vld [vmem:[%s0 + $0x3a] sm:$0x1]
  %v80 = vld [vmem:[%s0 + $0x3b] sm:$0x1]
  %v81 = vld [vmem:[%s0 + $0x3c] sm:$0x1]
  %v82 = vld [vmem:[%s0 + $0x3d] sm:$0x1]
  %v83 = vld [vmem:[%s0 + $0x3e] sm:$0x1]
  %v84 = vld [vmem:[%s0 + $0x3f] sm:$0x1]
  %v85 = vld [vmem:[%s1] sm:$0xf]
  %v86 = vld [vmem:[%s1 + $0x4] sm:$0xf]
  %v87 = vld [vmem:[%s1 + $0x8] sm:$0xf]
  %v88 = vld [vmem:[%s1 + $0xc] sm:$0xf]
  %v89 = vld [vmem:[%s1 + $0x10] sm:$0xf]
  %v90 = vld [vmem:[%s1 + $0x14] sm:$0xf]
  %v91 = vld [vmem:[%s1 + $0x18] sm:$0xf]
  %v92 = vld [vmem:[%s1 + $0x1c] sm:$0xf]
  %v93 = vld [vmem:[%s1 + $0x20] sm:$0xf]
  %v94 = vld [vmem:[%s1 + $0x24] sm:$0xf]
  %v95 = vld [vmem:[%s1 + $0x28] sm:$0xf]
  %v96 = vld [vmem:[%s1 + $0x2c] sm:$0xf]
  %v97 = vld [vmem:[%s1 + $0x30] sm:$0xf]
  %v98 = vld [vmem:[%s1 + $0x34] sm:$0xf]
  %v99 = vld [vmem:[%s1 + $0x38] sm:$0xf]
  %v100 = vld [vmem:[%s1 + $0x3c] sm:$0xf]
  %v101 = vld [vmem:[%s1 + $0x40] sm:$0xf]
  %v102 = vld [vmem:[%s1 + $0x44] sm:$0xf]
  %v103 = vld [vmem:[%s1 + $0x48] sm:$0xf]
  %v104 = vld [vmem:[%s1 + $0x4c] sm:$0xf]
  %v105 = vld [vmem:[%s1 + $0x50] sm:$0xf]
  %v106 = vld [vmem:[%s1 + $0x54] sm:$0xf]
  %v107 = vld [vmem:[%s1 + $0x58] sm:$0xf]
  %v108 = vld [vmem:[%s1 + $0x5c] sm:$0xf]
  %v109 = vld [vmem:[%s1 + $0x60] sm:$0xf]
  %v110 = vld [vmem:[%s1 + $0x64] sm:$0xf]
  %v111 = vld [vmem:[%s1 + $0x68] sm:$0xf]
  %v112 = vld [vmem:[%s1 + $0x6c] sm:$0xf]
  %v113 = vld [vmem:[%s1 + $0x70] sm:$0xf]
  %v114 = vld [vmem:[%s1 + $0x74] sm:$0xf]
  %v115 = vld [vmem:[%s1 + $0x78] sm:$0xf]
  %v116 = vld [vmem:[%s1 + $0x7c] sm:$0xf]
  %v117 = vld [vmem:[%s1 + $0x80] sm:$0xf]
  %v118 = vld [vmem:[%s1 + $0x84] sm:$0xf]
  %v119 = vld [vmem:[%s1 + $0x88] sm:$0xf]
  %v120 = vld [vmem:[%s1 + $0x8c] sm:$0xf]
  %v121 = vld [vmem:[%s1 + $0x90] sm:$0xf]
  %v122 = vld [vmem:[%s1 + $0x94] sm:$0xf]
  %v123 = vld [vmem:[%s1 + $0x98] sm:$0xf]
  %v124 = vld [vmem:[%s1 + $0x9c] sm:$0xf]
  %v125 = vld [vmem:[%s1 + $0xa0] sm:$0xf]
  %v126 = vld [vmem:[%s1 + $0xa4] sm:$0xf]
  %v127 = vld [vmem:[%s1 + $0xa8] sm:$0xf]
  %v128 = vld [vmem:[%s1 + $0xac] sm:$0xf]
  %v129 = vld [vmem:[%s1 + $0xb0] sm:$0xf]
  %v130 = vld [vmem:[%s1 + $0xb4] sm:$0xf]
  %v131 = vld [vmem:[%s1 + $0xb8] sm:$0xf]
  %v132 = vld [vmem:[%s1 + $0xbc] sm:$0xf]
  %v133 = vld [vmem:[%s1 + $0xc0] sm:$0xf]
  %v134 = vld [vmem:[%s1 + $0xc4] sm:$0xf]
  %v135 = vld [vmem:[%s1 + $0xc8] sm:$0xf]
  %v136 = vld [vmem:[%s1 + $0xcc] sm:$0xf]
  %v137 = vld [vmem:[%s1 + $0xd0] sm:$0xf]
  %v138 = vld [vmem:[%s1 + $0xd4] sm:$0xf]
  %v139 = vld [vmem:[%s1 + $0xd8] sm:$0xf]
  %v140 = vld [vmem:[%s1 + $0xdc] sm:$0xf]
  %v141 = vld [vmem:[%s1 + $0xe0] sm:$0xf]
  %v142 = vld [vmem:[%s1 + $0xe4] sm:$0xf]
  %v143 = vld [vmem:[%s1 + $0xe8] sm:$0xf]
  %v144 = vld [vmem:[%s1 + $0xec] sm:$0xf]
  %v145 = vld [vmem:[%s1 + $0xf0] sm:$0xf]
  %v146 = vld [vmem:[%s1 + $0xf4] sm:$0xf]
  %v147 = vld [vmem:[%s1 + $0xf8] sm:$0xf]
  %v148 = vld [vmem:[%s1 + $0xfc] sm:$0xf]
  %v149 = vld [vmem:[%s1 + $0x100] sm:$0xf]
  %v150 = vld [vmem:[%s1 + $0x104] sm:$0xf]
  %v151 = vld [vmem:[%s1 + $0x108] sm:$0xf]
  %v152 = vld [vmem:[%s1 + $0x10c] sm:$0xf]
  %v153 = vld [vmem:[%s1 + $0x110] sm:$0xf]
  %v154 = vld [vmem:[%s1 + $0x114] sm:$0xf]
  %v155 = vld [vmem:[%s1 + $0x118] sm:$0xf]
  %v156 = vld [vmem:[%s1 + $0x11c] sm:$0xf]
  %v157 = vld [vmem:[%s1 + $0x120] sm:$0xf]
  %v158 = vld [vmem:[%s1 + $0x124] sm:$0xf]
  %v159 = vld [vmem:[%s1 + $0x128] sm:$0xf]
  %v160 = vld [vmem:[%s1 + $0x12c] sm:$0xf]
  %v161 = vld [vmem:[%s1 + $0x130] sm:$0xf]
  %v162 = vld [vmem:[%s1 + $0x134] sm:$0xf]
  %v163 = vld [vmem:[%s1 + $0x138] sm:$0xf]
  %v164 = vld [vmem:[%s1 + $0x13c] sm:$0xf]
  %v165 = vld [vmem:[%s1 + $0x140] sm:$0xf]
  %v166 = vld [vmem:[%s1 + $0x144] sm:$0xf]
  %v167 = vld [vmem:[%s1 + $0x148] sm:$0xf]
  %v168 = vld [vmem:[%s1 + $0x14c] sm:$0xf]
  %v169 = vld [vmem:[%s1 + $0x150] sm:$0xf]
  %v170 = vld [vmem:[%s1 + $0x154] sm:$0xf]
  %v171 = vld [vmem:[%s1 + $0x158] sm:$0xf]
  %v172 = vld [vmem:[%s1 + $0x15c] sm:$0xf]
  %v173 = vld [vmem:[%s1 + $0x160] sm:$0xf]
  %v174 = vld [vmem:[%s1 + $0x164] sm:$0xf]
  %v175 = vld [vmem:[%s1 + $0x168] sm:$0xf]
  %v176 = vld [vmem:[%s1 + $0x16c] sm:$0xf]
  %v177 = vld [vmem:[%s1 + $0x170] sm:$0xf]
  %v178 = vld [vmem:[%s1 + $0x174] sm:$0xf]
  %v179 = vld [vmem:[%s1 + $0x178] sm:$0xf]
  %v180 = vld [vmem:[%s1 + $0x17c] sm:$0xf]
  %v181 = vld [vmem:[%s1 + $0x180] sm:$0xf]
  %v182 = vld [vmem:[%s1 + $0x184] sm:$0xf]
  %v183 = vld [vmem:[%s1 + $0x188] sm:$0xf]
  %v184 = vld [vmem:[%s1 + $0x18c] sm:$0xf]
  %v185 = vld [vmem:[%s1 + $0x190] sm:$0xf]
  %v186 = vld [vmem:[%s1 + $0x194] sm:$0xf]
  %v187 = vld [vmem:[%s1 + $0x198] sm:$0xf]
  %v188 = vld [vmem:[%s1 + $0x19c] sm:$0xf]
  %v189 = vld [vmem:[%s1 + $0x1a0] sm:$0xf]
  %v190 = vld [vmem:[%s1 + $0x1a4] sm:$0xf]
  %v191 = vld [vmem:[%s1 + $0x1a8] sm:$0xf]
  %v192 = vld [vmem:[%s1 + $0x1ac] sm:$0xf]
  %v193 = vld [vmem:[%s1 + $0x1b0] sm:$0xf]
  %v194 = vld [vmem:[%s1 + $0x1b4] sm:$0xf]
  %v195 = vld [vmem:[%s1 + $0x1b8] sm:$0xf]
  %v196 = vld [vmem:[%s1 + $0x1bc] sm:$0xf]
  %v197 = vld [vmem:[%s1 + $0x1c0] sm:$0xf]
  %v198 = vld [vmem:[%s1 + $0x1c4] sm:$0xf]
  %v199 = vld [vmem:[%s1 + $0x1c8] sm:$0xf]
  %v200 = vld [vmem:[%s1 + $0x1cc] sm:$0xf]
  %v201 = vld [vmem:[%s1 + $0x1d0] sm:$0xf]
  %v202 = vld [vmem:[%s1 + $0x1d4] sm:$0xf]
  %v203 = vld [vmem:[%s1 + $0x1d8] sm:$0xf]
  %v204 = vld [vmem:[%s1 + $0x1dc] sm:$0xf]
  %v205 = vld [vmem:[%s1 + $0x1e0] sm:$0xf]
  %v206 = vld [vmem:[%s1 + $0x1e4] sm:$0xf]
  %v207 = vld [vmem:[%s1 + $0x1e8] sm:$0xf]
  %v208 = vld [vmem:[%s1 + $0x1ec] sm:$0xf]
  %v209 = vld [vmem:[%s1 + $0x1f0] sm:$0xf]
  %v210 = vld [vmem:[%s1 + $0x1f4] sm:$0xf]
  %v211 = vld [vmem:[%s1 + $0x1f8] sm:$0xf]
  %v212 = vld [vmem:[%s1 + $0x1fc] sm:$0xf]
  %v213 = vld [vmem:[%s1 + $0x200] sm:$0xf]
  %v214 = vld [vmem:[%s1 + $0x204] sm:$0xf]
  %v215 = vld [vmem:[%s1 + $0x208] sm:$0xf]
  %v216 = vld [vmem:[%s1 + $0x20c] sm:$0xf]
  %v217 = vld [vmem:[%s1 + $0x210] sm:$0xf]
  %v218 = vld [vmem:[%s1 + $0x214] sm:$0xf]
  %v219 = vld [vmem:[%s1 + $0x218] sm:$0xf]
  %v220 = vld [vmem:[%s1 + $0x21c] sm:$0xf]
  %v221 = vld [vmem:[%s1 + $0x220] sm:$0xf]
  %v222 = vld [vmem:[%s1 + $0x224] sm:$0xf]
  %v223 = vld [vmem:[%s1 + $0x228] sm:$0xf]
  %v224 = vld [vmem:[%s1 + $0x22c] sm:$0xf]
  %v225 = vld [vmem:[%s1 + $0x230] sm:$0xf]
  %v226 = vld [vmem:[%s1 + $0x234] sm:$0xf]
  %v227 = vld [vmem:[%s1 + $0x238] sm:$0xf]
  %v228 = vld [vmem:[%s1 + $0x23c] sm:$0xf]
  %v229 = vld [vmem:[%s1 + $0x240] sm:$0xf]
  %v230 = vld [vmem:[%s1 + $0x244] sm:$0xf]
  %v231 = vld [vmem:[%s1 + $0x248] sm:$0xf]
  %v232 = vld [vmem:[%s1 + $0x24c] sm:$0xf]
  %v233 = vld [vmem:[%s1 + $0x250] sm:$0xf]
  %v234 = vld [vmem:[%s1 + $0x254] sm:$0xf]
  %v235 = vld [vmem:[%s1 + $0x258] sm:$0xf]
  %v236 = vld [vmem:[%s1 + $0x25c] sm:$0xf]
  %v237 = vld [vmem:[%s1 + $0x260] sm:$0xf]
  %v238 = vld [vmem:[%s1 + $0x264] sm:$0xf]
  %v239 = vld [vmem:[%s1 + $0x268] sm:$0xf]
  %v240 = vld [vmem:[%s1 + $0x26c] sm:$0xf]
  %v241 = vld [vmem:[%s1 + $0x270] sm:$0xf]
  %v242 = vld [vmem:[%s1 + $0x274] sm:$0xf]
  %v243 = vld [vmem:[%s1 + $0x278] sm:$0xf]
  %v244 = vld [vmem:[%s1 + $0x27c] sm:$0xf]
  %v245 = vld [vmem:[%s1 + $0x280] sm:$0xf]
  %v246 = vld [vmem:[%s1 + $0x284] sm:$0xf]
  %v247 = vld [vmem:[%s1 + $0x288] sm:$0xf]
  %v248 = vld [vmem:[%s1 + $0x28c] sm:$0xf]
  %v249 = vld [vmem:[%s1 + $0x290] sm:$0xf]
  %v250 = vld [vmem:[%s1 + $0x294] sm:$0xf]
  %v251 = vld [vmem:[%s1 + $0x298] sm:$0xf]
  %v252 = vld [vmem:[%s1 + $0x29c] sm:$0xf]
  %v253 = vld [vmem:[%s1 + $0x2a0] sm:$0xf]
  %v254 = vld [vmem:[%s1 + $0x2a4] sm:$0xf]
  %v255 = vld [vmem:[%s1 + $0x2a8] sm:$0xf]
  %v256 = vld [vmem:[%s1 + $0x2ac] sm:$0xf]
  %v257 = vld [vmem:[%s1 + $0x2b0] sm:$0xf]
  %v258 = vld [vmem:[%s1 + $0x2b4] sm:$0xf]
  %v259 = vld [vmem:[%s1 + $0x2b8] sm:$0xf]
  %v260 = vld [vmem:[%s1 + $0x2bc] sm:$0xf]
  %v261 = vld [vmem:[%s1 + $0x2c0] sm:$0xf]
  %v262 = vld [vmem:[%s1 + $0x2c4] sm:$0xf]
  %v263 = vld [vmem:[%s1 + $0x2c8] sm:$0xf]
  %v264 = vld [vmem:[%s1 + $0x2cc] sm:$0xf]
  %v265 = vld [vmem:[%s1 + $0x2d0] sm:$0xf]
  %v266 = vld [vmem:[%s1 + $0x2d4] sm:$0xf]
  %v267 = vld [vmem:[%s1 + $0x2d8] sm:$0xf]
  %v268 = vld [vmem:[%s1 + $0x2dc] sm:$0xf]
  %v269 = vld [vmem:[%s1 + $0x2e0] sm:$0xf]
  %v270 = vld [vmem:[%s1 + $0x2e4] sm:$0xf]
  %v271 = vld [vmem:[%s1 + $0x2e8] sm:$0xf]
  %v272 = vld [vmem:[%s1 + $0x2ec] sm:$0xf]
  %v273 = vld [vmem:[%s1 + $0x2f0] sm:$0xf]
  %v274 = vld [vmem:[%s1 + $0x2f4] sm:$0xf]
  %v275 = vld [vmem:[%s1 + $0x2f8] sm:$0xf]
  %v276 = vld [vmem:[%s1 + $0x2fc] sm:$0xf]
  %v277 = vld [vmem:[%s1 + $0x300] sm:$0xf]
  %v278 = vld [vmem:[%s1 + $0x304] sm:$0xf]
  %v279 = vld [vmem:[%s1 + $0x308] sm:$0xf]
  %v280 = vld [vmem:[%s1 + $0x30c] sm:$0xf]
  %v281 = vld [vmem:[%s1 + $0x310] sm:$0xf]
  %v282 = vld [vmem:[%s1 + $0x314] sm:$0xf]
  %v283 = vld [vmem:[%s1 + $0x318] sm:$0xf]
  %v284 = vld [vmem:[%s1 + $0x31c] sm:$0xf]
  %v285 = vld [vmem:[%s1 + $0x320] sm:$0xf]
  %v286 = vld [vmem:[%s1 + $0x324] sm:$0xf]
  %v287 = vld [vmem:[%s1 + $0x328] sm:$0xf]
  %v288 = vld [vmem:[%s1 + $0x32c] sm:$0xf]
  %v289 = vld [vmem:[%s1 + $0x330] sm:$0xf]
  %v290 = vld [vmem:[%s1 + $0x334] sm:$0xf]
  %v291 = vld [vmem:[%s1 + $0x338] sm:$0xf]
  %v292 = vld [vmem:[%s1 + $0x33c] sm:$0xf]
  %v293 = vld [vmem:[%s1 + $0x340] sm:$0xf]
  %v294 = vld [vmem:[%s1 + $0x344] sm:$0xf]
  %v295 = vld [vmem:[%s1 + $0x348] sm:$0xf]
  %v296 = vld [vmem:[%s1 + $0x34c] sm:$0xf]
  %v297 = vld [vmem:[%s1 + $0x350] sm:$0xf]
  %v298 = vld [vmem:[%s1 + $0x354] sm:$0xf]
  %v299 = vld [vmem:[%s1 + $0x358] sm:$0xf]
  %v300 = vld [vmem:[%s1 + $0x35c] sm:$0xf]
  %v301 = vld [vmem:[%s1 + $0x360] sm:$0xf]
  %v302 = vld [vmem:[%s1 + $0x364] sm:$0xf]
  %v303 = vld [vmem:[%s1 + $0x368] sm:$0xf]
  %v304 = vld [vmem:[%s1 + $0x36c] sm:$0xf]
  %v305 = vld [vmem:[%s1 + $0x370] sm:$0xf]
  %v306 = vld [vmem:[%s1 + $0x374] sm:$0xf]
  %v307 = vld [vmem:[%s1 + $0x378] sm:$0xf]
  %v308 = vld [vmem:[%s1 + $0x37c] sm:$0xf]
  %v309 = vld [vmem:[%s1 + $0x380] sm:$0xf]
  %v310 = vld [vmem:[%s1 + $0x384] sm:$0xf]
  %v311 = vld [vmem:[%s1 + $0x388] sm:$0xf]
  %v312 = vld [vmem:[%s1 + $0x38c] sm:$0xf]
  %v313 = vld [vmem:[%s1 + $0x390] sm:$0xf]
  %v314 = vld [vmem:[%s1 + $0x394] sm:$0xf]
  %v315 = vld [vmem:[%s1 + $0x398] sm:$0xf]
  %v316 = vld [vmem:[%s1 + $0x39c] sm:$0xf]
  %v317 = vld [vmem:[%s1 + $0x3a0] sm:$0xf]
  %v318 = vld [vmem:[%s1 + $0x3a4] sm:$0xf]
  %v319 = vld [vmem:[%s1 + $0x3a8] sm:$0xf]
  %v320 = vld [vmem:[%s1 + $0x3ac] sm:$0xf]
  %v321 = vld [vmem:[%s1 + $0x3b0] sm:$0xf]
  %v322 = vld [vmem:[%s1 + $0x3b4] sm:$0xf]
  %v323 = vld [vmem:[%s1 + $0x3b8] sm:$0xf]
  %v324 = vld [vmem:[%s1 + $0x3bc] sm:$0xf]
  %v325 = vld [vmem:[%s1 + $0x3c0] sm:$0xf]
  %v326 = vld [vmem:[%s1 + $0x3c4] sm:$0xf]
  %v327 = vld [vmem:[%s1 + $0x3c8] sm:$0xf]
  %v328 = vld [vmem:[%s1 + $0x3cc] sm:$0xf]
  %v329 = vld [vmem:[%s1 + $0x3d0] sm:$0xf]
  %v330 = vld [vmem:[%s1 + $0x3d4] sm:$0xf]
  %v331 = vld [vmem:[%s1 + $0x3d8] sm:$0xf]
  %v332 = vld [vmem:[%s1 + $0x3dc] sm:$0xf]
  %v333 = vld [vmem:[%s1 + $0x3e0] sm:$0xf]
  %v334 = vld [vmem:[%s1 + $0x3e4] sm:$0xf]
  %v335 = vld [vmem:[%s1 + $0x3e8] sm:$0xf]
  %v336 = vld [vmem:[%s1 + $0x3ec] sm:$0xf]
  %v337 = vld [vmem:[%s1 + $0x3f0] sm:$0xf]
  %v338 = vld [vmem:[%s1 + $0x3f4] sm:$0xf]
  %v339 = vld [vmem:[%s1 + $0x3f8] sm:$0xf]
  %v340 = vld [vmem:[%s1 + $0x3fc] sm:$0xf]
  %v341 = vld [vmem:[%s1 + $0x400] sm:$0xf]
  %v342 = vld [vmem:[%s1 + $0x404] sm:$0xf]
  %v343 = vld [vmem:[%s1 + $0x408] sm:$0xf]
  %v344 = vld [vmem:[%s1 + $0x40c] sm:$0xf]
  %v345 = vld [vmem:[%s1 + $0x410] sm:$0xf]
  %v346 = vld [vmem:[%s1 + $0x414] sm:$0xf]
  %v347 = vld [vmem:[%s1 + $0x418] sm:$0xf]
  %v348 = vld [vmem:[%s1 + $0x41c] sm:$0xf]
  %v349 = vld [vmem:[%s1 + $0x420] sm:$0xf]
  %v350 = vld [vmem:[%s1 + $0x424] sm:$0xf]
  %v351 = vld [vmem:[%s1 + $0x428] sm:$0xf]
  %v352 = vld [vmem:[%s1 + $0x42c] sm:$0xf]
  %v353 = vld [vmem:[%s1 + $0x430] sm:$0xf]
  %v354 = vld [vmem:[%s1 + $0x434] sm:$0xf]
  %v355 = vld [vmem:[%s1 + $0x438] sm:$0xf]
  %v356 = vld [vmem:[%s1 + $0x43c] sm:$0xf]
  %v357 = vld [vmem:[%s1 + $0x440] sm:$0xf]
  %v358 = vld [vmem:[%s1 + $0x444] sm:$0xf]
  %v359 = vld [vmem:[%s1 + $0x448] sm:$0xf]
  %v360 = vld [vmem:[%s1 + $0x44c] sm:$0xf]
  %v361 = vld [vmem:[%s1 + $0x450] sm:$0xf]
  %v362 = vld [vmem:[%s1 + $0x454] sm:$0xf]
  %v363 = vld [vmem:[%s1 + $0x458] sm:$0xf]
  %v364 = vld [vmem:[%s1 + $0x45c] sm:$0xf]
  %v365 = vld [vmem:[%s1 + $0x460] sm:$0xf]
  %v366 = vld [vmem:[%s1 + $0x464] sm:$0xf]
  %v367 = vld [vmem:[%s1 + $0x468] sm:$0xf]
  %v368 = vld [vmem:[%s1 + $0x46c] sm:$0xf]
  %v369 = vld [vmem:[%s1 + $0x470] sm:$0xf]
  %v370 = vld [vmem:[%s1 + $0x474] sm:$0xf]
  %v371 = vld [vmem:[%s1 + $0x478] sm:$0xf]
  %v372 = vld [vmem:[%s1 + $0x47c] sm:$0xf]
  %v373 = vld [vmem:[%s1 + $0x480] sm:$0xf]
  %v374 = vld [vmem:[%s1 + $0x484] sm:$0xf]
  %v375 = vld [vmem:[%s1 + $0x488] sm:$0xf]
  %v376 = vld [vmem:[%s1 + $0x48c] sm:$0xf]
  %v377 = vld [vmem:[%s1 + $0x490] sm:$0xf]
  %v378 = vld [vmem:[%s1 + $0x494] sm:$0xf]
  %v379 = vld [vmem:[%s1 + $0x498] sm:$0xf]
  %v380 = vld [vmem:[%s1 + $0x49c] sm:$0xf]
  %v381 = vld [vmem:[%s1 + $0x4a0] sm:$0xf]
  %v382 = vld [vmem:[%s1 + $0x4a4] sm:$0xf]
  %v383 = vld [vmem:[%s1 + $0x4a8] sm:$0xf]
  %v384 = vld [vmem:[%s1 + $0x4ac] sm:$0xf]
  %v385 = vld [vmem:[%s1 + $0x4b0] sm:$0xf]
  %v386 = vld [vmem:[%s1 + $0x4b4] sm:$0xf]
  %v387 = vld [vmem:[%s1 + $0x4b8] sm:$0xf]
  %v388 = vld [vmem:[%s1 + $0x4bc] sm:$0xf]
  %v389 = vld [vmem:[%s1 + $0x4c0] sm:$0xf]
  %v390 = vld [vmem:[%s1 + $0x4c4] sm:$0xf]
  %v391 = vld [vmem:[%s1 + $0x4c8] sm:$0xf]
  %v392 = vld [vmem:[%s1 + $0x4cc] sm:$0xf]
  %v393 = vld [vmem:[%s1 + $0x4d0] sm:$0xf]
  %v394 = vld [vmem:[%s1 + $0x4d4] sm:$0xf]
  %v395 = vld [vmem:[%s1 + $0x4d8] sm:$0xf]
  %v396 = vld [vmem:[%s1 + $0x4dc] sm:$0xf]
  %v397 = vld [vmem:[%s1 + $0x4e0] sm:$0xf]
  %v398 = vld [vmem:[%s1 + $0x4e4] sm:$0xf]
  %v399 = vld [vmem:[%s1 + $0x4e8] sm:$0xf]
  %v400 = vld [vmem:[%s1 + $0x4ec] sm:$0xf]
  %v401 = vld [vmem:[%s1 + $0x4f0] sm:$0xf]
  %v402 = vld [vmem:[%s1 + $0x4f4] sm:$0xf]
  %v403 = vld [vmem:[%s1 + $0x4f8] sm:$0xf]
  %v404 = vld [vmem:[%s1 + $0x4fc] sm:$0xf]
  %v405 = vld [vmem:[%s1 + $0x500] sm:$0xf]
  %v406 = vld [vmem:[%s1 + $0x504] sm:$0xf]
  %v407 = vld [vmem:[%s1 + $0x508] sm:$0xf]
  %v408 = vld [vmem:[%s1 + $0x50c] sm:$0xf]
  %v409 = vld [vmem:[%s1 + $0x510] sm:$0xf]
  %v410 = vld [vmem:[%s1 + $0x514] sm:$0xf]
  %v411 = vld [vmem:[%s1 + $0x518] sm:$0xf]
  %v412 = vld [vmem:[%s1 + $0x51c] sm:$0xf]
  %v413 = vld [vmem:[%s1 + $0x520] sm:$0xf]
  %v414 = vld [vmem:[%s1 + $0x524] sm:$0xf]
  %v415 = vld [vmem:[%s1 + $0x528] sm:$0xf]
  %v416 = vld [vmem:[%s1 + $0x52c] sm:$0xf]
  %v417 = vld [vmem:[%s1 + $0x530] sm:$0xf]
  %v418 = vld [vmem:[%s1 + $0x534] sm:$0xf]
  %v419 = vld [vmem:[%s1 + $0x538] sm:$0xf]
  %v420 = vld [vmem:[%s1 + $0x53c] sm:$0xf]
  %v421 = vld [vmem:[%s1 + $0x540] sm:$0xf]
  %v422 = vld [vmem:[%s1 + $0x544] sm:$0xf]
  %v423 = vld [vmem:[%s1 + $0x548] sm:$0xf]
  %v424 = vld [vmem:[%s1 + $0x54c] sm:$0xf]
  %v425 = vld [vmem:[%s1 + $0x550] sm:$0xf]
  %v426 = vld [vmem:[%s1 + $0x554] sm:$0xf]
  %v427 = vld [vmem:[%s1 + $0x558] sm:$0xf]
  %v428 = vld [vmem:[%s1 + $0x55c] sm:$0xf]
  %v429 = vld [vmem:[%s1 + $0x560] sm:$0xf]
  %v430 = vld [vmem:[%s1 + $0x564] sm:$0xf]
  %v431 = vld [vmem:[%s1 + $0x568] sm:$0xf]
  %v432 = vld [vmem:[%s1 + $0x56c] sm:$0xf]
  %v433 = vld [vmem:[%s1 + $0x570] sm:$0xf]
  %v434 = vld [vmem:[%s1 + $0x574] sm:$0xf]
  %v435 = vld [vmem:[%s1 + $0x578] sm:$0xf]
  %v436 = vld [vmem:[%s1 + $0x57c] sm:$0xf]
  %v437 = vld [vmem:[%s1 + $0x580] sm:$0xf]
  %v438 = vld [vmem:[%s1 + $0x584] sm:$0xf]
  %v439 = vld [vmem:[%s1 + $0x588] sm:$0xf]
  %v440 = vld [vmem:[%s1 + $0x58c] sm:$0xf]
  %v441 = vld [vmem:[%s1 + $0x590] sm:$0xf]
  %v442 = vld [vmem:[%s1 + $0x594] sm:$0xf]
  %v443 = vld [vmem:[%s1 + $0x598] sm:$0xf]
  %v444 = vld [vmem:[%s1 + $0x59c] sm:$0xf]
  %v445 = vld [vmem:[%s1 + $0x5a0] sm:$0xf]
  %v446 = vld [vmem:[%s1 + $0x5a4] sm:$0xf]
  %v447 = vld [vmem:[%s1 + $0x5a8] sm:$0xf]
  %v448 = vld [vmem:[%s1 + $0x5ac] sm:$0xf]
  %v449 = vld [vmem:[%s1 + $0x5b0] sm:$0xf]
  %v450 = vld [vmem:[%s1 + $0x5b4] sm:$0xf]
  %v451 = vld [vmem:[%s1 + $0x5b8] sm:$0xf]
  %v452 = vld [vmem:[%s1 + $0x5bc] sm:$0xf]
  %v453 = vld [vmem:[%s1 + $0x5c0] sm:$0xf]
  %v454 = vld [vmem:[%s1 + $0x5c4] sm:$0xf]
  %v455 = vld [vmem:[%s1 + $0x5c8] sm:$0xf]
  %v456 = vld [vmem:[%s1 + $0x5cc] sm:$0xf]
  %v457 = vld [vmem:[%s1 + $0x5d0] sm:$0xf]
  %v458 = vld [vmem:[%s1 + $0x5d4] sm:$0xf]
  %v459 = vld [vmem:[%s1 + $0x5d8] sm:$0xf]
  %v460 = vld [vmem:[%s1 + $0x5dc] sm:$0xf]
  %v461 = vld [vmem:[%s1 + $0x5e0] sm:$0xf]
  %v462 = vld [vmem:[%s1 + $0x5e4] sm:$0xf]
  %v463 = vld [vmem:[%s1 + $0x5e8] sm:$0xf]
  %v464 = vld [vmem:[%s1 + $0x5ec] sm:$0xf]
  %v465 = vld [vmem:[%s1 + $0x5f0] sm:$0xf]
  %v466 = vld [vmem:[%s1 + $0x5f4] sm:$0xf]
  %v467 = vld [vmem:[%s1 + $0x5f8] sm:$0xf]
  %v468 = vld [vmem:[%s1 + $0x5fc] sm:$0xf]
  %v469 = vld [vmem:[%s1 + $0x600] sm:$0xf]
  %v470 = vld [vmem:[%s1 + $0x604] sm:$0xf]
  %v471 = vld [vmem:[%s1 + $0x608] sm:$0xf]
  %v472 = vld [vmem:[%s1 + $0x60c] sm:$0xf]
  %v473 = vld [vmem:[%s1 + $0x610] sm:$0xf]
  %v474 = vld [vmem:[%s1 + $0x614] sm:$0xf]
  %v475 = vld [vmem:[%s1 + $0x618] sm:$0xf]
  %v476 = vld [vmem:[%s1 + $0x61c] sm:$0xf]
  %v477 = vld [vmem:[%s1 + $0x620] sm:$0xf]
  %v478 = vld [vmem:[%s1 + $0x624] sm:$0xf]
  %v479 = vld [vmem:[%s1 + $0x628] sm:$0xf]
  %v480 = vld [vmem:[%s1 + $0x62c] sm:$0xf]
  %v481 = vld [vmem:[%s1 + $0x630] sm:$0xf]
  %v482 = vld [vmem:[%s1 + $0x634] sm:$0xf]
  %v483 = vld [vmem:[%s1 + $0x638] sm:$0xf]
  %v484 = vld [vmem:[%s1 + $0x63c] sm:$0xf]
  %v485 = vld [vmem:[%s1 + $0x640] sm:$0xf]
  %v486 = vld [vmem:[%s1 + $0x644] sm:$0xf]
  %v487 = vld [vmem:[%s1 + $0x648] sm:$0xf]
  %v488 = vld [vmem:[%s1 + $0x64c] sm:$0xf]
  %v489 = vld [vmem:[%s1 + $0x650] sm:$0xf]
  %v490 = vld [vmem:[%s1 + $0x654] sm:$0xf]
  %v491 = vld [vmem:[%s1 + $0x658] sm:$0xf]
  %v492 = vld [vmem:[%s1 + $0x65c] sm:$0xf]
  %v493 = vld [vmem:[%s1 + $0x660] sm:$0xf]
  %v494 = vld [vmem:[%s1 + $0x664] sm:$0xf]
  %v495 = vld [vmem:[%s1 + $0x668] sm:$0xf]
  %v496 = vld [vmem:[%s1 + $0x66c] sm:$0xf]
  %v497 = vld [vmem:[%s1 + $0x670] sm:$0xf]
  %v498 = vld [vmem:[%s1 + $0x674] sm:$0xf]
  %v499 = vld [vmem:[%s1 + $0x678] sm:$0xf]
  %v500 = vld [vmem:[%s1 + $0x67c] sm:$0xf]
  %v501 = vld [vmem:[%s1 + $0x680] sm:$0xf]
  %v502 = vld [vmem:[%s1 + $0x684] sm:$0xf]
  %v503 = vld [vmem:[%s1 + $0x688] sm:$0xf]
  %v504 = vld [vmem:[%s1 + $0x68c] sm:$0xf]
  %v505 = vld [vmem:[%s1 + $0x690] sm:$0xf]
  %v506 = vld [vmem:[%s1 + $0x694] sm:$0xf]
  %v507 = vld [vmem:[%s1 + $0x698] sm:$0xf]
  %v508 = vld [vmem:[%s1 + $0x69c] sm:$0xf]
  %v509 = vld [vmem:[%s1 + $0x6a0] sm:$0xf]
  %v510 = vld [vmem:[%s1 + $0x6a4] sm:$0xf]
  %v511 = vld [vmem:[%s1 + $0x6a8] sm:$0xf]
  %v512 = vld [vmem:[%s1 + $0x6ac] sm:$0xf]
  %v513 = vld [vmem:[%s1 + $0x6b0] sm:$0xf]
  %v514 = vld [vmem:[%s1 + $0x6b4] sm:$0xf]
  %v515 = vld [vmem:[%s1 + $0x6b8] sm:$0xf]
  %v516 = vld [vmem:[%s1 + $0x6bc] sm:$0xf]
  %v517 = vld [vmem:[%s1 + $0x6c0] sm:$0xf]
  %v518 = vld [vmem:[%s1 + $0x6c4] sm:$0xf]
  %v519 = vld [vmem:[%s1 + $0x6c8] sm:$0xf]
  %v520 = vld [vmem:[%s1 + $0x6cc] sm:$0xf]
  %v521 = vld [vmem:[%s1 + $0x6d0] sm:$0xf]
  %v522 = vld [vmem:[%s1 + $0x6d4] sm:$0xf]
  %v523 = vld [vmem:[%s1 + $0x6d8] sm:$0xf]
  %v524 = vld [vmem:[%s1 + $0x6dc] sm:$0xf]
  %v525 = vld [vmem:[%s1 + $0x6e0] sm:$0xf]
  %v526 = vld [vmem:[%s1 + $0x6e4] sm:$0xf]
  %v527 = vld [vmem:[%s1 + $0x6e8] sm:$0xf]
  %v528 = vld [vmem:[%s1 + $0x6ec] sm:$0xf]
  %v529 = vld [vmem:[%s1 + $0x6f0] sm:$0xf]
  %v530 = vld [vmem:[%s1 + $0x6f4] sm:$0xf]
  %v531 = vld [vmem:[%s1 + $0x6f8] sm:$0xf]
  %v532 = vld [vmem:[%s1 + $0x6fc] sm:$0xf]
  %v533 = vld [vmem:[%s1 + $0x700] sm:$0xf]
  %v534 = vld [vmem:[%s1 + $0x704] sm:$0xf]
  %v535 = vld [vmem:[%s1 + $0x708] sm:$0xf]
  %v536 = vld [vmem:[%s1 + $0x70c] sm:$0xf]
  %v537 = vld [vmem:[%s1 + $0x710] sm:$0xf]
  %v538 = vld [vmem:[%s1 + $0x714] sm:$0xf]
  %v539 = vld [vmem:[%s1 + $0x718] sm:$0xf]
  %v540 = vld [vmem:[%s1 + $0x71c] sm:$0xf]
  %v541 = vld [vmem:[%s1 + $0x720] sm:$0xf]
  %v542 = vld [vmem:[%s1 + $0x724] sm:$0xf]
  %v543 = vld [vmem:[%s1 + $0x728] sm:$0xf]
  %v544 = vld [vmem:[%s1 + $0x72c] sm:$0xf]
  %v545 = vld [vmem:[%s1 + $0x730] sm:$0xf]
  %v546 = vld [vmem:[%s1 + $0x734] sm:$0xf]
  %v547 = vld [vmem:[%s1 + $0x738] sm:$0xf]
  %v548 = vld [vmem:[%s1 + $0x73c] sm:$0xf]
  %v549 = vld [vmem:[%s1 + $0x740] sm:$0xf]
  %v550 = vld [vmem:[%s1 + $0x744] sm:$0xf]
  %v551 = vld [vmem:[%s1 + $0x748] sm:$0xf]
  %v552 = vld [vmem:[%s1 + $0x74c] sm:$0xf]
  %v553 = vld [vmem:[%s1 + $0x750] sm:$0xf]
  %v554 = vld [vmem:[%s1 + $0x754] sm:$0xf]
  %v555 = vld [vmem:[%s1 + $0x758] sm:$0xf]
  %v556 = vld [vmem:[%s1 + $0x75c] sm:$0xf]
  %v557 = vld [vmem:[%s1 + $0x760] sm:$0xf]
  %v558 = vld [vmem:[%s1 + $0x764] sm:$0xf]
  %v559 = vld [vmem:[%s1 + $0x768] sm:$0xf]
  %v560 = vld [vmem:[%s1 + $0x76c] sm:$0xf]
  %v561 = vld [vmem:[%s1 + $0x770] sm:$0xf]
  %v562 = vld [vmem:[%s1 + $0x774] sm:$0xf]
  %v563 = vld [vmem:[%s1 + $0x778] sm:$0xf]
  %v564 = vld [vmem:[%s1 + $0x77c] sm:$0xf]
  %v565 = vld [vmem:[%s1 + $0x780] sm:$0xf]
  %v566 = vld [vmem:[%s1 + $0x784] sm:$0xf]
  %v567 = vld [vmem:[%s1 + $0x788] sm:$0xf]
  %v568 = vld [vmem:[%s1 + $0x78c] sm:$0xf]
  %v569 = vld [vmem:[%s1 + $0x790] sm:$0xf]
  %v570 = vld [vmem:[%s1 + $0x794] sm:$0xf]
  %v571 = vld [vmem:[%s1 + $0x798] sm:$0xf]
  %v572 = vld [vmem:[%s1 + $0x79c] sm:$0xf]
  %v573 = vld [vmem:[%s1 + $0x7a0] sm:$0xf]
  %v574 = vld [vmem:[%s1 + $0x7a4] sm:$0xf]
  %v575 = vld [vmem:[%s1 + $0x7a8] sm:$0xf]
  %v576 = vld [vmem:[%s1 + $0x7ac] sm:$0xf]
  %v577 = vld [vmem:[%s1 + $0x7b0] sm:$0xf]
  %v578 = vld [vmem:[%s1 + $0x7b4] sm:$0xf]
  %v579 = vld [vmem:[%s1 + $0x7b8] sm:$0xf]
  %v580 = vld [vmem:[%s1 + $0x7bc] sm:$0xf]
  %v581 = vld [vmem:[%s1 + $0x7c0] sm:$0xf]
  %v582 = vld [vmem:[%s1 + $0x7c4] sm:$0xf]
  %v583 = vld [vmem:[%s1 + $0x7c8] sm:$0xf]
  %v584 = vld [vmem:[%s1 + $0x7cc] sm:$0xf]
  %v585 = vld [vmem:[%s1 + $0x7d0] sm:$0xf]
  %v586 = vld [vmem:[%s1 + $0x7d4] sm:$0xf]
  %v587 = vld [vmem:[%s1 + $0x7d8] sm:$0xf]
  %v588 = vld [vmem:[%s1 + $0x7dc] sm:$0xf]
  %v589 = vld [vmem:[%s1 + $0x7e0] sm:$0xf]
  %v590 = vld [vmem:[%s1 + $0x7e4] sm:$0xf]
  %v591 = vld [vmem:[%s1 + $0x7e8] sm:$0xf]
  %v592 = vld [vmem:[%s1 + $0x7ec] sm:$0xf]
  %v593 = vld [vmem:[%s1 + $0x7f0] sm:$0xf]
  %v594 = vld [vmem:[%s1 + $0x7f4] sm:$0xf]
  %v595 = vld [vmem:[%s1 + $0x7f8] sm:$0xf]
  %v596 = vld [vmem:[%s1 + $0x7fc] sm:$0xf]
  %v597 = vld [vmem:[%s2] sm:$0x1]
  %v599 = vperm.slane %v597, 0
  %v609 = vunpack.c.l.b16 %v85
  %v610 = vunpack.c.l.b16 %v86
  %v611 = vunpack.c.l.b16 %v87
  %v612 = vunpack.c.l.b16 %v88
  %v613 = vunpack.c.l.b16 %v89
  %v614 = vunpack.c.l.b16 %v90
  %v615 = vunpack.c.l.b16 %v91
  %v616 = vunpack.c.l.b16 %v92
  %v617 = vpack.c.b16 %v610, %v609
  %v618 = vpack.c.b16 %v612, %v611
  %v619 = vpack.c.b16 %v614, %v613
  %v620 = vpack.c.b16 %v616, %v615
  %vm625 = vcmask 523264
  %v627 = vsel %vm625, %v21, 0
  %629 = vmatpush.bf16.msra.mxu0 0
  %630 = vmatpush.bf16.msra.mxu0 0
  %631 = vmatpush.bf16.msra.mxu0 0
  %632 = vmatpush.bf16.msra.mxu0 0
  %633 = vmatpush.bf16.msra.mxu0 %v620
  %634 = vmatpush.bf16.msra.mxu0 %v619
  %635 = vmatpush.bf16.msra.mxu0 %v618
  %636 = vmatpush.bf16.msra.mxu0 %v617
  %637 = vmatmul.bf16.gmra.mxu0 %v627
  %v638 = vpop.f32.mrf.mxu0
  %v639 = vadd.f32 %v599, %v638
  %v640 = vpop.f32.mrf.mxu0
  %641 = vdwg.mxu0
  %v650 = vunpack.c.l.b16 %v93
  %v651 = vunpack.c.l.b16 %v94
  %v652 = vunpack.c.l.b16 %v95
  %v653 = vunpack.c.l.b16 %v96
  %v654 = vunpack.c.l.b16 %v97
  %v655 = vunpack.c.l.b16 %v98
  %v656 = vunpack.c.l.b16 %v99
  %v657 = vunpack.c.l.b16 %v100
  %v658 = vpack.c.b16 %v651, %v650
  %v659 = vpack.c.b16 %v653, %v652
  %v660 = vpack.c.b16 %v655, %v654
  %v661 = vpack.c.b16 %v657, %v656
  %v667 = vsel %vm625, %v22, 0
  %669 = vmatpush.bf16.msra.mxu0 0
  %670 = vmatpush.bf16.msra.mxu0 0
  %671 = vmatpush.bf16.msra.mxu0 0
  %672 = vmatpush.bf16.msra.mxu0 0
  %673 = vmatpush.bf16.msra.mxu0 %v661
  %674 = vmatpush.bf16.msra.mxu0 %v660
  %675 = vmatpush.bf16.msra.mxu0 %v659
  %676 = vmatpush.bf16.msra.mxu0 %v658
  %677 = vmatmul.bf16.gmra.mxu0 %v667
  %v678 = vpop.f32.mrf.mxu0
  %v679 = vadd.f32 %v599, %v678
  %v680 = vpop.f32.mrf.mxu0
  %681 = vdwg.mxu0
  %v690 = vunpack.c.l.b16 %v101
  %v691 = vunpack.c.l.b16 %v102
  %v692 = vunpack.c.l.b16 %v103
  %v693 = vunpack.c.l.b16 %v104
  %v694 = vunpack.c.l.b16 %v105
  %v695 = vunpack.c.l.b16 %v106
  %v696 = vunpack.c.l.b16 %v107
  %v697 = vunpack.c.l.b16 %v108
  %v698 = vpack.c.b16 %v691, %v690
  %v699 = vpack.c.b16 %v693, %v692
  %v700 = vpack.c.b16 %v695, %v694
  %v701 = vpack.c.b16 %v697, %v696
  %v707 = vsel %vm625, %v23, 0
  %709 = vmatpush.bf16.msra.mxu0 0
  %710 = vmatpush.bf16.msra.mxu0 0
  %711 = vmatpush.bf16.msra.mxu0 0
  %712 = vmatpush.bf16.msra.mxu0 0
  %713 = vmatpush.bf16.msra.mxu0 %v701
  %714 = vmatpush.bf16.msra.mxu0 %v700
  %715 = vmatpush.bf16.msra.mxu0 %v699
  %716 = vmatpush.bf16.msra.mxu0 %v698
  %717 = vmatmul.bf16.gmra.mxu0 %v707
  %v718 = vpop.f32.mrf.mxu0
  %v719 = vadd.f32 %v599, %v718
  %v720 = vpop.f32.mrf.mxu0
  %721 = vdwg.mxu0
  %v730 = vunpack.c.l.b16 %v109
  %v731 = vunpack.c.l.b16 %v110
  %v732 = vunpack.c.l.b16 %v111
  %v733 = vunpack.c.l.b16 %v112
  %v734 = vunpack.c.l.b16 %v113
  %v735 = vunpack.c.l.b16 %v114
  %v736 = vunpack.c.l.b16 %v115
  %v737 = vunpack.c.l.b16 %v116
  %v738 = vpack.c.b16 %v731, %v730
  %v739 = vpack.c.b16 %v733, %v732
  %v740 = vpack.c.b16 %v735, %v734
  %v741 = vpack.c.b16 %v737, %v736
  %v747 = vsel %vm625, %v24, 0
  %749 = vmatpush.bf16.msra.mxu0 0
  %750 = vmatpush.bf16.msra.mxu0 0
  %751 = vmatpush.bf16.msra.mxu0 0
  %752 = vmatpush.bf16.msra.mxu0 0
  %753 = vmatpush.bf16.msra.mxu0 %v741
  %754 = vmatpush.bf16.msra.mxu0 %v740
  %755 = vmatpush.bf16.msra.mxu0 %v739
  %756 = vmatpush.bf16.msra.mxu0 %v738
  %757 = vmatmul.bf16.gmra.mxu0 %v747
  %v758 = vpop.f32.mrf.mxu0
  %v759 = vadd.f32 %v599, %v758
  %v760 = vpop.f32.mrf.mxu0
  %761 = vdwg.mxu0
  %v770 = vunpack.c.l.b16 %v117
  %v771 = vunpack.c.l.b16 %v118
  %v772 = vunpack.c.l.b16 %v119
  %v773 = vunpack.c.l.b16 %v120
  %v774 = vunpack.c.l.b16 %v121
  %v775 = vunpack.c.l.b16 %v122
  %v776 = vunpack.c.l.b16 %v123
  %v777 = vunpack.c.l.b16 %v124
  %v778 = vpack.c.b16 %v771, %v770
  %v779 = vpack.c.b16 %v773, %v772
  %v780 = vpack.c.b16 %v775, %v774
  %v781 = vpack.c.b16 %v777, %v776
  %v787 = vsel %vm625, %v25, 0
  %789 = vmatpush.bf16.msra.mxu0 0
  %790 = vmatpush.bf16.msra.mxu0 0
  %791 = vmatpush.bf16.msra.mxu0 0
  %792 = vmatpush.bf16.msra.mxu0 0
  %793 = vmatpush.bf16.msra.mxu0 %v781
  %794 = vmatpush.bf16.msra.mxu0 %v780
  %795 = vmatpush.bf16.msra.mxu0 %v779
  %796 = vmatpush.bf16.msra.mxu0 %v778
  %797 = vmatmul.bf16.gmra.mxu0 %v787
  %v798 = vpop.f32.mrf.mxu0
  %v799 = vadd.f32 %v599, %v798
  %v800 = vpop.f32.mrf.mxu0
  %801 = vdwg.mxu0
  %v810 = vunpack.c.l.b16 %v125
  %v811 = vunpack.c.l.b16 %v126
  %v812 = vunpack.c.l.b16 %v127
  %v813 = vunpack.c.l.b16 %v128
  %v814 = vunpack.c.l.b16 %v129
  %v815 = vunpack.c.l.b16 %v130
  %v816 = vunpack.c.l.b16 %v131
  %v817 = vunpack.c.l.b16 %v132
  %v818 = vpack.c.b16 %v811, %v810
  %v819 = vpack.c.b16 %v813, %v812
  %v820 = vpack.c.b16 %v815, %v814
  %v821 = vpack.c.b16 %v817, %v816
  %v827 = vsel %vm625, %v26, 0
  %829 = vmatpush.bf16.msra.mxu0 0
  %830 = vmatpush.bf16.msra.mxu0 0
  %831 = vmatpush.bf16.msra.mxu0 0
  %832 = vmatpush.bf16.msra.mxu0 0
  %833 = vmatpush.bf16.msra.mxu0 %v821
  %834 = vmatpush.bf16.msra.mxu0 %v820
  %835 = vmatpush.bf16.msra.mxu0 %v819
  %836 = vmatpush.bf16.msra.mxu0 %v818
  %837 = vmatmul.bf16.gmra.mxu0 %v827
  %v838 = vpop.f32.mrf.mxu0
  %v839 = vadd.f32 %v599, %v838
  %v840 = vpop.f32.mrf.mxu0
  %841 = vdwg.mxu0
  %v850 = vunpack.c.l.b16 %v133
  %v851 = vunpack.c.l.b16 %v134
  %v852 = vunpack.c.l.b16 %v135
  %v853 = vunpack.c.l.b16 %v136
  %v854 = vunpack.c.l.b16 %v137
  %v855 = vunpack.c.l.b16 %v138
  %v856 = vunpack.c.l.b16 %v139
  %v857 = vunpack.c.l.b16 %v140
  %v858 = vpack.c.b16 %v851, %v850
  %v859 = vpack.c.b16 %v853, %v852
  %v860 = vpack.c.b16 %v855, %v854
  %v861 = vpack.c.b16 %v857, %v856
  %v867 = vsel %vm625, %v27, 0
  %869 = vmatpush.bf16.msra.mxu0 0
  %870 = vmatpush.bf16.msra.mxu0 0
  %871 = vmatpush.bf16.msra.mxu0 0
  %872 = vmatpush.bf16.msra.mxu0 0
  %873 = vmatpush.bf16.msra.mxu0 %v861
  %874 = vmatpush.bf16.msra.mxu0 %v860
  %875 = vmatpush.bf16.msra.mxu0 %v859
  %876 = vmatpush.bf16.msra.mxu0 %v858
  %877 = vmatmul.bf16.gmra.mxu0 %v867
  %v878 = vpop.f32.mrf.mxu0
  %v879 = vadd.f32 %v599, %v878
  %v880 = vpop.f32.mrf.mxu0
  %881 = vdwg.mxu0
  %v890 = vunpack.c.l.b16 %v141
  %v891 = vunpack.c.l.b16 %v142
  %v892 = vunpack.c.l.b16 %v143
  %v893 = vunpack.c.l.b16 %v144
  %v894 = vunpack.c.l.b16 %v145
  %v895 = vunpack.c.l.b16 %v146
  %v896 = vunpack.c.l.b16 %v147
  %v897 = vunpack.c.l.b16 %v148
  %v898 = vpack.c.b16 %v891, %v890
  %v899 = vpack.c.b16 %v893, %v892
  %v900 = vpack.c.b16 %v895, %v894
  %v901 = vpack.c.b16 %v897, %v896
  %v907 = vsel %vm625, %v28, 0
  %909 = vmatpush.bf16.msra.mxu0 0
  %910 = vmatpush.bf16.msra.mxu0 0
  %911 = vmatpush.bf16.msra.mxu0 0
  %912 = vmatpush.bf16.msra.mxu0 0
  %913 = vmatpush.bf16.msra.mxu0 %v901
  %914 = vmatpush.bf16.msra.mxu0 %v900
  %915 = vmatpush.bf16.msra.mxu0 %v899
  %916 = vmatpush.bf16.msra.mxu0 %v898
  %917 = vmatmul.bf16.gmra.mxu0 %v907
  %v918 = vpop.f32.mrf.mxu0
  %v919 = vadd.f32 %v599, %v918
  %v920 = vpop.f32.mrf.mxu0
  %921 = vdwg.mxu0
  %v930 = vunpack.c.l.b16 %v149
  %v931 = vunpack.c.l.b16 %v150
  %v932 = vunpack.c.l.b16 %v151
  %v933 = vunpack.c.l.b16 %v152
  %v934 = vunpack.c.l.b16 %v153
  %v935 = vunpack.c.l.b16 %v154
  %v936 = vunpack.c.l.b16 %v155
  %v937 = vunpack.c.l.b16 %v156
  %v938 = vpack.c.b16 %v931, %v930
  %v939 = vpack.c.b16 %v933, %v932
  %v940 = vpack.c.b16 %v935, %v934
  %v941 = vpack.c.b16 %v937, %v936
  %v947 = vsel %vm625, %v29, 0
  %949 = vmatpush.bf16.msra.mxu0 0
  %950 = vmatpush.bf16.msra.mxu0 0
  %951 = vmatpush.bf16.msra.mxu0 0
  %952 = vmatpush.bf16.msra.mxu0 0
  %953 = vmatpush.bf16.msra.mxu0 %v941
  %954 = vmatpush.bf16.msra.mxu0 %v940
  %955 = vmatpush.bf16.msra.mxu0 %v939
  %956 = vmatpush.bf16.msra.mxu0 %v938
  %957 = vmatmul.bf16.gmra.mxu0 %v947
  %v958 = vpop.f32.mrf.mxu0
  %v959 = vadd.f32 %v599, %v958
  %v960 = vpop.f32.mrf.mxu0
  %961 = vdwg.mxu0
  %v970 = vunpack.c.l.b16 %v157
  %v971 = vunpack.c.l.b16 %v158
  %v972 = vunpack.c.l.b16 %v159
  %v973 = vunpack.c.l.b16 %v160
  %v974 = vunpack.c.l.b16 %v161
  %v975 = vunpack.c.l.b16 %v162
  %v976 = vunpack.c.l.b16 %v163
  %v977 = vunpack.c.l.b16 %v164
  %v978 = vpack.c.b16 %v971, %v970
  %v979 = vpack.c.b16 %v973, %v972
  %v980 = vpack.c.b16 %v975, %v974
  %v981 = vpack.c.b16 %v977, %v976
  %v987 = vsel %vm625, %v30, 0
  %989 = vmatpush.bf16.msra.mxu0 0
  %990 = vmatpush.bf16.msra.mxu0 0
  %991 = vmatpush.bf16.msra.mxu0 0
  %992 = vmatpush.bf16.msra.mxu0 0
  %993 = vmatpush.bf16.msra.mxu0 %v981
  %994 = vmatpush.bf16.msra.mxu0 %v980
  %995 = vmatpush.bf16.msra.mxu0 %v979
  %996 = vmatpush.bf16.msra.mxu0 %v978
  %997 = vmatmul.bf16.gmra.mxu0 %v987
  %v998 = vpop.f32.mrf.mxu0
  %v999 = vadd.f32 %v599, %v998
  %v1000 = vpop.f32.mrf.mxu0
  %1001 = vdwg.mxu0
  %v1010 = vunpack.c.l.b16 %v165
  %v1011 = vunpack.c.l.b16 %v166
  %v1012 = vunpack.c.l.b16 %v167
  %v1013 = vunpack.c.l.b16 %v168
  %v1014 = vunpack.c.l.b16 %v169
  %v1015 = vunpack.c.l.b16 %v170
  %v1016 = vunpack.c.l.b16 %v171
  %v1017 = vunpack.c.l.b16 %v172
  %v1018 = vpack.c.b16 %v1011, %v1010
  %v1019 = vpack.c.b16 %v1013, %v1012
  %v1020 = vpack.c.b16 %v1015, %v1014
  %v1021 = vpack.c.b16 %v1017, %v1016
  %v1027 = vsel %vm625, %v31, 0
  %1029 = vmatpush.bf16.msra.mxu0 0
  %1030 = vmatpush.bf16.msra.mxu0 0
  %1031 = vmatpush.bf16.msra.mxu0 0
  %1032 = vmatpush.bf16.msra.mxu0 0
  %1033 = vmatpush.bf16.msra.mxu0 %v1021
  %1034 = vmatpush.bf16.msra.mxu0 %v1020
  %1035 = vmatpush.bf16.msra.mxu0 %v1019
  %1036 = vmatpush.bf16.msra.mxu0 %v1018
  %1037 = vmatmul.bf16.gmra.mxu0 %v1027
  %v1038 = vpop.f32.mrf.mxu0
  %v1039 = vadd.f32 %v599, %v1038
  %v1040 = vpop.f32.mrf.mxu0
  %1041 = vdwg.mxu0
  %v1050 = vunpack.c.l.b16 %v173
  %v1051 = vunpack.c.l.b16 %v174
  %v1052 = vunpack.c.l.b16 %v175
  %v1053 = vunpack.c.l.b16 %v176
  %v1054 = vunpack.c.l.b16 %v177
  %v1055 = vunpack.c.l.b16 %v178
  %v1056 = vunpack.c.l.b16 %v179
  %v1057 = vunpack.c.l.b16 %v180
  %v1058 = vpack.c.b16 %v1051, %v1050
  %v1059 = vpack.c.b16 %v1053, %v1052
  %v1060 = vpack.c.b16 %v1055, %v1054
  %v1061 = vpack.c.b16 %v1057, %v1056
  %v1067 = vsel %vm625, %v32, 0
  %1069 = vmatpush.bf16.msra.mxu0 0
  %1070 = vmatpush.bf16.msra.mxu0 0
  %1071 = vmatpush.bf16.msra.mxu0 0
  %1072 = vmatpush.bf16.msra.mxu0 0
  %1073 = vmatpush.bf16.msra.mxu0 %v1061
  %1074 = vmatpush.bf16.msra.mxu0 %v1060
  %1075 = vmatpush.bf16.msra.mxu0 %v1059
  %1076 = vmatpush.bf16.msra.mxu0 %v1058
  %1077 = vmatmul.bf16.gmra.mxu0 %v1067
  %v1078 = vpop.f32.mrf.mxu0
  %v1079 = vadd.f32 %v599, %v1078
  %v1080 = vpop.f32.mrf.mxu0
  %1081 = vdwg.mxu0
  %v1090 = vunpack.c.l.b16 %v181
  %v1091 = vunpack.c.l.b16 %v182
  %v1092 = vunpack.c.l.b16 %v183
  %v1093 = vunpack.c.l.b16 %v184
  %v1094 = vunpack.c.l.b16 %v185
  %v1095 = vunpack.c.l.b16 %v186
  %v1096 = vunpack.c.l.b16 %v187
  %v1097 = vunpack.c.l.b16 %v188
  %v1098 = vpack.c.b16 %v1091, %v1090
  %v1099 = vpack.c.b16 %v1093, %v1092
  %v1100 = vpack.c.b16 %v1095, %v1094
  %v1101 = vpack.c.b16 %v1097, %v1096
  %v1107 = vsel %vm625, %v33, 0
  %1109 = vmatpush.bf16.msra.mxu0 0
  %1110 = vmatpush.bf16.msra.mxu0 0
  %1111 = vmatpush.bf16.msra.mxu0 0
  %1112 = vmatpush.bf16.msra.mxu0 0
  %1113 = vmatpush.bf16.msra.mxu0 %v1101
  %1114 = vmatpush.bf16.msra.mxu0 %v1100
  %1115 = vmatpush.bf16.msra.mxu0 %v1099
  %1116 = vmatpush.bf16.msra.mxu0 %v1098
  %1117 = vmatmul.bf16.gmra.mxu0 %v1107
  %v1118 = vpop.f32.mrf.mxu0
  %v1119 = vadd.f32 %v599, %v1118
  %v1120 = vpop.f32.mrf.mxu0
  %1121 = vdwg.mxu0
  %v1130 = vunpack.c.l.b16 %v189
  %v1131 = vunpack.c.l.b16 %v190
  %v1132 = vunpack.c.l.b16 %v191
  %v1133 = vunpack.c.l.b16 %v192
  %v1134 = vunpack.c.l.b16 %v193
  %v1135 = vunpack.c.l.b16 %v194
  %v1136 = vunpack.c.l.b16 %v195
  %v1137 = vunpack.c.l.b16 %v196
  %v1138 = vpack.c.b16 %v1131, %v1130
  %v1139 = vpack.c.b16 %v1133, %v1132
  %v1140 = vpack.c.b16 %v1135, %v1134
  %v1141 = vpack.c.b16 %v1137, %v1136
  %v1147 = vsel %vm625, %v34, 0
  %1149 = vmatpush.bf16.msra.mxu0 0
  %1150 = vmatpush.bf16.msra.mxu0 0
  %1151 = vmatpush.bf16.msra.mxu0 0
  %1152 = vmatpush.bf16.msra.mxu0 0
  %1153 = vmatpush.bf16.msra.mxu0 %v1141
  %1154 = vmatpush.bf16.msra.mxu0 %v1140
  %1155 = vmatpush.bf16.msra.mxu0 %v1139
  %1156 = vmatpush.bf16.msra.mxu0 %v1138
  %1157 = vmatmul.bf16.gmra.mxu0 %v1147
  %v1158 = vpop.f32.mrf.mxu0
  %v1159 = vadd.f32 %v599, %v1158
  %v1160 = vpop.f32.mrf.mxu0
  %1161 = vdwg.mxu0
  %v1170 = vunpack.c.l.b16 %v197
  %v1171 = vunpack.c.l.b16 %v198
  %v1172 = vunpack.c.l.b16 %v199
  %v1173 = vunpack.c.l.b16 %v200
  %v1174 = vunpack.c.l.b16 %v201
  %v1175 = vunpack.c.l.b16 %v202
  %v1176 = vunpack.c.l.b16 %v203
  %v1177 = vunpack.c.l.b16 %v204
  %v1178 = vpack.c.b16 %v1171, %v1170
  %v1179 = vpack.c.b16 %v1173, %v1172
  %v1180 = vpack.c.b16 %v1175, %v1174
  %v1181 = vpack.c.b16 %v1177, %v1176
  %v1187 = vsel %vm625, %v35, 0
  %1189 = vmatpush.bf16.msra.mxu0 0
  %1190 = vmatpush.bf16.msra.mxu0 0
  %1191 = vmatpush.bf16.msra.mxu0 0
  %1192 = vmatpush.bf16.msra.mxu0 0
  %1193 = vmatpush.bf16.msra.mxu0 %v1181
  %1194 = vmatpush.bf16.msra.mxu0 %v1180
  %1195 = vmatpush.bf16.msra.mxu0 %v1179
  %1196 = vmatpush.bf16.msra.mxu0 %v1178
  %1197 = vmatmul.bf16.gmra.mxu0 %v1187
  %v1198 = vpop.f32.mrf.mxu0
  %v1199 = vadd.f32 %v599, %v1198
  %v1200 = vpop.f32.mrf.mxu0
  %1201 = vdwg.mxu0
  %v1210 = vunpack.c.l.b16 %v205
  %v1211 = vunpack.c.l.b16 %v206
  %v1212 = vunpack.c.l.b16 %v207
  %v1213 = vunpack.c.l.b16 %v208
  %v1214 = vunpack.c.l.b16 %v209
  %v1215 = vunpack.c.l.b16 %v210
  %v1216 = vunpack.c.l.b16 %v211
  %v1217 = vunpack.c.l.b16 %v212
  %v1218 = vpack.c.b16 %v1211, %v1210
  %v1219 = vpack.c.b16 %v1213, %v1212
  %v1220 = vpack.c.b16 %v1215, %v1214
  %v1221 = vpack.c.b16 %v1217, %v1216
  %v1227 = vsel %vm625, %v36, 0
  %1229 = vmatpush.bf16.msra.mxu0 0
  %1230 = vmatpush.bf16.msra.mxu0 0
  %1231 = vmatpush.bf16.msra.mxu0 0
  %1232 = vmatpush.bf16.msra.mxu0 0
  %1233 = vmatpush.bf16.msra.mxu0 %v1221
  %1234 = vmatpush.bf16.msra.mxu0 %v1220
  %1235 = vmatpush.bf16.msra.mxu0 %v1219
  %1236 = vmatpush.bf16.msra.mxu0 %v1218
  %1237 = vmatmul.bf16.gmra.mxu0 %v1227
  %v1238 = vpop.f32.mrf.mxu0
  %v1239 = vadd.f32 %v599, %v1238
  %v1240 = vpop.f32.mrf.mxu0
  %1241 = vdwg.mxu0
  %v1250 = vunpack.c.l.b16 %v213
  %v1251 = vunpack.c.l.b16 %v214
  %v1252 = vunpack.c.l.b16 %v215
  %v1253 = vunpack.c.l.b16 %v216
  %v1254 = vunpack.c.l.b16 %v217
  %v1255 = vunpack.c.l.b16 %v218
  %v1256 = vunpack.c.l.b16 %v219
  %v1257 = vunpack.c.l.b16 %v220
  %v1258 = vpack.c.b16 %v1251, %v1250
  %v1259 = vpack.c.b16 %v1253, %v1252
  %v1260 = vpack.c.b16 %v1255, %v1254
  %v1261 = vpack.c.b16 %v1257, %v1256
  %v1267 = vsel %vm625, %v37, 0
  %1269 = vmatpush.bf16.msra.mxu0 0
  %1270 = vmatpush.bf16.msra.mxu0 0
  %1271 = vmatpush.bf16.msra.mxu0 0
  %1272 = vmatpush.bf16.msra.mxu0 0
  %1273 = vmatpush.bf16.msra.mxu0 %v1261
  %1274 = vmatpush.bf16.msra.mxu0 %v1260
  %1275 = vmatpush.bf16.msra.mxu0 %v1259
  %1276 = vmatpush.bf16.msra.mxu0 %v1258
  %1277 = vmatmul.bf16.gmra.mxu0 %v1267
  %v1278 = vpop.f32.mrf.mxu0
  %v1279 = vadd.f32 %v599, %v1278
  %v1280 = vpop.f32.mrf.mxu0
  %1281 = vdwg.mxu0
  %v1290 = vunpack.c.l.b16 %v221
  %v1291 = vunpack.c.l.b16 %v222
  %v1292 = vunpack.c.l.b16 %v223
  %v1293 = vunpack.c.l.b16 %v224
  %v1294 = vunpack.c.l.b16 %v225
  %v1295 = vunpack.c.l.b16 %v226
  %v1296 = vunpack.c.l.b16 %v227
  %v1297 = vunpack.c.l.b16 %v228
  %v1298 = vpack.c.b16 %v1291, %v1290
  %v1299 = vpack.c.b16 %v1293, %v1292
  %v1300 = vpack.c.b16 %v1295, %v1294
  %v1301 = vpack.c.b16 %v1297, %v1296
  %v1307 = vsel %vm625, %v38, 0
  %1309 = vmatpush.bf16.msra.mxu0 0
  %1310 = vmatpush.bf16.msra.mxu0 0
  %1311 = vmatpush.bf16.msra.mxu0 0
  %1312 = vmatpush.bf16.msra.mxu0 0
  %1313 = vmatpush.bf16.msra.mxu0 %v1301
  %1314 = vmatpush.bf16.msra.mxu0 %v1300
  %1315 = vmatpush.bf16.msra.mxu0 %v1299
  %1316 = vmatpush.bf16.msra.mxu0 %v1298
  %1317 = vmatmul.bf16.gmra.mxu0 %v1307
  %v1318 = vpop.f32.mrf.mxu0
  %v1319 = vadd.f32 %v599, %v1318
  %v1320 = vpop.f32.mrf.mxu0
  %1321 = vdwg.mxu0
  %v1330 = vunpack.c.l.b16 %v229
  %v1331 = vunpack.c.l.b16 %v230
  %v1332 = vunpack.c.l.b16 %v231
  %v1333 = vunpack.c.l.b16 %v232
  %v1334 = vunpack.c.l.b16 %v233
  %v1335 = vunpack.c.l.b16 %v234
  %v1336 = vunpack.c.l.b16 %v235
  %v1337 = vunpack.c.l.b16 %v236
  %v1338 = vpack.c.b16 %v1331, %v1330
  %v1339 = vpack.c.b16 %v1333, %v1332
  %v1340 = vpack.c.b16 %v1335, %v1334
  %v1341 = vpack.c.b16 %v1337, %v1336
  %v1347 = vsel %vm625, %v39, 0
  %1349 = vmatpush.bf16.msra.mxu0 0
  %1350 = vmatpush.bf16.msra.mxu0 0
  %1351 = vmatpush.bf16.msra.mxu0 0
  %1352 = vmatpush.bf16.msra.mxu0 0
  %1353 = vmatpush.bf16.msra.mxu0 %v1341
  %1354 = vmatpush.bf16.msra.mxu0 %v1340
  %1355 = vmatpush.bf16.msra.mxu0 %v1339
  %1356 = vmatpush.bf16.msra.mxu0 %v1338
  %1357 = vmatmul.bf16.gmra.mxu0 %v1347
  %v1358 = vpop.f32.mrf.mxu0
  %v1359 = vadd.f32 %v599, %v1358
  %v1360 = vpop.f32.mrf.mxu0
  %1361 = vdwg.mxu0
  %v1370 = vunpack.c.l.b16 %v237
  %v1371 = vunpack.c.l.b16 %v238
  %v1372 = vunpack.c.l.b16 %v239
  %v1373 = vunpack.c.l.b16 %v240
  %v1374 = vunpack.c.l.b16 %v241
  %v1375 = vunpack.c.l.b16 %v242
  %v1376 = vunpack.c.l.b16 %v243
  %v1377 = vunpack.c.l.b16 %v244
  %v1378 = vpack.c.b16 %v1371, %v1370
  %v1379 = vpack.c.b16 %v1373, %v1372
  %v1380 = vpack.c.b16 %v1375, %v1374
  %v1381 = vpack.c.b16 %v1377, %v1376
  %v1387 = vsel %vm625, %v40, 0
  %1389 = vmatpush.bf16.msra.mxu0 0
  %1390 = vmatpush.bf16.msra.mxu0 0
  %1391 = vmatpush.bf16.msra.mxu0 0
  %1392 = vmatpush.bf16.msra.mxu0 0
  %1393 = vmatpush.bf16.msra.mxu0 %v1381
  %1394 = vmatpush.bf16.msra.mxu0 %v1380
  %1395 = vmatpush.bf16.msra.mxu0 %v1379
  %1396 = vmatpush.bf16.msra.mxu0 %v1378
  %1397 = vmatmul.bf16.gmra.mxu0 %v1387
  %v1398 = vpop.f32.mrf.mxu0
  %v1399 = vadd.f32 %v599, %v1398
  %v1400 = vpop.f32.mrf.mxu0
  %1401 = vdwg.mxu0
  %v1410 = vunpack.c.l.b16 %v245
  %v1411 = vunpack.c.l.b16 %v246
  %v1412 = vunpack.c.l.b16 %v247
  %v1413 = vunpack.c.l.b16 %v248
  %v1414 = vunpack.c.l.b16 %v249
  %v1415 = vunpack.c.l.b16 %v250
  %v1416 = vunpack.c.l.b16 %v251
  %v1417 = vunpack.c.l.b16 %v252
  %v1418 = vpack.c.b16 %v1411, %v1410
  %v1419 = vpack.c.b16 %v1413, %v1412
  %v1420 = vpack.c.b16 %v1415, %v1414
  %v1421 = vpack.c.b16 %v1417, %v1416
  %v1427 = vsel %vm625, %v41, 0
  %1429 = vmatpush.bf16.msra.mxu0 0
  %1430 = vmatpush.bf16.msra.mxu0 0
  %1431 = vmatpush.bf16.msra.mxu0 0
  %1432 = vmatpush.bf16.msra.mxu0 0
  %1433 = vmatpush.bf16.msra.mxu0 %v1421
  %1434 = vmatpush.bf16.msra.mxu0 %v1420
  %1435 = vmatpush.bf16.msra.mxu0 %v1419
  %1436 = vmatpush.bf16.msra.mxu0 %v1418
  %1437 = vmatmul.bf16.gmra.mxu0 %v1427
  %v1438 = vpop.f32.mrf.mxu0
  %v1439 = vadd.f32 %v599, %v1438
  %v1440 = vpop.f32.mrf.mxu0
  %1441 = vdwg.mxu0
  %v1450 = vunpack.c.l.b16 %v253
  %v1451 = vunpack.c.l.b16 %v254
  %v1452 = vunpack.c.l.b16 %v255
  %v1453 = vunpack.c.l.b16 %v256
  %v1454 = vunpack.c.l.b16 %v257
  %v1455 = vunpack.c.l.b16 %v258
  %v1456 = vunpack.c.l.b16 %v259
  %v1457 = vunpack.c.l.b16 %v260
  %v1458 = vpack.c.b16 %v1451, %v1450
  %v1459 = vpack.c.b16 %v1453, %v1452
  %v1460 = vpack.c.b16 %v1455, %v1454
  %v1461 = vpack.c.b16 %v1457, %v1456
  %v1467 = vsel %vm625, %v42, 0
  %1469 = vmatpush.bf16.msra.mxu0 0
  %1470 = vmatpush.bf16.msra.mxu0 0
  %1471 = vmatpush.bf16.msra.mxu0 0
  %1472 = vmatpush.bf16.msra.mxu0 0
  %1473 = vmatpush.bf16.msra.mxu0 %v1461
  %1474 = vmatpush.bf16.msra.mxu0 %v1460
  %1475 = vmatpush.bf16.msra.mxu0 %v1459
  %1476 = vmatpush.bf16.msra.mxu0 %v1458
  %1477 = vmatmul.bf16.gmra.mxu0 %v1467
  %v1478 = vpop.f32.mrf.mxu0
  %v1479 = vadd.f32 %v599, %v1478
  %v1480 = vpop.f32.mrf.mxu0
  %1481 = vdwg.mxu0
  %v1490 = vunpack.c.l.b16 %v261
  %v1491 = vunpack.c.l.b16 %v262
  %v1492 = vunpack.c.l.b16 %v263
  %v1493 = vunpack.c.l.b16 %v264
  %v1494 = vunpack.c.l.b16 %v265
  %v1495 = vunpack.c.l.b16 %v266
  %v1496 = vunpack.c.l.b16 %v267
  %v1497 = vunpack.c.l.b16 %v268
  %v1498 = vpack.c.b16 %v1491, %v1490
  %v1499 = vpack.c.b16 %v1493, %v1492
  %v1500 = vpack.c.b16 %v1495, %v1494
  %v1501 = vpack.c.b16 %v1497, %v1496
  %v1507 = vsel %vm625, %v43, 0
  %1509 = vmatpush.bf16.msra.mxu0 0
  %1510 = vmatpush.bf16.msra.mxu0 0
  %1511 = vmatpush.bf16.msra.mxu0 0
  %1512 = vmatpush.bf16.msra.mxu0 0
  %1513 = vmatpush.bf16.msra.mxu0 %v1501
  %1514 = vmatpush.bf16.msra.mxu0 %v1500
  %1515 = vmatpush.bf16.msra.mxu0 %v1499
  %1516 = vmatpush.bf16.msra.mxu0 %v1498
  %1517 = vmatmul.bf16.gmra.mxu0 %v1507
  %v1518 = vpop.f32.mrf.mxu0
  %v1519 = vadd.f32 %v599, %v1518
  %v1520 = vpop.f32.mrf.mxu0
  %1521 = vdwg.mxu0
  %v1530 = vunpack.c.l.b16 %v269
  %v1531 = vunpack.c.l.b16 %v270
  %v1532 = vunpack.c.l.b16 %v271
  %v1533 = vunpack.c.l.b16 %v272
  %v1534 = vunpack.c.l.b16 %v273
  %v1535 = vunpack.c.l.b16 %v274
  %v1536 = vunpack.c.l.b16 %v275
  %v1537 = vunpack.c.l.b16 %v276
  %v1538 = vpack.c.b16 %v1531, %v1530
  %v1539 = vpack.c.b16 %v1533, %v1532
  %v1540 = vpack.c.b16 %v1535, %v1534
  %v1541 = vpack.c.b16 %v1537, %v1536
  %v1547 = vsel %vm625, %v44, 0
  %1549 = vmatpush.bf16.msra.mxu0 0
  %1550 = vmatpush.bf16.msra.mxu0 0
  %1551 = vmatpush.bf16.msra.mxu0 0
  %1552 = vmatpush.bf16.msra.mxu0 0
  %1553 = vmatpush.bf16.msra.mxu0 %v1541
  %1554 = vmatpush.bf16.msra.mxu0 %v1540
  %1555 = vmatpush.bf16.msra.mxu0 %v1539
  %1556 = vmatpush.bf16.msra.mxu0 %v1538
  %1557 = vmatmul.bf16.gmra.mxu0 %v1547
  %v1558 = vpop.f32.mrf.mxu0
  %v1559 = vadd.f32 %v599, %v1558
  %v1560 = vpop.f32.mrf.mxu0
  %1561 = vdwg.mxu0
  %v1570 = vunpack.c.l.b16 %v277
  %v1571 = vunpack.c.l.b16 %v278
  %v1572 = vunpack.c.l.b16 %v279
  %v1573 = vunpack.c.l.b16 %v280
  %v1574 = vunpack.c.l.b16 %v281
  %v1575 = vunpack.c.l.b16 %v282
  %v1576 = vunpack.c.l.b16 %v283
  %v1577 = vunpack.c.l.b16 %v284
  %v1578 = vpack.c.b16 %v1571, %v1570
  %v1579 = vpack.c.b16 %v1573, %v1572
  %v1580 = vpack.c.b16 %v1575, %v1574
  %v1581 = vpack.c.b16 %v1577, %v1576
  %v1587 = vsel %vm625, %v45, 0
  %1589 = vmatpush.bf16.msra.mxu0 0
  %1590 = vmatpush.bf16.msra.mxu0 0
  %1591 = vmatpush.bf16.msra.mxu0 0
  %1592 = vmatpush.bf16.msra.mxu0 0
  %1593 = vmatpush.bf16.msra.mxu0 %v1581
  %1594 = vmatpush.bf16.msra.mxu0 %v1580
  %1595 = vmatpush.bf16.msra.mxu0 %v1579
  %1596 = vmatpush.bf16.msra.mxu0 %v1578
  %1597 = vmatmul.bf16.gmra.mxu0 %v1587
  %v1598 = vpop.f32.mrf.mxu0
  %v1599 = vadd.f32 %v599, %v1598
  %v1600 = vpop.f32.mrf.mxu0
  %1601 = vdwg.mxu0
  %v1610 = vunpack.c.l.b16 %v285
  %v1611 = vunpack.c.l.b16 %v286
  %v1612 = vunpack.c.l.b16 %v287
  %v1613 = vunpack.c.l.b16 %v288
  %v1614 = vunpack.c.l.b16 %v289
  %v1615 = vunpack.c.l.b16 %v290
  %v1616 = vunpack.c.l.b16 %v291
  %v1617 = vunpack.c.l.b16 %v292
  %v1618 = vpack.c.b16 %v1611, %v1610
  %v1619 = vpack.c.b16 %v1613, %v1612
  %v1620 = vpack.c.b16 %v1615, %v1614
  %v1621 = vpack.c.b16 %v1617, %v1616
  %v1627 = vsel %vm625, %v46, 0
  %1629 = vmatpush.bf16.msra.mxu0 0
  %1630 = vmatpush.bf16.msra.mxu0 0
  %1631 = vmatpush.bf16.msra.mxu0 0
  %1632 = vmatpush.bf16.msra.mxu0 0
  %1633 = vmatpush.bf16.msra.mxu0 %v1621
  %1634 = vmatpush.bf16.msra.mxu0 %v1620
  %1635 = vmatpush.bf16.msra.mxu0 %v1619
  %1636 = vmatpush.bf16.msra.mxu0 %v1618
  %1637 = vmatmul.bf16.gmra.mxu0 %v1627
  %v1638 = vpop.f32.mrf.mxu0
  %v1639 = vadd.f32 %v599, %v1638
  %v1640 = vpop.f32.mrf.mxu0
  %1641 = vdwg.mxu0
  %v1650 = vunpack.c.l.b16 %v293
  %v1651 = vunpack.c.l.b16 %v294
  %v1652 = vunpack.c.l.b16 %v295
  %v1653 = vunpack.c.l.b16 %v296
  %v1654 = vunpack.c.l.b16 %v297
  %v1655 = vunpack.c.l.b16 %v298
  %v1656 = vunpack.c.l.b16 %v299
  %v1657 = vunpack.c.l.b16 %v300
  %v1658 = vpack.c.b16 %v1651, %v1650
  %v1659 = vpack.c.b16 %v1653, %v1652
  %v1660 = vpack.c.b16 %v1655, %v1654
  %v1661 = vpack.c.b16 %v1657, %v1656
  %v1667 = vsel %vm625, %v47, 0
  %1669 = vmatpush.bf16.msra.mxu0 0
  %1670 = vmatpush.bf16.msra.mxu0 0
  %1671 = vmatpush.bf16.msra.mxu0 0
  %1672 = vmatpush.bf16.msra.mxu0 0
  %1673 = vmatpush.bf16.msra.mxu0 %v1661
  %1674 = vmatpush.bf16.msra.mxu0 %v1660
  %1675 = vmatpush.bf16.msra.mxu0 %v1659
  %1676 = vmatpush.bf16.msra.mxu0 %v1658
  %1677 = vmatmul.bf16.gmra.mxu0 %v1667
  %v1678 = vpop.f32.mrf.mxu0
  %v1679 = vadd.f32 %v599, %v1678
  %v1680 = vpop.f32.mrf.mxu0
  %1681 = vdwg.mxu0
  %v1690 = vunpack.c.l.b16 %v301
  %v1691 = vunpack.c.l.b16 %v302
  %v1692 = vunpack.c.l.b16 %v303
  %v1693 = vunpack.c.l.b16 %v304
  %v1694 = vunpack.c.l.b16 %v305
  %v1695 = vunpack.c.l.b16 %v306
  %v1696 = vunpack.c.l.b16 %v307
  %v1697 = vunpack.c.l.b16 %v308
  %v1698 = vpack.c.b16 %v1691, %v1690
  %v1699 = vpack.c.b16 %v1693, %v1692
  %v1700 = vpack.c.b16 %v1695, %v1694
  %v1701 = vpack.c.b16 %v1697, %v1696
  %v1707 = vsel %vm625, %v48, 0
  %1709 = vmatpush.bf16.msra.mxu0 0
  %1710 = vmatpush.bf16.msra.mxu0 0
  %1711 = vmatpush.bf16.msra.mxu0 0
  %1712 = vmatpush.bf16.msra.mxu0 0
  %1713 = vmatpush.bf16.msra.mxu0 %v1701
  %1714 = vmatpush.bf16.msra.mxu0 %v1700
  %1715 = vmatpush.bf16.msra.mxu0 %v1699
  %1716 = vmatpush.bf16.msra.mxu0 %v1698
  %1717 = vmatmul.bf16.gmra.mxu0 %v1707
  %v1718 = vpop.f32.mrf.mxu0
  %v1719 = vadd.f32 %v599, %v1718
  %v1720 = vpop.f32.mrf.mxu0
  %1721 = vdwg.mxu0
  %v1730 = vunpack.c.l.b16 %v309
  %v1731 = vunpack.c.l.b16 %v310
  %v1732 = vunpack.c.l.b16 %v311
  %v1733 = vunpack.c.l.b16 %v312
  %v1734 = vunpack.c.l.b16 %v313
  %v1735 = vunpack.c.l.b16 %v314
  %v1736 = vunpack.c.l.b16 %v315
  %v1737 = vunpack.c.l.b16 %v316
  %v1738 = vpack.c.b16 %v1731, %v1730
  %v1739 = vpack.c.b16 %v1733, %v1732
  %v1740 = vpack.c.b16 %v1735, %v1734
  %v1741 = vpack.c.b16 %v1737, %v1736
  %v1747 = vsel %vm625, %v49, 0
  %1749 = vmatpush.bf16.msra.mxu0 0
  %1750 = vmatpush.bf16.msra.mxu0 0
  %1751 = vmatpush.bf16.msra.mxu0 0
  %1752 = vmatpush.bf16.msra.mxu0 0
  %1753 = vmatpush.bf16.msra.mxu0 %v1741
  %1754 = vmatpush.bf16.msra.mxu0 %v1740
  %1755 = vmatpush.bf16.msra.mxu0 %v1739
  %1756 = vmatpush.bf16.msra.mxu0 %v1738
  %1757 = vmatmul.bf16.gmra.mxu0 %v1747
  %v1758 = vpop.f32.mrf.mxu0
  %v1759 = vadd.f32 %v599, %v1758
  %v1760 = vpop.f32.mrf.mxu0
  %1761 = vdwg.mxu0
  %v1770 = vunpack.c.l.b16 %v317
  %v1771 = vunpack.c.l.b16 %v318
  %v1772 = vunpack.c.l.b16 %v319
  %v1773 = vunpack.c.l.b16 %v320
  %v1774 = vunpack.c.l.b16 %v321
  %v1775 = vunpack.c.l.b16 %v322
  %v1776 = vunpack.c.l.b16 %v323
  %v1777 = vunpack.c.l.b16 %v324
  %v1778 = vpack.c.b16 %v1771, %v1770
  %v1779 = vpack.c.b16 %v1773, %v1772
  %v1780 = vpack.c.b16 %v1775, %v1774
  %v1781 = vpack.c.b16 %v1777, %v1776
  %v1787 = vsel %vm625, %v50, 0
  %1789 = vmatpush.bf16.msra.mxu0 0
  %1790 = vmatpush.bf16.msra.mxu0 0
  %1791 = vmatpush.bf16.msra.mxu0 0
  %1792 = vmatpush.bf16.msra.mxu0 0
  %1793 = vmatpush.bf16.msra.mxu0 %v1781
  %1794 = vmatpush.bf16.msra.mxu0 %v1780
  %1795 = vmatpush.bf16.msra.mxu0 %v1779
  %1796 = vmatpush.bf16.msra.mxu0 %v1778
  %1797 = vmatmul.bf16.gmra.mxu0 %v1787
  %v1798 = vpop.f32.mrf.mxu0
  %v1799 = vadd.f32 %v599, %v1798
  %v1800 = vpop.f32.mrf.mxu0
  %1801 = vdwg.mxu0
  %v1810 = vunpack.c.l.b16 %v325
  %v1811 = vunpack.c.l.b16 %v326
  %v1812 = vunpack.c.l.b16 %v327
  %v1813 = vunpack.c.l.b16 %v328
  %v1814 = vunpack.c.l.b16 %v329
  %v1815 = vunpack.c.l.b16 %v330
  %v1816 = vunpack.c.l.b16 %v331
  %v1817 = vunpack.c.l.b16 %v332
  %v1818 = vpack.c.b16 %v1811, %v1810
  %v1819 = vpack.c.b16 %v1813, %v1812
  %v1820 = vpack.c.b16 %v1815, %v1814
  %v1821 = vpack.c.b16 %v1817, %v1816
  %v1827 = vsel %vm625, %v51, 0
  %1829 = vmatpush.bf16.msra.mxu0 0
  %1830 = vmatpush.bf16.msra.mxu0 0
  %1831 = vmatpush.bf16.msra.mxu0 0
  %1832 = vmatpush.bf16.msra.mxu0 0
  %1833 = vmatpush.bf16.msra.mxu0 %v1821
  %1834 = vmatpush.bf16.msra.mxu0 %v1820
  %1835 = vmatpush.bf16.msra.mxu0 %v1819
  %1836 = vmatpush.bf16.msra.mxu0 %v1818
  %1837 = vmatmul.bf16.gmra.mxu0 %v1827
  %v1838 = vpop.f32.mrf.mxu0
  %v1839 = vadd.f32 %v599, %v1838
  %v1840 = vpop.f32.mrf.mxu0
  %1841 = vdwg.mxu0
  %v1850 = vunpack.c.l.b16 %v333
  %v1851 = vunpack.c.l.b16 %v334
  %v1852 = vunpack.c.l.b16 %v335
  %v1853 = vunpack.c.l.b16 %v336
  %v1854 = vunpack.c.l.b16 %v337
  %v1855 = vunpack.c.l.b16 %v338
  %v1856 = vunpack.c.l.b16 %v339
  %v1857 = vunpack.c.l.b16 %v340
  %v1858 = vpack.c.b16 %v1851, %v1850
  %v1859 = vpack.c.b16 %v1853, %v1852
  %v1860 = vpack.c.b16 %v1855, %v1854
  %v1861 = vpack.c.b16 %v1857, %v1856
  %v1867 = vsel %vm625, %v52, 0
  %1869 = vmatpush.bf16.msra.mxu0 0
  %1870 = vmatpush.bf16.msra.mxu0 0
  %1871 = vmatpush.bf16.msra.mxu0 0
  %1872 = vmatpush.bf16.msra.mxu0 0
  %1873 = vmatpush.bf16.msra.mxu0 %v1861
  %1874 = vmatpush.bf16.msra.mxu0 %v1860
  %1875 = vmatpush.bf16.msra.mxu0 %v1859
  %1876 = vmatpush.bf16.msra.mxu0 %v1858
  %1877 = vmatmul.bf16.gmra.mxu0 %v1867
  %v1878 = vpop.f32.mrf.mxu0
  %v1879 = vadd.f32 %v599, %v1878
  %v1880 = vpop.f32.mrf.mxu0
  %1881 = vdwg.mxu0
  %v1890 = vunpack.c.l.b16 %v341
  %v1891 = vunpack.c.l.b16 %v342
  %v1892 = vunpack.c.l.b16 %v343
  %v1893 = vunpack.c.l.b16 %v344
  %v1894 = vunpack.c.l.b16 %v345
  %v1895 = vunpack.c.l.b16 %v346
  %v1896 = vunpack.c.l.b16 %v347
  %v1897 = vunpack.c.l.b16 %v348
  %v1898 = vpack.c.b16 %v1891, %v1890
  %v1899 = vpack.c.b16 %v1893, %v1892
  %v1900 = vpack.c.b16 %v1895, %v1894
  %v1901 = vpack.c.b16 %v1897, %v1896
  %v1907 = vsel %vm625, %v53, 0
  %1909 = vmatpush.bf16.msra.mxu0 0
  %1910 = vmatpush.bf16.msra.mxu0 0
  %1911 = vmatpush.bf16.msra.mxu0 0
  %1912 = vmatpush.bf16.msra.mxu0 0
  %1913 = vmatpush.bf16.msra.mxu0 %v1901
  %1914 = vmatpush.bf16.msra.mxu0 %v1900
  %1915 = vmatpush.bf16.msra.mxu0 %v1899
  %1916 = vmatpush.bf16.msra.mxu0 %v1898
  %1917 = vmatmul.bf16.gmra.mxu0 %v1907
  %v1918 = vpop.f32.mrf.mxu0
  %v1919 = vadd.f32 %v599, %v1918
  %v1920 = vpop.f32.mrf.mxu0
  %1921 = vdwg.mxu0
  %v1930 = vunpack.c.l.b16 %v349
  %v1931 = vunpack.c.l.b16 %v350
  %v1932 = vunpack.c.l.b16 %v351
  %v1933 = vunpack.c.l.b16 %v352
  %v1934 = vunpack.c.l.b16 %v353
  %v1935 = vunpack.c.l.b16 %v354
  %v1936 = vunpack.c.l.b16 %v355
  %v1937 = vunpack.c.l.b16 %v356
  %v1938 = vpack.c.b16 %v1931, %v1930
  %v1939 = vpack.c.b16 %v1933, %v1932
  %v1940 = vpack.c.b16 %v1935, %v1934
  %v1941 = vpack.c.b16 %v1937, %v1936
  %v1947 = vsel %vm625, %v54, 0
  %1949 = vmatpush.bf16.msra.mxu0 0
  %1950 = vmatpush.bf16.msra.mxu0 0
  %1951 = vmatpush.bf16.msra.mxu0 0
  %1952 = vmatpush.bf16.msra.mxu0 0
  %1953 = vmatpush.bf16.msra.mxu0 %v1941
  %1954 = vmatpush.bf16.msra.mxu0 %v1940
  %1955 = vmatpush.bf16.msra.mxu0 %v1939
  %1956 = vmatpush.bf16.msra.mxu0 %v1938
  %1957 = vmatmul.bf16.gmra.mxu0 %v1947
  %v1958 = vpop.f32.mrf.mxu0
  %v1959 = vadd.f32 %v599, %v1958
  %v1960 = vpop.f32.mrf.mxu0
  %1961 = vdwg.mxu0
  %v1970 = vunpack.c.l.b16 %v357
  %v1971 = vunpack.c.l.b16 %v358
  %v1972 = vunpack.c.l.b16 %v359
  %v1973 = vunpack.c.l.b16 %v360
  %v1974 = vunpack.c.l.b16 %v361
  %v1975 = vunpack.c.l.b16 %v362
  %v1976 = vunpack.c.l.b16 %v363
  %v1977 = vunpack.c.l.b16 %v364
  %v1978 = vpack.c.b16 %v1971, %v1970
  %v1979 = vpack.c.b16 %v1973, %v1972
  %v1980 = vpack.c.b16 %v1975, %v1974
  %v1981 = vpack.c.b16 %v1977, %v1976
  %v1987 = vsel %vm625, %v55, 0
  %1989 = vmatpush.bf16.msra.mxu0 0
  %1990 = vmatpush.bf16.msra.mxu0 0
  %1991 = vmatpush.bf16.msra.mxu0 0
  %1992 = vmatpush.bf16.msra.mxu0 0
  %1993 = vmatpush.bf16.msra.mxu0 %v1981
  %1994 = vmatpush.bf16.msra.mxu0 %v1980
  %1995 = vmatpush.bf16.msra.mxu0 %v1979
  %1996 = vmatpush.bf16.msra.mxu0 %v1978
  %1997 = vmatmul.bf16.gmra.mxu0 %v1987
  %v1998 = vpop.f32.mrf.mxu0
  %v1999 = vadd.f32 %v599, %v1998
  %v2000 = vpop.f32.mrf.mxu0
  %2001 = vdwg.mxu0
  %v2010 = vunpack.c.l.b16 %v365
  %v2011 = vunpack.c.l.b16 %v366
  %v2012 = vunpack.c.l.b16 %v367
  %v2013 = vunpack.c.l.b16 %v368
  %v2014 = vunpack.c.l.b16 %v369
  %v2015 = vunpack.c.l.b16 %v370
  %v2016 = vunpack.c.l.b16 %v371
  %v2017 = vunpack.c.l.b16 %v372
  %v2018 = vpack.c.b16 %v2011, %v2010
  %v2019 = vpack.c.b16 %v2013, %v2012
  %v2020 = vpack.c.b16 %v2015, %v2014
  %v2021 = vpack.c.b16 %v2017, %v2016
  %v2027 = vsel %vm625, %v56, 0
  %2029 = vmatpush.bf16.msra.mxu0 0
  %2030 = vmatpush.bf16.msra.mxu0 0
  %2031 = vmatpush.bf16.msra.mxu0 0
  %2032 = vmatpush.bf16.msra.mxu0 0
  %2033 = vmatpush.bf16.msra.mxu0 %v2021
  %2034 = vmatpush.bf16.msra.mxu0 %v2020
  %2035 = vmatpush.bf16.msra.mxu0 %v2019
  %2036 = vmatpush.bf16.msra.mxu0 %v2018
  %2037 = vmatmul.bf16.gmra.mxu0 %v2027
  %v2038 = vpop.f32.mrf.mxu0
  %v2039 = vadd.f32 %v599, %v2038
  %v2040 = vpop.f32.mrf.mxu0
  %2041 = vdwg.mxu0
  %v2050 = vunpack.c.l.b16 %v373
  %v2051 = vunpack.c.l.b16 %v374
  %v2052 = vunpack.c.l.b16 %v375
  %v2053 = vunpack.c.l.b16 %v376
  %v2054 = vunpack.c.l.b16 %v377
  %v2055 = vunpack.c.l.b16 %v378
  %v2056 = vunpack.c.l.b16 %v379
  %v2057 = vunpack.c.l.b16 %v380
  %v2058 = vpack.c.b16 %v2051, %v2050
  %v2059 = vpack.c.b16 %v2053, %v2052
  %v2060 = vpack.c.b16 %v2055, %v2054
  %v2061 = vpack.c.b16 %v2057, %v2056
  %v2067 = vsel %vm625, %v57, 0
  %2069 = vmatpush.bf16.msra.mxu0 0
  %2070 = vmatpush.bf16.msra.mxu0 0
  %2071 = vmatpush.bf16.msra.mxu0 0
  %2072 = vmatpush.bf16.msra.mxu0 0
  %2073 = vmatpush.bf16.msra.mxu0 %v2061
  %2074 = vmatpush.bf16.msra.mxu0 %v2060
  %2075 = vmatpush.bf16.msra.mxu0 %v2059
  %2076 = vmatpush.bf16.msra.mxu0 %v2058
  %2077 = vmatmul.bf16.gmra.mxu0 %v2067
  %v2078 = vpop.f32.mrf.mxu0
  %v2079 = vadd.f32 %v599, %v2078
  %v2080 = vpop.f32.mrf.mxu0
  %2081 = vdwg.mxu0
  %v2090 = vunpack.c.l.b16 %v381
  %v2091 = vunpack.c.l.b16 %v382
  %v2092 = vunpack.c.l.b16 %v383
  %v2093 = vunpack.c.l.b16 %v384
  %v2094 = vunpack.c.l.b16 %v385
  %v2095 = vunpack.c.l.b16 %v386
  %v2096 = vunpack.c.l.b16 %v387
  %v2097 = vunpack.c.l.b16 %v388
  %v2098 = vpack.c.b16 %v2091, %v2090
  %v2099 = vpack.c.b16 %v2093, %v2092
  %v2100 = vpack.c.b16 %v2095, %v2094
  %v2101 = vpack.c.b16 %v2097, %v2096
  %v2107 = vsel %vm625, %v58, 0
  %2109 = vmatpush.bf16.msra.mxu0 0
  %2110 = vmatpush.bf16.msra.mxu0 0
  %2111 = vmatpush.bf16.msra.mxu0 0
  %2112 = vmatpush.bf16.msra.mxu0 0
  %2113 = vmatpush.bf16.msra.mxu0 %v2101
  %2114 = vmatpush.bf16.msra.mxu0 %v2100
  %2115 = vmatpush.bf16.msra.mxu0 %v2099
  %2116 = vmatpush.bf16.msra.mxu0 %v2098
  %2117 = vmatmul.bf16.gmra.mxu0 %v2107
  %v2118 = vpop.f32.mrf.mxu0
  %v2119 = vadd.f32 %v599, %v2118
  %v2120 = vpop.f32.mrf.mxu0
  %2121 = vdwg.mxu0
  %v2130 = vunpack.c.l.b16 %v389
  %v2131 = vunpack.c.l.b16 %v390
  %v2132 = vunpack.c.l.b16 %v391
  %v2133 = vunpack.c.l.b16 %v392
  %v2134 = vunpack.c.l.b16 %v393
  %v2135 = vunpack.c.l.b16 %v394
  %v2136 = vunpack.c.l.b16 %v395
  %v2137 = vunpack.c.l.b16 %v396
  %v2138 = vpack.c.b16 %v2131, %v2130
  %v2139 = vpack.c.b16 %v2133, %v2132
  %v2140 = vpack.c.b16 %v2135, %v2134
  %v2141 = vpack.c.b16 %v2137, %v2136
  %v2147 = vsel %vm625, %v59, 0
  %2149 = vmatpush.bf16.msra.mxu0 0
  %2150 = vmatpush.bf16.msra.mxu0 0
  %2151 = vmatpush.bf16.msra.mxu0 0
  %2152 = vmatpush.bf16.msra.mxu0 0
  %2153 = vmatpush.bf16.msra.mxu0 %v2141
  %2154 = vmatpush.bf16.msra.mxu0 %v2140
  %2155 = vmatpush.bf16.msra.mxu0 %v2139
  %2156 = vmatpush.bf16.msra.mxu0 %v2138
  %2157 = vmatmul.bf16.gmra.mxu0 %v2147
  %v2158 = vpop.f32.mrf.mxu0
  %v2159 = vadd.f32 %v599, %v2158
  %v2160 = vpop.f32.mrf.mxu0
  %2161 = vdwg.mxu0
  %v2170 = vunpack.c.l.b16 %v397
  %v2171 = vunpack.c.l.b16 %v398
  %v2172 = vunpack.c.l.b16 %v399
  %v2173 = vunpack.c.l.b16 %v400
  %v2174 = vunpack.c.l.b16 %v401
  %v2175 = vunpack.c.l.b16 %v402
  %v2176 = vunpack.c.l.b16 %v403
  %v2177 = vunpack.c.l.b16 %v404
  %v2178 = vpack.c.b16 %v2171, %v2170
  %v2179 = vpack.c.b16 %v2173, %v2172
  %v2180 = vpack.c.b16 %v2175, %v2174
  %v2181 = vpack.c.b16 %v2177, %v2176
  %v2187 = vsel %vm625, %v60, 0
  %2189 = vmatpush.bf16.msra.mxu0 0
  %2190 = vmatpush.bf16.msra.mxu0 0
  %2191 = vmatpush.bf16.msra.mxu0 0
  %2192 = vmatpush.bf16.msra.mxu0 0
  %2193 = vmatpush.bf16.msra.mxu0 %v2181
  %2194 = vmatpush.bf16.msra.mxu0 %v2180
  %2195 = vmatpush.bf16.msra.mxu0 %v2179
  %2196 = vmatpush.bf16.msra.mxu0 %v2178
  %2197 = vmatmul.bf16.gmra.mxu0 %v2187
  %v2198 = vpop.f32.mrf.mxu0
  %v2199 = vadd.f32 %v599, %v2198
  %v2200 = vpop.f32.mrf.mxu0
  %2201 = vdwg.mxu0
  %v2210 = vunpack.c.l.b16 %v405
  %v2211 = vunpack.c.l.b16 %v406
  %v2212 = vunpack.c.l.b16 %v407
  %v2213 = vunpack.c.l.b16 %v408
  %v2214 = vunpack.c.l.b16 %v409
  %v2215 = vunpack.c.l.b16 %v410
  %v2216 = vunpack.c.l.b16 %v411
  %v2217 = vunpack.c.l.b16 %v412
  %v2218 = vpack.c.b16 %v2211, %v2210
  %v2219 = vpack.c.b16 %v2213, %v2212
  %v2220 = vpack.c.b16 %v2215, %v2214
  %v2221 = vpack.c.b16 %v2217, %v2216
  %v2227 = vsel %vm625, %v61, 0
  %2229 = vmatpush.bf16.msra.mxu0 0
  %2230 = vmatpush.bf16.msra.mxu0 0
  %2231 = vmatpush.bf16.msra.mxu0 0
  %2232 = vmatpush.bf16.msra.mxu0 0
  %2233 = vmatpush.bf16.msra.mxu0 %v2221
  %2234 = vmatpush.bf16.msra.mxu0 %v2220
  %2235 = vmatpush.bf16.msra.mxu0 %v2219
  %2236 = vmatpush.bf16.msra.mxu0 %v2218
  %2237 = vmatmul.bf16.gmra.mxu0 %v2227
  %v2238 = vpop.f32.mrf.mxu0
  %v2239 = vadd.f32 %v599, %v2238
  %v2240 = vpop.f32.mrf.mxu0
  %2241 = vdwg.mxu0
  %v2250 = vunpack.c.l.b16 %v413
  %v2251 = vunpack.c.l.b16 %v414
  %v2252 = vunpack.c.l.b16 %v415
  %v2253 = vunpack.c.l.b16 %v416
  %v2254 = vunpack.c.l.b16 %v417
  %v2255 = vunpack.c.l.b16 %v418
  %v2256 = vunpack.c.l.b16 %v419
  %v2257 = vunpack.c.l.b16 %v420
  %v2258 = vpack.c.b16 %v2251, %v2250
  %v2259 = vpack.c.b16 %v2253, %v2252
  %v2260 = vpack.c.b16 %v2255, %v2254
  %v2261 = vpack.c.b16 %v2257, %v2256
  %v2267 = vsel %vm625, %v62, 0
  %2269 = vmatpush.bf16.msra.mxu0 0
  %2270 = vmatpush.bf16.msra.mxu0 0
  %2271 = vmatpush.bf16.msra.mxu0 0
  %2272 = vmatpush.bf16.msra.mxu0 0
  %2273 = vmatpush.bf16.msra.mxu0 %v2261
  %2274 = vmatpush.bf16.msra.mxu0 %v2260
  %2275 = vmatpush.bf16.msra.mxu0 %v2259
  %2276 = vmatpush.bf16.msra.mxu0 %v2258
  %2277 = vmatmul.bf16.gmra.mxu0 %v2267
  %v2278 = vpop.f32.mrf.mxu0
  %v2279 = vadd.f32 %v599, %v2278
  %v2280 = vpop.f32.mrf.mxu0
  %2281 = vdwg.mxu0
  %v2290 = vunpack.c.l.b16 %v421
  %v2291 = vunpack.c.l.b16 %v422
  %v2292 = vunpack.c.l.b16 %v423
  %v2293 = vunpack.c.l.b16 %v424
  %v2294 = vunpack.c.l.b16 %v425
  %v2295 = vunpack.c.l.b16 %v426
  %v2296 = vunpack.c.l.b16 %v427
  %v2297 = vunpack.c.l.b16 %v428
  %v2298 = vpack.c.b16 %v2291, %v2290
  %v2299 = vpack.c.b16 %v2293, %v2292
  %v2300 = vpack.c.b16 %v2295, %v2294
  %v2301 = vpack.c.b16 %v2297, %v2296
  %v2307 = vsel %vm625, %v63, 0
  %2309 = vmatpush.bf16.msra.mxu0 0
  %2310 = vmatpush.bf16.msra.mxu0 0
  %2311 = vmatpush.bf16.msra.mxu0 0
  %2312 = vmatpush.bf16.msra.mxu0 0
  %2313 = vmatpush.bf16.msra.mxu0 %v2301
  %2314 = vmatpush.bf16.msra.mxu0 %v2300
  %2315 = vmatpush.bf16.msra.mxu0 %v2299
  %2316 = vmatpush.bf16.msra.mxu0 %v2298
  %2317 = vmatmul.bf16.gmra.mxu0 %v2307
  %v2318 = vpop.f32.mrf.mxu0
  %v2319 = vadd.f32 %v599, %v2318
  %v2320 = vpop.f32.mrf.mxu0
  %2321 = vdwg.mxu0
  %v2330 = vunpack.c.l.b16 %v429
  %v2331 = vunpack.c.l.b16 %v430
  %v2332 = vunpack.c.l.b16 %v431
  %v2333 = vunpack.c.l.b16 %v432
  %v2334 = vunpack.c.l.b16 %v433
  %v2335 = vunpack.c.l.b16 %v434
  %v2336 = vunpack.c.l.b16 %v435
  %v2337 = vunpack.c.l.b16 %v436
  %v2338 = vpack.c.b16 %v2331, %v2330
  %v2339 = vpack.c.b16 %v2333, %v2332
  %v2340 = vpack.c.b16 %v2335, %v2334
  %v2341 = vpack.c.b16 %v2337, %v2336
  %v2347 = vsel %vm625, %v64, 0
  %2349 = vmatpush.bf16.msra.mxu0 0
  %2350 = vmatpush.bf16.msra.mxu0 0
  %2351 = vmatpush.bf16.msra.mxu0 0
  %2352 = vmatpush.bf16.msra.mxu0 0
  %2353 = vmatpush.bf16.msra.mxu0 %v2341
  %2354 = vmatpush.bf16.msra.mxu0 %v2340
  %2355 = vmatpush.bf16.msra.mxu0 %v2339
  %2356 = vmatpush.bf16.msra.mxu0 %v2338
  %2357 = vmatmul.bf16.gmra.mxu0 %v2347
  %v2358 = vpop.f32.mrf.mxu0
  %v2359 = vadd.f32 %v599, %v2358
  %v2360 = vpop.f32.mrf.mxu0
  %2361 = vdwg.mxu0
  %v2370 = vunpack.c.l.b16 %v437
  %v2371 = vunpack.c.l.b16 %v438
  %v2372 = vunpack.c.l.b16 %v439
  %v2373 = vunpack.c.l.b16 %v440
  %v2374 = vunpack.c.l.b16 %v441
  %v2375 = vunpack.c.l.b16 %v442
  %v2376 = vunpack.c.l.b16 %v443
  %v2377 = vunpack.c.l.b16 %v444
  %v2378 = vpack.c.b16 %v2371, %v2370
  %v2379 = vpack.c.b16 %v2373, %v2372
  %v2380 = vpack.c.b16 %v2375, %v2374
  %v2381 = vpack.c.b16 %v2377, %v2376
  %v2387 = vsel %vm625, %v65, 0
  %2389 = vmatpush.bf16.msra.mxu0 0
  %2390 = vmatpush.bf16.msra.mxu0 0
  %2391 = vmatpush.bf16.msra.mxu0 0
  %2392 = vmatpush.bf16.msra.mxu0 0
  %2393 = vmatpush.bf16.msra.mxu0 %v2381
  %2394 = vmatpush.bf16.msra.mxu0 %v2380
  %2395 = vmatpush.bf16.msra.mxu0 %v2379
  %2396 = vmatpush.bf16.msra.mxu0 %v2378
  %2397 = vmatmul.bf16.gmra.mxu0 %v2387
  %v2398 = vpop.f32.mrf.mxu0
  %v2399 = vadd.f32 %v599, %v2398
  %v2400 = vpop.f32.mrf.mxu0
  %2401 = vdwg.mxu0
  %v2410 = vunpack.c.l.b16 %v445
  %v2411 = vunpack.c.l.b16 %v446
  %v2412 = vunpack.c.l.b16 %v447
  %v2413 = vunpack.c.l.b16 %v448
  %v2414 = vunpack.c.l.b16 %v449
  %v2415 = vunpack.c.l.b16 %v450
  %v2416 = vunpack.c.l.b16 %v451
  %v2417 = vunpack.c.l.b16 %v452
  %v2418 = vpack.c.b16 %v2411, %v2410
  %v2419 = vpack.c.b16 %v2413, %v2412
  %v2420 = vpack.c.b16 %v2415, %v2414
  %v2421 = vpack.c.b16 %v2417, %v2416
  %v2427 = vsel %vm625, %v66, 0
  %2429 = vmatpush.bf16.msra.mxu0 0
  %2430 = vmatpush.bf16.msra.mxu0 0
  %2431 = vmatpush.bf16.msra.mxu0 0
  %2432 = vmatpush.bf16.msra.mxu0 0
  %2433 = vmatpush.bf16.msra.mxu0 %v2421
  %2434 = vmatpush.bf16.msra.mxu0 %v2420
  %2435 = vmatpush.bf16.msra.mxu0 %v2419
  %2436 = vmatpush.bf16.msra.mxu0 %v2418
  %2437 = vmatmul.bf16.gmra.mxu0 %v2427
  %v2438 = vpop.f32.mrf.mxu0
  %v2439 = vadd.f32 %v599, %v2438
  %v2440 = vpop.f32.mrf.mxu0
  %2441 = vdwg.mxu0
  %v2450 = vunpack.c.l.b16 %v453
  %v2451 = vunpack.c.l.b16 %v454
  %v2452 = vunpack.c.l.b16 %v455
  %v2453 = vunpack.c.l.b16 %v456
  %v2454 = vunpack.c.l.b16 %v457
  %v2455 = vunpack.c.l.b16 %v458
  %v2456 = vunpack.c.l.b16 %v459
  %v2457 = vunpack.c.l.b16 %v460
  %v2458 = vpack.c.b16 %v2451, %v2450
  %v2459 = vpack.c.b16 %v2453, %v2452
  %v2460 = vpack.c.b16 %v2455, %v2454
  %v2461 = vpack.c.b16 %v2457, %v2456
  %v2467 = vsel %vm625, %v67, 0
  %2469 = vmatpush.bf16.msra.mxu0 0
  %2470 = vmatpush.bf16.msra.mxu0 0
  %2471 = vmatpush.bf16.msra.mxu0 0
  %2472 = vmatpush.bf16.msra.mxu0 0
  %2473 = vmatpush.bf16.msra.mxu0 %v2461
  %2474 = vmatpush.bf16.msra.mxu0 %v2460
  %2475 = vmatpush.bf16.msra.mxu0 %v2459
  %2476 = vmatpush.bf16.msra.mxu0 %v2458
  %2477 = vmatmul.bf16.gmra.mxu0 %v2467
  %v2478 = vpop.f32.mrf.mxu0
  %v2479 = vadd.f32 %v599, %v2478
  %v2480 = vpop.f32.mrf.mxu0
  %2481 = vdwg.mxu0
  %v2490 = vunpack.c.l.b16 %v461
  %v2491 = vunpack.c.l.b16 %v462
  %v2492 = vunpack.c.l.b16 %v463
  %v2493 = vunpack.c.l.b16 %v464
  %v2494 = vunpack.c.l.b16 %v465
  %v2495 = vunpack.c.l.b16 %v466
  %v2496 = vunpack.c.l.b16 %v467
  %v2497 = vunpack.c.l.b16 %v468
  %v2498 = vpack.c.b16 %v2491, %v2490
  %v2499 = vpack.c.b16 %v2493, %v2492
  %v2500 = vpack.c.b16 %v2495, %v2494
  %v2501 = vpack.c.b16 %v2497, %v2496
  %v2507 = vsel %vm625, %v68, 0
  %2509 = vmatpush.bf16.msra.mxu0 0
  %2510 = vmatpush.bf16.msra.mxu0 0
  %2511 = vmatpush.bf16.msra.mxu0 0
  %2512 = vmatpush.bf16.msra.mxu0 0
  %2513 = vmatpush.bf16.msra.mxu0 %v2501
  %2514 = vmatpush.bf16.msra.mxu0 %v2500
  %2515 = vmatpush.bf16.msra.mxu0 %v2499
  %2516 = vmatpush.bf16.msra.mxu0 %v2498
  %2517 = vmatmul.bf16.gmra.mxu0 %v2507
  %v2518 = vpop.f32.mrf.mxu0
  %v2519 = vadd.f32 %v599, %v2518
  %v2520 = vpop.f32.mrf.mxu0
  %2521 = vdwg.mxu0
  %v2530 = vunpack.c.l.b16 %v469
  %v2531 = vunpack.c.l.b16 %v470
  %v2532 = vunpack.c.l.b16 %v471
  %v2533 = vunpack.c.l.b16 %v472
  %v2534 = vunpack.c.l.b16 %v473
  %v2535 = vunpack.c.l.b16 %v474
  %v2536 = vunpack.c.l.b16 %v475
  %v2537 = vunpack.c.l.b16 %v476
  %v2538 = vpack.c.b16 %v2531, %v2530
  %v2539 = vpack.c.b16 %v2533, %v2532
  %v2540 = vpack.c.b16 %v2535, %v2534
  %v2541 = vpack.c.b16 %v2537, %v2536
  %v2547 = vsel %vm625, %v69, 0
  %2549 = vmatpush.bf16.msra.mxu0 0
  %2550 = vmatpush.bf16.msra.mxu0 0
  %2551 = vmatpush.bf16.msra.mxu0 0
  %2552 = vmatpush.bf16.msra.mxu0 0
  %2553 = vmatpush.bf16.msra.mxu0 %v2541
  %2554 = vmatpush.bf16.msra.mxu0 %v2540
  %2555 = vmatpush.bf16.msra.mxu0 %v2539
  %2556 = vmatpush.bf16.msra.mxu0 %v2538
  %2557 = vmatmul.bf16.gmra.mxu0 %v2547
  %v2558 = vpop.f32.mrf.mxu0
  %v2559 = vadd.f32 %v599, %v2558
  %v2560 = vpop.f32.mrf.mxu0
  %2561 = vdwg.mxu0
  %v2570 = vunpack.c.l.b16 %v477
  %v2571 = vunpack.c.l.b16 %v478
  %v2572 = vunpack.c.l.b16 %v479
  %v2573 = vunpack.c.l.b16 %v480
  %v2574 = vunpack.c.l.b16 %v481
  %v2575 = vunpack.c.l.b16 %v482
  %v2576 = vunpack.c.l.b16 %v483
  %v2577 = vunpack.c.l.b16 %v484
  %v2578 = vpack.c.b16 %v2571, %v2570
  %v2579 = vpack.c.b16 %v2573, %v2572
  %v2580 = vpack.c.b16 %v2575, %v2574
  %v2581 = vpack.c.b16 %v2577, %v2576
  %v2587 = vsel %vm625, %v70, 0
  %2589 = vmatpush.bf16.msra.mxu0 0
  %2590 = vmatpush.bf16.msra.mxu0 0
  %2591 = vmatpush.bf16.msra.mxu0 0
  %2592 = vmatpush.bf16.msra.mxu0 0
  %2593 = vmatpush.bf16.msra.mxu0 %v2581
  %2594 = vmatpush.bf16.msra.mxu0 %v2580
  %2595 = vmatpush.bf16.msra.mxu0 %v2579
  %2596 = vmatpush.bf16.msra.mxu0 %v2578
  %2597 = vmatmul.bf16.gmra.mxu0 %v2587
  %v2598 = vpop.f32.mrf.mxu0
  %v2599 = vadd.f32 %v599, %v2598
  %v2600 = vpop.f32.mrf.mxu0
  %2601 = vdwg.mxu0
  %v2610 = vunpack.c.l.b16 %v485
  %v2611 = vunpack.c.l.b16 %v486
  %v2612 = vunpack.c.l.b16 %v487
  %v2613 = vunpack.c.l.b16 %v488
  %v2614 = vunpack.c.l.b16 %v489
  %v2615 = vunpack.c.l.b16 %v490
  %v2616 = vunpack.c.l.b16 %v491
  %v2617 = vunpack.c.l.b16 %v492
  %v2618 = vpack.c.b16 %v2611, %v2610
  %v2619 = vpack.c.b16 %v2613, %v2612
  %v2620 = vpack.c.b16 %v2615, %v2614
  %v2621 = vpack.c.b16 %v2617, %v2616
  %v2627 = vsel %vm625, %v71, 0
  %2629 = vmatpush.bf16.msra.mxu0 0
  %2630 = vmatpush.bf16.msra.mxu0 0
  %2631 = vmatpush.bf16.msra.mxu0 0
  %2632 = vmatpush.bf16.msra.mxu0 0
  %2633 = vmatpush.bf16.msra.mxu0 %v2621
  %2634 = vmatpush.bf16.msra.mxu0 %v2620
  %2635 = vmatpush.bf16.msra.mxu0 %v2619
  %2636 = vmatpush.bf16.msra.mxu0 %v2618
  %2637 = vmatmul.bf16.gmra.mxu0 %v2627
  %v2638 = vpop.f32.mrf.mxu0
  %v2639 = vadd.f32 %v599, %v2638
  %v2640 = vpop.f32.mrf.mxu0
  %2641 = vdwg.mxu0
  %v2650 = vunpack.c.l.b16 %v493
  %v2651 = vunpack.c.l.b16 %v494
  %v2652 = vunpack.c.l.b16 %v495
  %v2653 = vunpack.c.l.b16 %v496
  %v2654 = vunpack.c.l.b16 %v497
  %v2655 = vunpack.c.l.b16 %v498
  %v2656 = vunpack.c.l.b16 %v499
  %v2657 = vunpack.c.l.b16 %v500
  %v2658 = vpack.c.b16 %v2651, %v2650
  %v2659 = vpack.c.b16 %v2653, %v2652
  %v2660 = vpack.c.b16 %v2655, %v2654
  %v2661 = vpack.c.b16 %v2657, %v2656
  %v2667 = vsel %vm625, %v72, 0
  %2669 = vmatpush.bf16.msra.mxu0 0
  %2670 = vmatpush.bf16.msra.mxu0 0
  %2671 = vmatpush.bf16.msra.mxu0 0
  %2672 = vmatpush.bf16.msra.mxu0 0
  %2673 = vmatpush.bf16.msra.mxu0 %v2661
  %2674 = vmatpush.bf16.msra.mxu0 %v2660
  %2675 = vmatpush.bf16.msra.mxu0 %v2659
  %2676 = vmatpush.bf16.msra.mxu0 %v2658
  %2677 = vmatmul.bf16.gmra.mxu0 %v2667
  %v2678 = vpop.f32.mrf.mxu0
  %v2679 = vadd.f32 %v599, %v2678
  %v2680 = vpop.f32.mrf.mxu0
  %2681 = vdwg.mxu0
  %v2690 = vunpack.c.l.b16 %v501
  %v2691 = vunpack.c.l.b16 %v502
  %v2692 = vunpack.c.l.b16 %v503
  %v2693 = vunpack.c.l.b16 %v504
  %v2694 = vunpack.c.l.b16 %v505
  %v2695 = vunpack.c.l.b16 %v506
  %v2696 = vunpack.c.l.b16 %v507
  %v2697 = vunpack.c.l.b16 %v508
  %v2698 = vpack.c.b16 %v2691, %v2690
  %v2699 = vpack.c.b16 %v2693, %v2692
  %v2700 = vpack.c.b16 %v2695, %v2694
  %v2701 = vpack.c.b16 %v2697, %v2696
  %v2707 = vsel %vm625, %v73, 0
  %2709 = vmatpush.bf16.msra.mxu0 0
  %2710 = vmatpush.bf16.msra.mxu0 0
  %2711 = vmatpush.bf16.msra.mxu0 0
  %2712 = vmatpush.bf16.msra.mxu0 0
  %2713 = vmatpush.bf16.msra.mxu0 %v2701
  %2714 = vmatpush.bf16.msra.mxu0 %v2700
  %2715 = vmatpush.bf16.msra.mxu0 %v2699
  %2716 = vmatpush.bf16.msra.mxu0 %v2698
  %2717 = vmatmul.bf16.gmra.mxu0 %v2707
  %v2718 = vpop.f32.mrf.mxu0
  %v2719 = vadd.f32 %v599, %v2718
  %v2720 = vpop.f32.mrf.mxu0
  %2721 = vdwg.mxu0
  %v2730 = vunpack.c.l.b16 %v509
  %v2731 = vunpack.c.l.b16 %v510
  %v2732 = vunpack.c.l.b16 %v511
  %v2733 = vunpack.c.l.b16 %v512
  %v2734 = vunpack.c.l.b16 %v513
  %v2735 = vunpack.c.l.b16 %v514
  %v2736 = vunpack.c.l.b16 %v515
  %v2737 = vunpack.c.l.b16 %v516
  %v2738 = vpack.c.b16 %v2731, %v2730
  %v2739 = vpack.c.b16 %v2733, %v2732
  %v2740 = vpack.c.b16 %v2735, %v2734
  %v2741 = vpack.c.b16 %v2737, %v2736
  %v2747 = vsel %vm625, %v74, 0
  %2749 = vmatpush.bf16.msra.mxu0 0
  %2750 = vmatpush.bf16.msra.mxu0 0
  %2751 = vmatpush.bf16.msra.mxu0 0
  %2752 = vmatpush.bf16.msra.mxu0 0
  %2753 = vmatpush.bf16.msra.mxu0 %v2741
  %2754 = vmatpush.bf16.msra.mxu0 %v2740
  %2755 = vmatpush.bf16.msra.mxu0 %v2739
  %2756 = vmatpush.bf16.msra.mxu0 %v2738
  %2757 = vmatmul.bf16.gmra.mxu0 %v2747
  %v2758 = vpop.f32.mrf.mxu0
  %v2759 = vadd.f32 %v599, %v2758
  %v2760 = vpop.f32.mrf.mxu0
  %2761 = vdwg.mxu0
  %v2770 = vunpack.c.l.b16 %v517
  %v2771 = vunpack.c.l.b16 %v518
  %v2772 = vunpack.c.l.b16 %v519
  %v2773 = vunpack.c.l.b16 %v520
  %v2774 = vunpack.c.l.b16 %v521
  %v2775 = vunpack.c.l.b16 %v522
  %v2776 = vunpack.c.l.b16 %v523
  %v2777 = vunpack.c.l.b16 %v524
  %v2778 = vpack.c.b16 %v2771, %v2770
  %v2779 = vpack.c.b16 %v2773, %v2772
  %v2780 = vpack.c.b16 %v2775, %v2774
  %v2781 = vpack.c.b16 %v2777, %v2776
  %v2787 = vsel %vm625, %v75, 0
  %2789 = vmatpush.bf16.msra.mxu0 0
  %2790 = vmatpush.bf16.msra.mxu0 0
  %2791 = vmatpush.bf16.msra.mxu0 0
  %2792 = vmatpush.bf16.msra.mxu0 0
  %2793 = vmatpush.bf16.msra.mxu0 %v2781
  %2794 = vmatpush.bf16.msra.mxu0 %v2780
  %2795 = vmatpush.bf16.msra.mxu0 %v2779
  %2796 = vmatpush.bf16.msra.mxu0 %v2778
  %2797 = vmatmul.bf16.gmra.mxu0 %v2787
  %v2798 = vpop.f32.mrf.mxu0
  %v2799 = vadd.f32 %v599, %v2798
  %v2800 = vpop.f32.mrf.mxu0
  %2801 = vdwg.mxu0
  %v2810 = vunpack.c.l.b16 %v525
  %v2811 = vunpack.c.l.b16 %v526
  %v2812 = vunpack.c.l.b16 %v527
  %v2813 = vunpack.c.l.b16 %v528
  %v2814 = vunpack.c.l.b16 %v529
  %v2815 = vunpack.c.l.b16 %v530
  %v2816 = vunpack.c.l.b16 %v531
  %v2817 = vunpack.c.l.b16 %v532
  %v2818 = vpack.c.b16 %v2811, %v2810
  %v2819 = vpack.c.b16 %v2813, %v2812
  %v2820 = vpack.c.b16 %v2815, %v2814
  %v2821 = vpack.c.b16 %v2817, %v2816
  %v2827 = vsel %vm625, %v76, 0
  %2829 = vmatpush.bf16.msra.mxu0 0
  %2830 = vmatpush.bf16.msra.mxu0 0
  %2831 = vmatpush.bf16.msra.mxu0 0
  %2832 = vmatpush.bf16.msra.mxu0 0
  %2833 = vmatpush.bf16.msra.mxu0 %v2821
  %2834 = vmatpush.bf16.msra.mxu0 %v2820
  %2835 = vmatpush.bf16.msra.mxu0 %v2819
  %2836 = vmatpush.bf16.msra.mxu0 %v2818
  %2837 = vmatmul.bf16.gmra.mxu0 %v2827
  %v2838 = vpop.f32.mrf.mxu0
  %v2839 = vadd.f32 %v599, %v2838
  %v2840 = vpop.f32.mrf.mxu0
  %2841 = vdwg.mxu0
  %v2850 = vunpack.c.l.b16 %v533
  %v2851 = vunpack.c.l.b16 %v534
  %v2852 = vunpack.c.l.b16 %v535
  %v2853 = vunpack.c.l.b16 %v536
  %v2854 = vunpack.c.l.b16 %v537
  %v2855 = vunpack.c.l.b16 %v538
  %v2856 = vunpack.c.l.b16 %v539
  %v2857 = vunpack.c.l.b16 %v540
  %v2858 = vpack.c.b16 %v2851, %v2850
  %v2859 = vpack.c.b16 %v2853, %v2852
  %v2860 = vpack.c.b16 %v2855, %v2854
  %v2861 = vpack.c.b16 %v2857, %v2856
  %v2867 = vsel %vm625, %v77, 0
  %2869 = vmatpush.bf16.msra.mxu0 0
  %2870 = vmatpush.bf16.msra.mxu0 0
  %2871 = vmatpush.bf16.msra.mxu0 0
  %2872 = vmatpush.bf16.msra.mxu0 0
  %2873 = vmatpush.bf16.msra.mxu0 %v2861
  %2874 = vmatpush.bf16.msra.mxu0 %v2860
  %2875 = vmatpush.bf16.msra.mxu0 %v2859
  %2876 = vmatpush.bf16.msra.mxu0 %v2858
  %2877 = vmatmul.bf16.gmra.mxu0 %v2867
  %v2878 = vpop.f32.mrf.mxu0
  %v2879 = vadd.f32 %v599, %v2878
  %v2880 = vpop.f32.mrf.mxu0
  %2881 = vdwg.mxu0
  %v2890 = vunpack.c.l.b16 %v541
  %v2891 = vunpack.c.l.b16 %v542
  %v2892 = vunpack.c.l.b16 %v543
  %v2893 = vunpack.c.l.b16 %v544
  %v2894 = vunpack.c.l.b16 %v545
  %v2895 = vunpack.c.l.b16 %v546
  %v2896 = vunpack.c.l.b16 %v547
  %v2897 = vunpack.c.l.b16 %v548
  %v2898 = vpack.c.b16 %v2891, %v2890
  %v2899 = vpack.c.b16 %v2893, %v2892
  %v2900 = vpack.c.b16 %v2895, %v2894
  %v2901 = vpack.c.b16 %v2897, %v2896
  %v2907 = vsel %vm625, %v78, 0
  %2909 = vmatpush.bf16.msra.mxu0 0
  %2910 = vmatpush.bf16.msra.mxu0 0
  %2911 = vmatpush.bf16.msra.mxu0 0
  %2912 = vmatpush.bf16.msra.mxu0 0
  %2913 = vmatpush.bf16.msra.mxu0 %v2901
  %2914 = vmatpush.bf16.msra.mxu0 %v2900
  %2915 = vmatpush.bf16.msra.mxu0 %v2899
  %2916 = vmatpush.bf16.msra.mxu0 %v2898
  %2917 = vmatmul.bf16.gmra.mxu0 %v2907
  %v2918 = vpop.f32.mrf.mxu0
  %v2919 = vadd.f32 %v599, %v2918
  %v2920 = vpop.f32.mrf.mxu0
  %2921 = vdwg.mxu0
  %v2930 = vunpack.c.l.b16 %v549
  %v2931 = vunpack.c.l.b16 %v550
  %v2932 = vunpack.c.l.b16 %v551
  %v2933 = vunpack.c.l.b16 %v552
  %v2934 = vunpack.c.l.b16 %v553
  %v2935 = vunpack.c.l.b16 %v554
  %v2936 = vunpack.c.l.b16 %v555
  %v2937 = vunpack.c.l.b16 %v556
  %v2938 = vpack.c.b16 %v2931, %v2930
  %v2939 = vpack.c.b16 %v2933, %v2932
  %v2940 = vpack.c.b16 %v2935, %v2934
  %v2941 = vpack.c.b16 %v2937, %v2936
  %v2947 = vsel %vm625, %v79, 0
  %2949 = vmatpush.bf16.msra.mxu0 0
  %2950 = vmatpush.bf16.msra.mxu0 0
  %2951 = vmatpush.bf16.msra.mxu0 0
  %2952 = vmatpush.bf16.msra.mxu0 0
  %2953 = vmatpush.bf16.msra.mxu0 %v2941
  %2954 = vmatpush.bf16.msra.mxu0 %v2940
  %2955 = vmatpush.bf16.msra.mxu0 %v2939
  %2956 = vmatpush.bf16.msra.mxu0 %v2938
  %2957 = vmatmul.bf16.gmra.mxu0 %v2947
  %v2958 = vpop.f32.mrf.mxu0
  %v2959 = vadd.f32 %v599, %v2958
  %v2960 = vpop.f32.mrf.mxu0
  %2961 = vdwg.mxu0
  %v2970 = vunpack.c.l.b16 %v557
  %v2971 = vunpack.c.l.b16 %v558
  %v2972 = vunpack.c.l.b16 %v559
  %v2973 = vunpack.c.l.b16 %v560
  %v2974 = vunpack.c.l.b16 %v561
  %v2975 = vunpack.c.l.b16 %v562
  %v2976 = vunpack.c.l.b16 %v563
  %v2977 = vunpack.c.l.b16 %v564
  %v2978 = vpack.c.b16 %v2971, %v2970
  %v2979 = vpack.c.b16 %v2973, %v2972
  %v2980 = vpack.c.b16 %v2975, %v2974
  %v2981 = vpack.c.b16 %v2977, %v2976
  %v2987 = vsel %vm625, %v80, 0
  %2989 = vmatpush.bf16.msra.mxu0 0
  %2990 = vmatpush.bf16.msra.mxu0 0
  %2991 = vmatpush.bf16.msra.mxu0 0
  %2992 = vmatpush.bf16.msra.mxu0 0
  %2993 = vmatpush.bf16.msra.mxu0 %v2981
  %2994 = vmatpush.bf16.msra.mxu0 %v2980
  %2995 = vmatpush.bf16.msra.mxu0 %v2979
  %2996 = vmatpush.bf16.msra.mxu0 %v2978
  %2997 = vmatmul.bf16.gmra.mxu0 %v2987
  %v2998 = vpop.f32.mrf.mxu0
  %v2999 = vadd.f32 %v599, %v2998
  %v3000 = vpop.f32.mrf.mxu0
  %3001 = vdwg.mxu0
  %v3010 = vunpack.c.l.b16 %v565
  %v3011 = vunpack.c.l.b16 %v566
  %v3012 = vunpack.c.l.b16 %v567
  %v3013 = vunpack.c.l.b16 %v568
  %v3014 = vunpack.c.l.b16 %v569
  %v3015 = vunpack.c.l.b16 %v570
  %v3016 = vunpack.c.l.b16 %v571
  %v3017 = vunpack.c.l.b16 %v572
  %v3018 = vpack.c.b16 %v3011, %v3010
  %v3019 = vpack.c.b16 %v3013, %v3012
  %v3020 = vpack.c.b16 %v3015, %v3014
  %v3021 = vpack.c.b16 %v3017, %v3016
  %v3027 = vsel %vm625, %v81, 0
  %3029 = vmatpush.bf16.msra.mxu0 0
  %3030 = vmatpush.bf16.msra.mxu0 0
  %3031 = vmatpush.bf16.msra.mxu0 0
  %3032 = vmatpush.bf16.msra.mxu0 0
  %3033 = vmatpush.bf16.msra.mxu0 %v3021
  %3034 = vmatpush.bf16.msra.mxu0 %v3020
  %3035 = vmatpush.bf16.msra.mxu0 %v3019
  %3036 = vmatpush.bf16.msra.mxu0 %v3018
  %3037 = vmatmul.bf16.gmra.mxu0 %v3027
  %v3038 = vpop.f32.mrf.mxu0
  %v3039 = vadd.f32 %v599, %v3038
  %v3040 = vpop.f32.mrf.mxu0
  %3041 = vdwg.mxu0
  %v3050 = vunpack.c.l.b16 %v573
  %v3051 = vunpack.c.l.b16 %v574
  %v3052 = vunpack.c.l.b16 %v575
  %v3053 = vunpack.c.l.b16 %v576
  %v3054 = vunpack.c.l.b16 %v577
  %v3055 = vunpack.c.l.b16 %v578
  %v3056 = vunpack.c.l.b16 %v579
  %v3057 = vunpack.c.l.b16 %v580
  %v3058 = vpack.c.b16 %v3051, %v3050
  %v3059 = vpack.c.b16 %v3053, %v3052
  %v3060 = vpack.c.b16 %v3055, %v3054
  %v3061 = vpack.c.b16 %v3057, %v3056
  %v3067 = vsel %vm625, %v82, 0
  %3069 = vmatpush.bf16.msra.mxu0 0
  %3070 = vmatpush.bf16.msra.mxu0 0
  %3071 = vmatpush.bf16.msra.mxu0 0
  %3072 = vmatpush.bf16.msra.mxu0 0
  %3073 = vmatpush.bf16.msra.mxu0 %v3061
  %3074 = vmatpush.bf16.msra.mxu0 %v3060
  %3075 = vmatpush.bf16.msra.mxu0 %v3059
  %3076 = vmatpush.bf16.msra.mxu0 %v3058
  %3077 = vmatmul.bf16.gmra.mxu0 %v3067
  %v3078 = vpop.f32.mrf.mxu0
  %v3079 = vadd.f32 %v599, %v3078
  %v3080 = vpop.f32.mrf.mxu0
  %3081 = vdwg.mxu0
  %v3090 = vunpack.c.l.b16 %v581
  %v3091 = vunpack.c.l.b16 %v582
  %v3092 = vunpack.c.l.b16 %v583
  %v3093 = vunpack.c.l.b16 %v584
  %v3094 = vunpack.c.l.b16 %v585
  %v3095 = vunpack.c.l.b16 %v586
  %v3096 = vunpack.c.l.b16 %v587
  %v3097 = vunpack.c.l.b16 %v588
  %v3098 = vpack.c.b16 %v3091, %v3090
  %v3099 = vpack.c.b16 %v3093, %v3092
  %v3100 = vpack.c.b16 %v3095, %v3094
  %v3101 = vpack.c.b16 %v3097, %v3096
  %v3107 = vsel %vm625, %v83, 0
  %3109 = vmatpush.bf16.msra.mxu0 0
  %3110 = vmatpush.bf16.msra.mxu0 0
  %3111 = vmatpush.bf16.msra.mxu0 0
  %3112 = vmatpush.bf16.msra.mxu0 0
  %3113 = vmatpush.bf16.msra.mxu0 %v3101
  %3114 = vmatpush.bf16.msra.mxu0 %v3100
  %3115 = vmatpush.bf16.msra.mxu0 %v3099
  %3116 = vmatpush.bf16.msra.mxu0 %v3098
  %3117 = vmatmul.bf16.gmra.mxu0 %v3107
  %v3118 = vpop.f32.mrf.mxu0
  %v3119 = vadd.f32 %v599, %v3118
  %v3120 = vpop.f32.mrf.mxu0
  %3121 = vdwg.mxu0
  %v3130 = vunpack.c.l.b16 %v589
  %v3131 = vunpack.c.l.b16 %v590
  %v3132 = vunpack.c.l.b16 %v591
  %v3133 = vunpack.c.l.b16 %v592
  %v3134 = vunpack.c.l.b16 %v593
  %v3135 = vunpack.c.l.b16 %v594
  %v3136 = vunpack.c.l.b16 %v595
  %v3137 = vunpack.c.l.b16 %v596
  %v3138 = vpack.c.b16 %v3131, %v3130
  %v3139 = vpack.c.b16 %v3133, %v3132
  %v3140 = vpack.c.b16 %v3135, %v3134
  %v3141 = vpack.c.b16 %v3137, %v3136
  %v3147 = vsel %vm625, %v84, 0
  %3149 = vmatpush.bf16.msra.mxu0 0
  %3150 = vmatpush.bf16.msra.mxu0 0
  %3151 = vmatpush.bf16.msra.mxu0 0
  %3152 = vmatpush.bf16.msra.mxu0 0
  %3153 = vmatpush.bf16.msra.mxu0 %v3141
  %3154 = vmatpush.bf16.msra.mxu0 %v3140
  %3155 = vmatpush.bf16.msra.mxu0 %v3139
  %3156 = vmatpush.bf16.msra.mxu0 %v3138
  %3157 = vmatmul.bf16.gmra.mxu0 %v3147
  %v3158 = vpop.f32.mrf.mxu0
  %v3159 = vadd.f32 %v599, %v3158
  %v3160 = vpop.f32.mrf.mxu0
  %3161 = vdwg.mxu0
  %vm3162 = vcmp.gt.f32.partialorder %v639, 0.0
  %vm3163 = vcmp.gt.f32.partialorder %v679, 0.0
  %vm3164 = vcmp.gt.f32.partialorder %v719, 0.0
  %vm3165 = vcmp.gt.f32.partialorder %v759, 0.0
  %vm3166 = vcmp.gt.f32.partialorder %v799, 0.0
  %vm3167 = vcmp.gt.f32.partialorder %v839, 0.0
  %vm3168 = vcmp.gt.f32.partialorder %v879, 0.0
  %vm3169 = vcmp.gt.f32.partialorder %v919, 0.0
  %vm3170 = vcmp.gt.f32.partialorder %v959, 0.0
  %vm3171 = vcmp.gt.f32.partialorder %v999, 0.0
  %vm3172 = vcmp.gt.f32.partialorder %v1039, 0.0
  %vm3173 = vcmp.gt.f32.partialorder %v1079, 0.0
  %vm3174 = vcmp.gt.f32.partialorder %v1119, 0.0
  %vm3175 = vcmp.gt.f32.partialorder %v1159, 0.0
  %vm3176 = vcmp.gt.f32.partialorder %v1199, 0.0
  %vm3177 = vcmp.gt.f32.partialorder %v1239, 0.0
  %vm3178 = vcmp.gt.f32.partialorder %v1279, 0.0
  %vm3179 = vcmp.gt.f32.partialorder %v1319, 0.0
  %vm3180 = vcmp.gt.f32.partialorder %v1359, 0.0
  %vm3181 = vcmp.gt.f32.partialorder %v1399, 0.0
  %vm3182 = vcmp.gt.f32.partialorder %v1439, 0.0
  %vm3183 = vcmp.gt.f32.partialorder %v1479, 0.0
  %vm3184 = vcmp.gt.f32.partialorder %v1519, 0.0
  %vm3185 = vcmp.gt.f32.partialorder %v1559, 0.0
  %vm3186 = vcmp.gt.f32.partialorder %v1599, 0.0
  %vm3187 = vcmp.gt.f32.partialorder %v1639, 0.0
  %vm3188 = vcmp.gt.f32.partialorder %v1679, 0.0
  %vm3189 = vcmp.gt.f32.partialorder %v1719, 0.0
  %vm3190 = vcmp.gt.f32.partialorder %v1759, 0.0
  %vm3191 = vcmp.gt.f32.partialorder %v1799, 0.0
  %vm3192 = vcmp.gt.f32.partialorder %v1839, 0.0
  %vm3193 = vcmp.gt.f32.partialorder %v1879, 0.0
  %vm3194 = vcmp.gt.f32.partialorder %v1919, 0.0
  %vm3195 = vcmp.gt.f32.partialorder %v1959, 0.0
  %vm3196 = vcmp.gt.f32.partialorder %v1999, 0.0
  %vm3197 = vcmp.gt.f32.partialorder %v2039, 0.0
  %vm3198 = vcmp.gt.f32.partialorder %v2079, 0.0
  %vm3199 = vcmp.gt.f32.partialorder %v2119, 0.0
  %vm3200 = vcmp.gt.f32.partialorder %v2159, 0.0
  %vm3201 = vcmp.gt.f32.partialorder %v2199, 0.0
  %vm3202 = vcmp.gt.f32.partialorder %v2239, 0.0
  %vm3203 = vcmp.gt.f32.partialorder %v2279, 0.0
  %vm3204 = vcmp.gt.f32.partialorder %v2319, 0.0
  %vm3205 = vcmp.gt.f32.partialorder %v2359, 0.0
  %vm3206 = vcmp.gt.f32.partialorder %v2399, 0.0
  %vm3207 = vcmp.gt.f32.partialorder %v2439, 0.0
  %vm3208 = vcmp.gt.f32.partialorder %v2479, 0.0
  %vm3209 = vcmp.gt.f32.partialorder %v2519, 0.0
  %vm3210 = vcmp.gt.f32.partialorder %v2559, 0.0
  %vm3211 = vcmp.gt.f32.partialorder %v2599, 0.0
  %vm3212 = vcmp.gt.f32.partialorder %v2639, 0.0
  %vm3213 = vcmp.gt.f32.partialorder %v2679, 0.0
  %vm3214 = vcmp.gt.f32.partialorder %v2719, 0.0
  %vm3215 = vcmp.gt.f32.partialorder %v2759, 0.0
  %vm3216 = vcmp.gt.f32.partialorder %v2799, 0.0
  %vm3217 = vcmp.gt.f32.partialorder %v2839, 0.0
  %vm3218 = vcmp.gt.f32.partialorder %v2879, 0.0
  %vm3219 = vcmp.gt.f32.partialorder %v2919, 0.0
  %vm3220 = vcmp.gt.f32.partialorder %v2959, 0.0
  %vm3221 = vcmp.gt.f32.partialorder %v2999, 0.0
  %vm3222 = vcmp.gt.f32.partialorder %v3039, 0.0
  %vm3223 = vcmp.gt.f32.partialorder %v3079, 0.0
  %vm3224 = vcmp.gt.f32.partialorder %v3119, 0.0
  %vm3225 = vcmp.gt.f32.partialorder %v3159, 0.0
  %v3226 = vmul.f32 %v639, 0.1
  %v3227 = vmul.f32 %v679, 0.1
  %v3228 = vmul.f32 %v719, 0.1
  %v3229 = vmul.f32 %v759, 0.1
  %v3230 = vmul.f32 %v799, 0.1
  %v3231 = vmul.f32 %v839, 0.1
  %v3232 = vmul.f32 %v879, 0.1
  %v3233 = vmul.f32 %v919, 0.1
  %v3234 = vmul.f32 %v959, 0.1
  %v3235 = vmul.f32 %v999, 0.1
  %v3236 = vmul.f32 %v1039, 0.1
  %v3237 = vmul.f32 %v1079, 0.1
  %v3238 = vmul.f32 %v1119, 0.1
  %v3239 = vmul.f32 %v1159, 0.1
  %v3240 = vmul.f32 %v1199, 0.1
  %v3241 = vmul.f32 %v1239, 0.1
  %v3242 = vmul.f32 %v1279, 0.1
  %v3243 = vmul.f32 %v1319, 0.1
  %v3244 = vmul.f32 %v1359, 0.1
  %v3245 = vmul.f32 %v1399, 0.1
  %v3246 = vmul.f32 %v1439, 0.1
  %v3247 = vmul.f32 %v1479, 0.1
  %v3248 = vmul.f32 %v1519, 0.1
  %v3249 = vmul.f32 %v1559, 0.1
  %v3250 = vmul.f32 %v1599, 0.1
  %v3251 = vmul.f32 %v1639, 0.1
  %v3252 = vmul.f32 %v1679, 0.1
  %v3253 = vmul.f32 %v1719, 0.1
  %v3254 = vmul.f32 %v1759, 0.1
  %v3255 = vmul.f32 %v1799, 0.1
  %v3256 = vmul.f32 %v1839, 0.1
  %v3257 = vmul.f32 %v1879, 0.1
  %v3258 = vmul.f32 %v1919, 0.1
  %v3259 = vmul.f32 %v1959, 0.1
  %v3260 = vmul.f32 %v1999, 0.1
  %v3261 = vmul.f32 %v2039, 0.1
  %v3262 = vmul.f32 %v2079, 0.1
  %v3263 = vmul.f32 %v2119, 0.1
  %v3264 = vmul.f32 %v2159, 0.1
  %v3265 = vmul.f32 %v2199, 0.1
  %v3266 = vmul.f32 %v2239, 0.1
  %v3267 = vmul.f32 %v2279, 0.1
  %v3268 = vmul.f32 %v2319, 0.1
  %v3269 = vmul.f32 %v2359, 0.1
  %v3270 = vmul.f32 %v2399, 0.1
  %v3271 = vmul.f32 %v2439, 0.1
  %v3272 = vmul.f32 %v2479, 0.1
  %v3273 = vmul.f32 %v2519, 0.1
  %v3274 = vmul.f32 %v2559, 0.1
  %v3275 = vmul.f32 %v2599, 0.1
  %v3276 = vmul.f32 %v2639, 0.1
  %v3277 = vmul.f32 %v2679, 0.1
  %v3278 = vmul.f32 %v2719, 0.1
  %v3279 = vmul.f32 %v2759, 0.1
  %v3280 = vmul.f32 %v2799, 0.1
  %v3281 = vmul.f32 %v2839, 0.1
  %v3282 = vmul.f32 %v2879, 0.1
  %v3283 = vmul.f32 %v2919, 0.1
  %v3284 = vmul.f32 %v2959, 0.1
  %v3285 = vmul.f32 %v2999, 0.1
  %v3286 = vmul.f32 %v3039, 0.1
  %v3287 = vmul.f32 %v3079, 0.1
  %v3288 = vmul.f32 %v3119, 0.1
  %v3289 = vmul.f32 %v3159, 0.1
  %v3290 = vsel %vm3162, %v639, %v3226
  %v3291 = vsel %vm3163, %v679, %v3227
  %v3292 = vsel %vm3164, %v719, %v3228
  %v3293 = vsel %vm3165, %v759, %v3229
  %v3294 = vsel %vm3166, %v799, %v3230
  %v3295 = vsel %vm3167, %v839, %v3231
  %v3296 = vsel %vm3168, %v879, %v3232
  %v3297 = vsel %vm3169, %v919, %v3233
  %v3298 = vsel %vm3170, %v959, %v3234
  %v3299 = vsel %vm3171, %v999, %v3235
  %v3300 = vsel %vm3172, %v1039, %v3236
  %v3301 = vsel %vm3173, %v1079, %v3237
  %v3302 = vsel %vm3174, %v1119, %v3238
  %v3303 = vsel %vm3175, %v1159, %v3239
  %v3304 = vsel %vm3176, %v1199, %v3240
  %v3305 = vsel %vm3177, %v1239, %v3241
  %v3306 = vsel %vm3178, %v1279, %v3242
  %v3307 = vsel %vm3179, %v1319, %v3243
  %v3308 = vsel %vm3180, %v1359, %v3244
  %v3309 = vsel %vm3181, %v1399, %v3245
  %v3310 = vsel %vm3182, %v1439, %v3246
  %v3311 = vsel %vm3183, %v1479, %v3247
  %v3312 = vsel %vm3184, %v1519, %v3248
  %v3313 = vsel %vm3185, %v1559, %v3249
  %v3314 = vsel %vm3186, %v1599, %v3250
  %v3315 = vsel %vm3187, %v1639, %v3251
  %v3316 = vsel %vm3188, %v1679, %v3252
  %v3317 = vsel %vm3189, %v1719, %v3253
  %v3318 = vsel %vm3190, %v1759, %v3254
  %v3319 = vsel %vm3191, %v1799, %v3255
  %v3320 = vsel %vm3192, %v1839, %v3256
  %v3321 = vsel %vm3193, %v1879, %v3257
  %v3322 = vsel %vm3194, %v1919, %v3258
  %v3323 = vsel %vm3195, %v1959, %v3259
  %v3324 = vsel %vm3196, %v1999, %v3260
  %v3325 = vsel %vm3197, %v2039, %v3261
  %v3326 = vsel %vm3198, %v2079, %v3262
  %v3327 = vsel %vm3199, %v2119, %v3263
  %v3328 = vsel %vm3200, %v2159, %v3264
  %v3329 = vsel %vm3201, %v2199, %v3265
  %v3330 = vsel %vm3202, %v2239, %v3266
  %v3331 = vsel %vm3203, %v2279, %v3267
  %v3332 = vsel %vm3204, %v2319, %v3268
  %v3333 = vsel %vm3205, %v2359, %v3269
  %v3334 = vsel %vm3206, %v2399, %v3270
  %v3335 = vsel %vm3207, %v2439, %v3271
  %v3336 = vsel %vm3208, %v2479, %v3272
  %v3337 = vsel %vm3209, %v2519, %v3273
  %v3338 = vsel %vm3210, %v2559, %v3274
  %v3339 = vsel %vm3211, %v2599, %v3275
  %v3340 = vsel %vm3212, %v2639, %v3276
  %v3341 = vsel %vm3213, %v2679, %v3277
  %v3342 = vsel %vm3214, %v2719, %v3278
  %v3343 = vsel %vm3215, %v2759, %v3279
  %v3344 = vsel %vm3216, %v2799, %v3280
  %v3345 = vsel %vm3217, %v2839, %v3281
  %v3346 = vsel %vm3218, %v2879, %v3282
  %v3347 = vsel %vm3219, %v2919, %v3283
  %v3348 = vsel %vm3220, %v2959, %v3284
  %v3349 = vsel %vm3221, %v2999, %v3285
  %v3350 = vsel %vm3222, %v3039, %v3286
  %v3351 = vsel %vm3223, %v3079, %v3287
  %v3352 = vsel %vm3224, %v3119, %v3288
  %v3353 = vsel %vm3225, %v3159, %v3289
  %vm3354 = vcmask 123904
  %v3355 = vsel %vm3354, %v3290, 0.0
  %v3356 = vsel %vm3354, %v3291, 0.0
  %v3357 = vadd.f32 %v3355, %v3356
  %v3358 = vsel %vm3354, %v3292, 0.0
  %v3359 = vadd.f32 %v3357, %v3358
  %v3360 = vsel %vm3354, %v3293, 0.0
  %v3361 = vadd.f32 %v3359, %v3360
  %v3362 = vsel %vm3354, %v3294, 0.0
  %v3363 = vadd.f32 %v3361, %v3362
  %v3364 = vsel %vm3354, %v3295, 0.0
  %v3365 = vadd.f32 %v3363, %v3364
  %v3366 = vsel %vm3354, %v3296, 0.0
  %v3367 = vadd.f32 %v3365, %v3366
  %v3368 = vsel %vm3354, %v3297, 0.0
  %v3369 = vadd.f32 %v3367, %v3368
  %v3370 = vsel %vm3354, %v3298, 0.0
  %v3371 = vadd.f32 %v3369, %v3370
  %v3372 = vsel %vm3354, %v3299, 0.0
  %v3373 = vadd.f32 %v3371, %v3372
  %v3374 = vsel %vm3354, %v3300, 0.0
  %v3375 = vadd.f32 %v3373, %v3374
  %v3376 = vsel %vm3354, %v3301, 0.0
  %v3377 = vadd.f32 %v3375, %v3376
  %v3378 = vsel %vm3354, %v3302, 0.0
  %v3379 = vadd.f32 %v3377, %v3378
  %v3380 = vsel %vm3354, %v3303, 0.0
  %v3381 = vadd.f32 %v3379, %v3380
  %v3382 = vsel %vm3354, %v3304, 0.0
  %v3383 = vadd.f32 %v3381, %v3382
  %v3384 = vsel %vm3354, %v3305, 0.0
  %v3385 = vadd.f32 %v3383, %v3384
  %v3386 = vsel %vm3354, %v3306, 0.0
  %v3387 = vadd.f32 %v3385, %v3386
  %v3388 = vsel %vm3354, %v3307, 0.0
  %v3389 = vadd.f32 %v3387, %v3388
  %v3390 = vsel %vm3354, %v3308, 0.0
  %v3391 = vadd.f32 %v3389, %v3390
  %v3392 = vsel %vm3354, %v3309, 0.0
  %v3393 = vadd.f32 %v3391, %v3392
  %v3394 = vsel %vm3354, %v3310, 0.0
  %v3395 = vadd.f32 %v3393, %v3394
  %v3396 = vsel %vm3354, %v3311, 0.0
  %v3397 = vadd.f32 %v3395, %v3396
  %v3398 = vsel %vm3354, %v3312, 0.0
  %v3399 = vadd.f32 %v3397, %v3398
  %v3400 = vsel %vm3354, %v3313, 0.0
  %v3401 = vadd.f32 %v3399, %v3400
  %v3402 = vsel %vm3354, %v3314, 0.0
  %v3403 = vadd.f32 %v3401, %v3402
  %v3404 = vsel %vm3354, %v3315, 0.0
  %v3405 = vadd.f32 %v3403, %v3404
  %v3406 = vsel %vm3354, %v3316, 0.0
  %v3407 = vadd.f32 %v3405, %v3406
  %v3408 = vsel %vm3354, %v3317, 0.0
  %v3409 = vadd.f32 %v3407, %v3408
  %v3410 = vsel %vm3354, %v3318, 0.0
  %v3411 = vadd.f32 %v3409, %v3410
  %v3412 = vsel %vm3354, %v3319, 0.0
  %v3413 = vadd.f32 %v3411, %v3412
  %v3414 = vsel %vm3354, %v3320, 0.0
  %v3415 = vadd.f32 %v3413, %v3414
  %v3416 = vsel %vm3354, %v3321, 0.0
  %v3417 = vadd.f32 %v3415, %v3416
  %v3418 = vsel %vm3354, %v3322, 0.0
  %v3419 = vadd.f32 %v3417, %v3418
  %v3420 = vsel %vm3354, %v3323, 0.0
  %v3421 = vadd.f32 %v3419, %v3420
  %v3422 = vsel %vm3354, %v3324, 0.0
  %v3423 = vadd.f32 %v3421, %v3422
  %v3424 = vsel %vm3354, %v3325, 0.0
  %v3425 = vadd.f32 %v3423, %v3424
  %v3426 = vsel %vm3354, %v3326, 0.0
  %v3427 = vadd.f32 %v3425, %v3426
  %v3428 = vsel %vm3354, %v3327, 0.0
  %v3429 = vadd.f32 %v3427, %v3428
  %v3430 = vsel %vm3354, %v3328, 0.0
  %v3431 = vadd.f32 %v3429, %v3430
  %v3432 = vsel %vm3354, %v3329, 0.0
  %v3433 = vadd.f32 %v3431, %v3432
  %v3434 = vsel %vm3354, %v3330, 0.0
  %v3435 = vadd.f32 %v3433, %v3434
  %v3436 = vsel %vm3354, %v3331, 0.0
  %v3437 = vadd.f32 %v3435, %v3436
  %v3438 = vsel %vm3354, %v3332, 0.0
  %v3439 = vadd.f32 %v3437, %v3438
  %v3440 = vsel %vm3354, %v3333, 0.0
  %v3441 = vadd.f32 %v3439, %v3440
  %v3442 = vsel %vm3354, %v3334, 0.0
  %v3443 = vadd.f32 %v3441, %v3442
  %v3444 = vsel %vm3354, %v3335, 0.0
  %v3445 = vadd.f32 %v3443, %v3444
  %v3446 = vsel %vm3354, %v3336, 0.0
  %v3447 = vadd.f32 %v3445, %v3446
  %v3448 = vsel %vm3354, %v3337, 0.0
  %v3449 = vadd.f32 %v3447, %v3448
  %v3450 = vsel %vm3354, %v3338, 0.0
  %v3451 = vadd.f32 %v3449, %v3450
  %v3452 = vsel %vm3354, %v3339, 0.0
  %v3453 = vadd.f32 %v3451, %v3452
  %v3454 = vsel %vm3354, %v3340, 0.0
  %v3455 = vadd.f32 %v3453, %v3454
  %v3456 = vsel %vm3354, %v3341, 0.0
  %v3457 = vadd.f32 %v3455, %v3456
  %v3458 = vsel %vm3354, %v3342, 0.0
  %v3459 = vadd.f32 %v3457, %v3458
  %v3460 = vsel %vm3354, %v3343, 0.0
  %v3461 = vadd.f32 %v3459, %v3460
  %v3462 = vsel %vm3354, %v3344, 0.0
  %v3463 = vadd.f32 %v3461, %v3462
  %v3464 = vsel %vm3354, %v3345, 0.0
  %v3465 = vadd.f32 %v3463, %v3464
  %v3466 = vsel %vm3354, %v3346, 0.0
  %v3467 = vadd.f32 %v3465, %v3466
  %v3468 = vsel %vm3354, %v3347, 0.0
  %v3469 = vadd.f32 %v3467, %v3468
  %v3470 = vsel %vm3354, %v3348, 0.0
  %v3471 = vadd.f32 %v3469, %v3470
  %v3472 = vsel %vm3354, %v3349, 0.0
  %v3473 = vadd.f32 %v3471, %v3472
  %v3474 = vsel %vm3354, %v3350, 0.0
  %v3475 = vadd.f32 %v3473, %v3474
  %v3476 = vsel %vm3354, %v3351, 0.0
  %v3477 = vadd.f32 %v3475, %v3476
  %v3478 = vsel %vm3354, %v3352, 0.0
  %v3479 = vadd.f32 %v3477, %v3478
  %v3480 = vsel %vm3354, %v3353, 0.0
  %v3481 = vadd.f32 %v3479, %v3480
  %v3482 = vrcp.pop 64.0
  %v3483 = vmul.f32 64.0, %v3482
  %v3484 = vsub.f32 1.0, %v3483
  %v3485 = vmul.f32 %v3482, %v3484
  %v3486 = vadd.f32 %v3482, %v3485
  %vm3487 = vweird.f32 %v3482
  %v3488 = vsel %vm3487, %v3482, %v3486
  %v3489 = vmul.f32 %v3481, %v3488
  %v3490 = vsel %vm3354, %v3489, 0.0
  %v3491 = vrot.slane %v3490, 4
  %v3492 = vadd.f32 %v3490, %v3491
  %v3493 = vrot.slane %v3492, 2
  %v3494 = vadd.f32 %v3492, %v3493
  %v3495 = vrot.slane %v3494, 1
  %v3496 = vadd.f32 %v3494, %v3495
  %v3497 = vrcp.pop 2.0
  %v3498 = vmul.f32 2.0, %v3497
  %v3499 = vsub.f32 1.0, %v3498
  %v3500 = vmul.f32 %v3497, %v3499
  %v3501 = vadd.f32 %v3497, %v3500
  %vm3502 = vweird.f32 %v3497
  %v3503 = vsel %vm3502, %v3497, %v3501
  %v3504 = vmul.f32 %v3496, %v3503
  %v3505 = vsub.f32 %v3290, %v3504
  %v3506 = vsub.f32 %v3291, %v3504
  %v3507 = vsub.f32 %v3292, %v3504
  %v3508 = vsub.f32 %v3293, %v3504
  %v3509 = vsub.f32 %v3294, %v3504
  %v3510 = vsub.f32 %v3295, %v3504
  %v3511 = vsub.f32 %v3296, %v3504
  %v3512 = vsub.f32 %v3297, %v3504
  %v3513 = vsub.f32 %v3298, %v3504
  %v3514 = vsub.f32 %v3299, %v3504
  %v3515 = vsub.f32 %v3300, %v3504
  %v3516 = vsub.f32 %v3301, %v3504
  %v3517 = vsub.f32 %v3302, %v3504
  %v3518 = vsub.f32 %v3303, %v3504
  %v3519 = vsub.f32 %v3304, %v3504
  %v3520 = vsub.f32 %v3305, %v3504
  %v3521 = vsub.f32 %v3306, %v3504
  %v3522 = vsub.f32 %v3307, %v3504
  %v3523 = vsub.f32 %v3308, %v3504
  %v3524 = vsub.f32 %v3309, %v3504
  %v3525 = vsub.f32 %v3310, %v3504
  %v3526 = vsub.f32 %v3311, %v3504
  %v3527 = vsub.f32 %v3312, %v3504
  %v3528 = vsub.f32 %v3313, %v3504
  %v3529 = vsub.f32 %v3314, %v3504
  %v3530 = vsub.f32 %v3315, %v3504
  %v3531 = vsub.f32 %v3316, %v3504
  %v3532 = vsub.f32 %v3317, %v3504
  %v3533 = vsub.f32 %v3318, %v3504
  %v3534 = vsub.f32 %v3319, %v3504
  %v3535 = vsub.f32 %v3320, %v3504
  %v3536 = vsub.f32 %v3321, %v3504
  %v3537 = vsub.f32 %v3322, %v3504
  %v3538 = vsub.f32 %v3323, %v3504
  %v3539 = vsub.f32 %v3324, %v3504
  %v3540 = vsub.f32 %v3325, %v3504
  %v3541 = vsub.f32 %v3326, %v3504
  %v3542 = vsub.f32 %v3327, %v3504
  %v3543 = vsub.f32 %v3328, %v3504
  %v3544 = vsub.f32 %v3329, %v3504
  %v3545 = vsub.f32 %v3330, %v3504
  %v3546 = vsub.f32 %v3331, %v3504
  %v3547 = vsub.f32 %v3332, %v3504
  %v3548 = vsub.f32 %v3333, %v3504
  %v3549 = vsub.f32 %v3334, %v3504
  %v3550 = vsub.f32 %v3335, %v3504
  %v3551 = vsub.f32 %v3336, %v3504
  %v3552 = vsub.f32 %v3337, %v3504
  %v3553 = vsub.f32 %v3338, %v3504
  %v3554 = vsub.f32 %v3339, %v3504
  %v3555 = vsub.f32 %v3340, %v3504
  %v3556 = vsub.f32 %v3341, %v3504
  %v3557 = vsub.f32 %v3342, %v3504
  %v3558 = vsub.f32 %v3343, %v3504
  %v3559 = vsub.f32 %v3344, %v3504
  %v3560 = vsub.f32 %v3345, %v3504
  %v3561 = vsub.f32 %v3346, %v3504
  %v3562 = vsub.f32 %v3347, %v3504
  %v3563 = vsub.f32 %v3348, %v3504
  %v3564 = vsub.f32 %v3349, %v3504
  %v3565 = vsub.f32 %v3350, %v3504
  %v3566 = vsub.f32 %v3351, %v3504
  %v3567 = vsub.f32 %v3352, %v3504
  %v3568 = vsub.f32 %v3353, %v3504
  %v3569 = vmul.f32 %v3505, %v3505
  %v3570 = vmul.f32 %v3506, %v3506
  %v3571 = vmul.f32 %v3507, %v3507
  %v3572 = vmul.f32 %v3508, %v3508
  %v3573 = vmul.f32 %v3509, %v3509
  %v3574 = vmul.f32 %v3510, %v3510
  %v3575 = vmul.f32 %v3511, %v3511
  %v3576 = vmul.f32 %v3512, %v3512
  %v3577 = vmul.f32 %v3513, %v3513
  %v3578 = vmul.f32 %v3514, %v3514
  %v3579 = vmul.f32 %v3515, %v3515
  %v3580 = vmul.f32 %v3516, %v3516
  %v3581 = vmul.f32 %v3517, %v3517
  %v3582 = vmul.f32 %v3518, %v3518
  %v3583 = vmul.f32 %v3519, %v3519
  %v3584 = vmul.f32 %v3520, %v3520
  %v3585 = vmul.f32 %v3521, %v3521
  %v3586 = vmul.f32 %v3522, %v3522
  %v3587 = vmul.f32 %v3523, %v3523
  %v3588 = vmul.f32 %v3524, %v3524
  %v3589 = vmul.f32 %v3525, %v3525
  %v3590 = vmul.f32 %v3526, %v3526
  %v3591 = vmul.f32 %v3527, %v3527
  %v3592 = vmul.f32 %v3528, %v3528
  %v3593 = vmul.f32 %v3529, %v3529
  %v3594 = vmul.f32 %v3530, %v3530
  %v3595 = vmul.f32 %v3531, %v3531
  %v3596 = vmul.f32 %v3532, %v3532
  %v3597 = vmul.f32 %v3533, %v3533
  %v3598 = vmul.f32 %v3534, %v3534
  %v3599 = vmul.f32 %v3535, %v3535
  %v3600 = vmul.f32 %v3536, %v3536
  %v3601 = vmul.f32 %v3537, %v3537
  %v3602 = vmul.f32 %v3538, %v3538
  %v3603 = vmul.f32 %v3539, %v3539
  %v3604 = vmul.f32 %v3540, %v3540
  %v3605 = vmul.f32 %v3541, %v3541
  %v3606 = vmul.f32 %v3542, %v3542
  %v3607 = vmul.f32 %v3543, %v3543
  %v3608 = vmul.f32 %v3544, %v3544
  %v3609 = vmul.f32 %v3545, %v3545
  %v3610 = vmul.f32 %v3546, %v3546
  %v3611 = vmul.f32 %v3547, %v3547
  %v3612 = vmul.f32 %v3548, %v3548
  %v3613 = vmul.f32 %v3549, %v3549
  %v3614 = vmul.f32 %v3550, %v3550
  %v3615 = vmul.f32 %v3551, %v3551
  %v3616 = vmul.f32 %v3552, %v3552
  %v3617 = vmul.f32 %v3553, %v3553
  %v3618 = vmul.f32 %v3554, %v3554
  %v3619 = vmul.f32 %v3555, %v3555
  %v3620 = vmul.f32 %v3556, %v3556
  %v3621 = vmul.f32 %v3557, %v3557
  %v3622 = vmul.f32 %v3558, %v3558
  %v3623 = vmul.f32 %v3559, %v3559
  %v3624 = vmul.f32 %v3560, %v3560
  %v3625 = vmul.f32 %v3561, %v3561
  %v3626 = vmul.f32 %v3562, %v3562
  %v3627 = vmul.f32 %v3563, %v3563
  %v3628 = vmul.f32 %v3564, %v3564
  %v3629 = vmul.f32 %v3565, %v3565
  %v3630 = vmul.f32 %v3566, %v3566
  %v3631 = vmul.f32 %v3567, %v3567
  %v3632 = vmul.f32 %v3568, %v3568
  %v3633 = vsel %vm3354, %v3569, 0.0
  %v3634 = vsel %vm3354, %v3570, 0.0
  %v3635 = vadd.f32 %v3633, %v3634
  %v3636 = vsel %vm3354, %v3571, 0.0
  %v3637 = vadd.f32 %v3635, %v3636
  %v3638 = vsel %vm3354, %v3572, 0.0
  %v3639 = vadd.f32 %v3637, %v3638
  %v3640 = vsel %vm3354, %v3573, 0.0
  %v3641 = vadd.f32 %v3639, %v3640
  %v3642 = vsel %vm3354, %v3574, 0.0
  %v3643 = vadd.f32 %v3641, %v3642
  %v3644 = vsel %vm3354, %v3575, 0.0
  %v3645 = vadd.f32 %v3643, %v3644
  %v3646 = vsel %vm3354, %v3576, 0.0
  %v3647 = vadd.f32 %v3645, %v3646
  %v3648 = vsel %vm3354, %v3577, 0.0
  %v3649 = vadd.f32 %v3647, %v3648
  %v3650 = vsel %vm3354, %v3578, 0.0
  %v3651 = vadd.f32 %v3649, %v3650
  %v3652 = vsel %vm3354, %v3579, 0.0
  %v3653 = vadd.f32 %v3651, %v3652
  %v3654 = vsel %vm3354, %v3580, 0.0
  %v3655 = vadd.f32 %v3653, %v3654
  %v3656 = vsel %vm3354, %v3581, 0.0
  %v3657 = vadd.f32 %v3655, %v3656
  %v3658 = vsel %vm3354, %v3582, 0.0
  %v3659 = vadd.f32 %v3657, %v3658
  %v3660 = vsel %vm3354, %v3583, 0.0
  %v3661 = vadd.f32 %v3659, %v3660
  %v3662 = vsel %vm3354, %v3584, 0.0
  %v3663 = vadd.f32 %v3661, %v3662
  %v3664 = vsel %vm3354, %v3585, 0.0
  %v3665 = vadd.f32 %v3663, %v3664
  %v3666 = vsel %vm3354, %v3586, 0.0
  %v3667 = vadd.f32 %v3665, %v3666
  %v3668 = vsel %vm3354, %v3587, 0.0
  %v3669 = vadd.f32 %v3667, %v3668
  %v3670 = vsel %vm3354, %v3588, 0.0
  %v3671 = vadd.f32 %v3669, %v3670
  %v3672 = vsel %vm3354, %v3589, 0.0
  %v3673 = vadd.f32 %v3671, %v3672
  %v3674 = vsel %vm3354, %v3590, 0.0
  %v3675 = vadd.f32 %v3673, %v3674
  %v3676 = vsel %vm3354, %v3591, 0.0
  %v3677 = vadd.f32 %v3675, %v3676
  %v3678 = vsel %vm3354, %v3592, 0.0
  %v3679 = vadd.f32 %v3677, %v3678
  %v3680 = vsel %vm3354, %v3593, 0.0
  %v3681 = vadd.f32 %v3679, %v3680
  %v3682 = vsel %vm3354, %v3594, 0.0
  %v3683 = vadd.f32 %v3681, %v3682
  %v3684 = vsel %vm3354, %v3595, 0.0
  %v3685 = vadd.f32 %v3683, %v3684
  %v3686 = vsel %vm3354, %v3596, 0.0
  %v3687 = vadd.f32 %v3685, %v3686
  %v3688 = vsel %vm3354, %v3597, 0.0
  %v3689 = vadd.f32 %v3687, %v3688
  %v3690 = vsel %vm3354, %v3598, 0.0
  %v3691 = vadd.f32 %v3689, %v3690
  %v3692 = vsel %vm3354, %v3599, 0.0
  %v3693 = vadd.f32 %v3691, %v3692
  %v3694 = vsel %vm3354, %v3600, 0.0
  %v3695 = vadd.f32 %v3693, %v3694
  %v3696 = vsel %vm3354, %v3601, 0.0
  %v3697 = vadd.f32 %v3695, %v3696
  %v3698 = vsel %vm3354, %v3602, 0.0
  %v3699 = vadd.f32 %v3697, %v3698
  %v3700 = vsel %vm3354, %v3603, 0.0
  %v3701 = vadd.f32 %v3699, %v3700
  %v3702 = vsel %vm3354, %v3604, 0.0
  %v3703 = vadd.f32 %v3701, %v3702
  %v3704 = vsel %vm3354, %v3605, 0.0
  %v3705 = vadd.f32 %v3703, %v3704
  %v3706 = vsel %vm3354, %v3606, 0.0
  %v3707 = vadd.f32 %v3705, %v3706
  %v3708 = vsel %vm3354, %v3607, 0.0
  %v3709 = vadd.f32 %v3707, %v3708
  %v3710 = vsel %vm3354, %v3608, 0.0
  %v3711 = vadd.f32 %v3709, %v3710
  %v3712 = vsel %vm3354, %v3609, 0.0
  %v3713 = vadd.f32 %v3711, %v3712
  %v3714 = vsel %vm3354, %v3610, 0.0
  %v3715 = vadd.f32 %v3713, %v3714
  %v3716 = vsel %vm3354, %v3611, 0.0
  %v3717 = vadd.f32 %v3715, %v3716
  %v3718 = vsel %vm3354, %v3612, 0.0
  %v3719 = vadd.f32 %v3717, %v3718
  %v3720 = vsel %vm3354, %v3613, 0.0
  %v3721 = vadd.f32 %v3719, %v3720
  %v3722 = vsel %vm3354, %v3614, 0.0
  %v3723 = vadd.f32 %v3721, %v3722
  %v3724 = vsel %vm3354, %v3615, 0.0
  %v3725 = vadd.f32 %v3723, %v3724
  %v3726 = vsel %vm3354, %v3616, 0.0
  %v3727 = vadd.f32 %v3725, %v3726
  %v3728 = vsel %vm3354, %v3617, 0.0
  %v3729 = vadd.f32 %v3727, %v3728
  %v3730 = vsel %vm3354, %v3618, 0.0
  %v3731 = vadd.f32 %v3729, %v3730
  %v3732 = vsel %vm3354, %v3619, 0.0
  %v3733 = vadd.f32 %v3731, %v3732
  %v3734 = vsel %vm3354, %v3620, 0.0
  %v3735 = vadd.f32 %v3733, %v3734
  %v3736 = vsel %vm3354, %v3621, 0.0
  %v3737 = vadd.f32 %v3735, %v3736
  %v3738 = vsel %vm3354, %v3622, 0.0
  %v3739 = vadd.f32 %v3737, %v3738
  %v3740 = vsel %vm3354, %v3623, 0.0
  %v3741 = vadd.f32 %v3739, %v3740
  %v3742 = vsel %vm3354, %v3624, 0.0
  %v3743 = vadd.f32 %v3741, %v3742
  %v3744 = vsel %vm3354, %v3625, 0.0
  %v3745 = vadd.f32 %v3743, %v3744
  %v3746 = vsel %vm3354, %v3626, 0.0
  %v3747 = vadd.f32 %v3745, %v3746
  %v3748 = vsel %vm3354, %v3627, 0.0
  %v3749 = vadd.f32 %v3747, %v3748
  %v3750 = vsel %vm3354, %v3628, 0.0
  %v3751 = vadd.f32 %v3749, %v3750
  %v3752 = vsel %vm3354, %v3629, 0.0
  %v3753 = vadd.f32 %v3751, %v3752
  %v3754 = vsel %vm3354, %v3630, 0.0
  %v3755 = vadd.f32 %v3753, %v3754
  %v3756 = vsel %vm3354, %v3631, 0.0
  %v3757 = vadd.f32 %v3755, %v3756
  %v3758 = vsel %vm3354, %v3632, 0.0
  %v3759 = vadd.f32 %v3757, %v3758
  %v3760 = vmul.f32 %v3759, %v3488
  %v3761 = vsel %vm3354, %v3760, 0.0
  %v3762 = vrot.slane %v3761, 4
  %v3763 = vadd.f32 %v3761, %v3762
  %v3764 = vrot.slane %v3763, 2
  %v3765 = vadd.f32 %v3763, %v3764
  %v3766 = vrot.slane %v3765, 1
  %v3767 = vadd.f32 %v3765, %v3766
  %v3768 = vmul.f32 %v3767, %v3503
  %s3769 = scalar_lea.vmem %s2, 1
  %v3770 = vld [vmem:[%s3769] sm:$0x1]
  %v3771 = vadd.f32 %v3768, 1e-05
  %v3772 = vrsqrt.pop %v3771
  %v3773 = vmul.f32 %v3772, %v3771
  %v3774 = vmul.f32 %v3773, %v3772
  %v3775 = vmul.f32 0.5, %v3774
  %v3776 = vsub.f32 1.5, %v3775
  %v3777 = vmul.f32 %v3772, %v3776
  %vm3778 = vweird.f32 %v3771
  %vm3779 = vweird.f32 %v3772
  %vm3780 = vmor %vm3778, %vm3779
  %v3781 = vsel %vm3780, %v3772, %v3777
  %v3782 = vmul.f32 %v3770, %v3781
  %s3783 = scalar_lea.vmem %s2, 2
  %v3784 = vld [vmem:[%s3783] sm:$0x1]
  %v3785 = vmul.f32 %v3504, %v3782
  %v3786 = vsub.f32 %v3784, %v3785
  %v3788 = vperm.slane %v3782, 0
  %v3790 = vmul.f32 %v3290, %v3788
  %v3791 = vmul.f32 %v3291, %v3788
  %v3792 = vmul.f32 %v3292, %v3788
  %v3793 = vmul.f32 %v3293, %v3788
  %v3794 = vmul.f32 %v3294, %v3788
  %v3795 = vmul.f32 %v3295, %v3788
  %v3796 = vmul.f32 %v3296, %v3788
  %v3797 = vmul.f32 %v3297, %v3788
  %v3798 = vmul.f32 %v3298, %v3788
  %v3799 = vmul.f32 %v3299, %v3788
  %v3800 = vmul.f32 %v3300, %v3788
  %v3801 = vmul.f32 %v3301, %v3788
  %v3802 = vmul.f32 %v3302, %v3788
  %v3803 = vmul.f32 %v3303, %v3788
  %v3804 = vmul.f32 %v3304, %v3788
  %v3805 = vmul.f32 %v3305, %v3788
  %v3806 = vmul.f32 %v3306, %v3788
  %v3807 = vmul.f32 %v3307, %v3788
  %v3808 = vmul.f32 %v3308, %v3788
  %v3809 = vmul.f32 %v3309, %v3788
  %v3810 = vmul.f32 %v3310, %v3788
  %v3811 = vmul.f32 %v3311, %v3788
  %v3812 = vmul.f32 %v3312, %v3788
  %v3813 = vmul.f32 %v3313, %v3788
  %v3814 = vmul.f32 %v3314, %v3788
  %v3815 = vmul.f32 %v3315, %v3788
  %v3816 = vmul.f32 %v3316, %v3788
  %v3817 = vmul.f32 %v3317, %v3788
  %v3818 = vmul.f32 %v3318, %v3788
  %v3819 = vmul.f32 %v3319, %v3788
  %v3820 = vmul.f32 %v3320, %v3788
  %v3821 = vmul.f32 %v3321, %v3788
  %v3822 = vmul.f32 %v3322, %v3788
  %v3823 = vmul.f32 %v3323, %v3788
  %v3824 = vmul.f32 %v3324, %v3788
  %v3825 = vmul.f32 %v3325, %v3788
  %v3826 = vmul.f32 %v3326, %v3788
  %v3827 = vmul.f32 %v3327, %v3788
  %v3828 = vmul.f32 %v3328, %v3788
  %v3829 = vmul.f32 %v3329, %v3788
  %v3830 = vmul.f32 %v3330, %v3788
  %v3831 = vmul.f32 %v3331, %v3788
  %v3832 = vmul.f32 %v3332, %v3788
  %v3833 = vmul.f32 %v3333, %v3788
  %v3834 = vmul.f32 %v3334, %v3788
  %v3835 = vmul.f32 %v3335, %v3788
  %v3836 = vmul.f32 %v3336, %v3788
  %v3837 = vmul.f32 %v3337, %v3788
  %v3838 = vmul.f32 %v3338, %v3788
  %v3839 = vmul.f32 %v3339, %v3788
  %v3840 = vmul.f32 %v3340, %v3788
  %v3841 = vmul.f32 %v3341, %v3788
  %v3842 = vmul.f32 %v3342, %v3788
  %v3843 = vmul.f32 %v3343, %v3788
  %v3844 = vmul.f32 %v3344, %v3788
  %v3845 = vmul.f32 %v3345, %v3788
  %v3846 = vmul.f32 %v3346, %v3788
  %v3847 = vmul.f32 %v3347, %v3788
  %v3848 = vmul.f32 %v3348, %v3788
  %v3849 = vmul.f32 %v3349, %v3788
  %v3850 = vmul.f32 %v3350, %v3788
  %v3851 = vmul.f32 %v3351, %v3788
  %v3852 = vmul.f32 %v3352, %v3788
  %v3853 = vmul.f32 %v3353, %v3788
  %v3855 = vperm.slane %v3786, 0
  %v3857 = vadd.f32 %v3790, %v3855
  %v3858 = vadd.f32 %v3791, %v3855
  %v3859 = vadd.f32 %v3792, %v3855
  %v3860 = vadd.f32 %v3793, %v3855
  %v3861 = vadd.f32 %v3794, %v3855
  %v3862 = vadd.f32 %v3795, %v3855
  %v3863 = vadd.f32 %v3796, %v3855
  %v3864 = vadd.f32 %v3797, %v3855
  %v3865 = vadd.f32 %v3798, %v3855
  %v3866 = vadd.f32 %v3799, %v3855
  %v3867 = vadd.f32 %v3800, %v3855
  %v3868 = vadd.f32 %v3801, %v3855
  %v3869 = vadd.f32 %v3802, %v3855
  %v3870 = vadd.f32 %v3803, %v3855
  %v3871 = vadd.f32 %v3804, %v3855
  %v3872 = vadd.f32 %v3805, %v3855
  %v3873 = vadd.f32 %v3806, %v3855
  %v3874 = vadd.f32 %v3807, %v3855
  %v3875 = vadd.f32 %v3808, %v3855
  %v3876 = vadd.f32 %v3809, %v3855
  %v3877 = vadd.f32 %v3810, %v3855
  %v3878 = vadd.f32 %v3811, %v3855
  %v3879 = vadd.f32 %v3812, %v3855
  %v3880 = vadd.f32 %v3813, %v3855
  %v3881 = vadd.f32 %v3814, %v3855
  %v3882 = vadd.f32 %v3815, %v3855
  %v3883 = vadd.f32 %v3816, %v3855
  %v3884 = vadd.f32 %v3817, %v3855
  %v3885 = vadd.f32 %v3818, %v3855
  %v3886 = vadd.f32 %v3819, %v3855
  %v3887 = vadd.f32 %v3820, %v3855
  %v3888 = vadd.f32 %v3821, %v3855
  %v3889 = vadd.f32 %v3822, %v3855
  %v3890 = vadd.f32 %v3823, %v3855
  %v3891 = vadd.f32 %v3824, %v3855
  %v3892 = vadd.f32 %v3825, %v3855
  %v3893 = vadd.f32 %v3826, %v3855
  %v3894 = vadd.f32 %v3827, %v3855
  %v3895 = vadd.f32 %v3828, %v3855
  %v3896 = vadd.f32 %v3829, %v3855
  %v3897 = vadd.f32 %v3830, %v3855
  %v3898 = vadd.f32 %v3831, %v3855
  %v3899 = vadd.f32 %v3832, %v3855
  %v3900 = vadd.f32 %v3833, %v3855
  %v3901 = vadd.f32 %v3834, %v3855
  %v3902 = vadd.f32 %v3835, %v3855
  %v3903 = vadd.f32 %v3836, %v3855
  %v3904 = vadd.f32 %v3837, %v3855
  %v3905 = vadd.f32 %v3838, %v3855
  %v3906 = vadd.f32 %v3839, %v3855
  %v3907 = vadd.f32 %v3840, %v3855
  %v3908 = vadd.f32 %v3841, %v3855
  %v3909 = vadd.f32 %v3842, %v3855
  %v3910 = vadd.f32 %v3843, %v3855
  %v3911 = vadd.f32 %v3844, %v3855
  %v3912 = vadd.f32 %v3845, %v3855
  %v3913 = vadd.f32 %v3846, %v3855
  %v3914 = vadd.f32 %v3847, %v3855
  %v3915 = vadd.f32 %v3848, %v3855
  %v3916 = vadd.f32 %v3849, %v3855
  %v3917 = vadd.f32 %v3850, %v3855
  %v3918 = vadd.f32 %v3851, %v3855
  %v3919 = vadd.f32 %v3852, %v3855
  %v3920 = vadd.f32 %v3853, %v3855
  %v3921 = vpack.c.bf16 %v3857, %v3857
  %v3922 = vpack.c.bf16 %v3858, %v3858
  %v3923 = vpack.c.bf16 %v3859, %v3859
  %v3924 = vpack.c.bf16 %v3860, %v3860
  %v3925 = vpack.c.bf16 %v3861, %v3861
  %v3926 = vpack.c.bf16 %v3862, %v3862
  %v3927 = vpack.c.bf16 %v3863, %v3863
  %v3928 = vpack.c.bf16 %v3864, %v3864
  %v3929 = vpack.c.bf16 %v3865, %v3865
  %v3930 = vpack.c.bf16 %v3866, %v3866
  %v3931 = vpack.c.bf16 %v3867, %v3867
  %v3932 = vpack.c.bf16 %v3868, %v3868
  %v3933 = vpack.c.bf16 %v3869, %v3869
  %v3934 = vpack.c.bf16 %v3870, %v3870
  %v3935 = vpack.c.bf16 %v3871, %v3871
  %v3936 = vpack.c.bf16 %v3872, %v3872
  %v3937 = vpack.c.bf16 %v3873, %v3873
  %v3938 = vpack.c.bf16 %v3874, %v3874
  %v3939 = vpack.c.bf16 %v3875, %v3875
  %v3940 = vpack.c.bf16 %v3876, %v3876
  %v3941 = vpack.c.bf16 %v3877, %v3877
  %v3942 = vpack.c.bf16 %v3878, %v3878
  %v3943 = vpack.c.bf16 %v3879, %v3879
  %v3944 = vpack.c.bf16 %v3880, %v3880
  %v3945 = vpack.c.bf16 %v3881, %v3881
  %v3946 = vpack.c.bf16 %v3882, %v3882
  %v3947 = vpack.c.bf16 %v3883, %v3883
  %v3948 = vpack.c.bf16 %v3884, %v3884
  %v3949 = vpack.c.bf16 %v3885, %v3885
  %v3950 = vpack.c.bf16 %v3886, %v3886
  %v3951 = vpack.c.bf16 %v3887, %v3887
  %v3952 = vpack.c.bf16 %v3888, %v3888
  %v3953 = vpack.c.bf16 %v3889, %v3889
  %v3954 = vpack.c.bf16 %v3890, %v3890
  %v3955 = vpack.c.bf16 %v3891, %v3891
  %v3956 = vpack.c.bf16 %v3892, %v3892
  %v3957 = vpack.c.bf16 %v3893, %v3893
  %v3958 = vpack.c.bf16 %v3894, %v3894
  %v3959 = vpack.c.bf16 %v3895, %v3895
  %v3960 = vpack.c.bf16 %v3896, %v3896
  %v3961 = vpack.c.bf16 %v3897, %v3897
  %v3962 = vpack.c.bf16 %v3898, %v3898
  %v3963 = vpack.c.bf16 %v3899, %v3899
  %v3964 = vpack.c.bf16 %v3900, %v3900
  %v3965 = vpack.c.bf16 %v3901, %v3901
  %v3966 = vpack.c.bf16 %v3902, %v3902
  %v3967 = vpack.c.bf16 %v3903, %v3903
  %v3968 = vpack.c.bf16 %v3904, %v3904
  %v3969 = vpack.c.bf16 %v3905, %v3905
  %v3970 = vpack.c.bf16 %v3906, %v3906
  %v3971 = vpack.c.bf16 %v3907, %v3907
  %v3972 = vpack.c.bf16 %v3908, %v3908
  %v3973 = vpack.c.bf16 %v3909, %v3909
  %v3974 = vpack.c.bf16 %v3910, %v3910
  %v3975 = vpack.c.bf16 %v3911, %v3911
  %v3976 = vpack.c.bf16 %v3912, %v3912
  %v3977 = vpack.c.bf16 %v3913, %v3913
  %v3978 = vpack.c.bf16 %v3914, %v3914
  %v3979 = vpack.c.bf16 %v3915, %v3915
  %v3980 = vpack.c.bf16 %v3916, %v3916
  %v3981 = vpack.c.bf16 %v3917, %v3917
  %v3982 = vpack.c.bf16 %v3918, %v3918
  %v3983 = vpack.c.bf16 %v3919, %v3919
  %v3984 = vpack.c.bf16 %v3920, %v3920
  %v3985 = vld [vmem:[%s3] sm:$0xf]
  %v3986 = vld [vmem:[%s3 + $0x4] sm:$0xf]
  %v3987 = vld [vmem:[%s3 + $0x8] sm:$0xf]
  %v3988 = vld [vmem:[%s3 + $0xc] sm:$0xf]
  %v3989 = vld [vmem:[%s3 + $0x10] sm:$0xf]
  %v3990 = vld [vmem:[%s3 + $0x14] sm:$0xf]
  %v3991 = vld [vmem:[%s3 + $0x18] sm:$0xf]
  %v3992 = vld [vmem:[%s3 + $0x1c] sm:$0xf]
  %v3993 = vld [vmem:[%s3 + $0x20] sm:$0xf]
  %v3994 = vld [vmem:[%s3 + $0x24] sm:$0xf]
  %v3995 = vld [vmem:[%s3 + $0x28] sm:$0xf]
  %v3996 = vld [vmem:[%s3 + $0x2c] sm:$0xf]
  %v3997 = vld [vmem:[%s3 + $0x30] sm:$0xf]
  %v3998 = vld [vmem:[%s3 + $0x34] sm:$0xf]
  %v3999 = vld [vmem:[%s3 + $0x38] sm:$0xf]
  %v4000 = vld [vmem:[%s3 + $0x3c] sm:$0xf]
  %v4001 = vld [vmem:[%s3 + $0x40] sm:$0xf]
  %v4002 = vld [vmem:[%s3 + $0x44] sm:$0xf]
  %v4003 = vld [vmem:[%s3 + $0x48] sm:$0xf]
  %v4004 = vld [vmem:[%s3 + $0x4c] sm:$0xf]
  %v4005 = vld [vmem:[%s3 + $0x50] sm:$0xf]
  %v4006 = vld [vmem:[%s3 + $0x54] sm:$0xf]
  %v4007 = vld [vmem:[%s3 + $0x58] sm:$0xf]
  %v4008 = vld [vmem:[%s3 + $0x5c] sm:$0xf]
  %v4009 = vld [vmem:[%s3 + $0x60] sm:$0xf]
  %v4010 = vld [vmem:[%s3 + $0x64] sm:$0xf]
  %v4011 = vld [vmem:[%s3 + $0x68] sm:$0xf]
  %v4012 = vld [vmem:[%s3 + $0x6c] sm:$0xf]
  %v4013 = vld [vmem:[%s3 + $0x70] sm:$0xf]
  %v4014 = vld [vmem:[%s3 + $0x74] sm:$0xf]
  %v4015 = vld [vmem:[%s3 + $0x78] sm:$0xf]
  %v4016 = vld [vmem:[%s3 + $0x7c] sm:$0xf]
  %v4017 = vld [vmem:[%s3 + $0x80] sm:$0xf]
  %v4018 = vld [vmem:[%s3 + $0x84] sm:$0xf]
  %v4019 = vld [vmem:[%s3 + $0x88] sm:$0xf]
  %v4020 = vld [vmem:[%s3 + $0x8c] sm:$0xf]
  %v4021 = vld [vmem:[%s3 + $0x90] sm:$0xf]
  %v4022 = vld [vmem:[%s3 + $0x94] sm:$0xf]
  %v4023 = vld [vmem:[%s3 + $0x98] sm:$0xf]
  %v4024 = vld [vmem:[%s3 + $0x9c] sm:$0xf]
  %v4025 = vld [vmem:[%s3 + $0xa0] sm:$0xf]
  %v4026 = vld [vmem:[%s3 + $0xa4] sm:$0xf]
  %v4027 = vld [vmem:[%s3 + $0xa8] sm:$0xf]
  %v4028 = vld [vmem:[%s3 + $0xac] sm:$0xf]
  %v4029 = vld [vmem:[%s3 + $0xb0] sm:$0xf]
  %v4030 = vld [vmem:[%s3 + $0xb4] sm:$0xf]
  %v4031 = vld [vmem:[%s3 + $0xb8] sm:$0xf]
  %v4032 = vld [vmem:[%s3 + $0xbc] sm:$0xf]
  %v4033 = vld [vmem:[%s3 + $0xc0] sm:$0xf]
  %v4034 = vld [vmem:[%s3 + $0xc4] sm:$0xf]
  %v4035 = vld [vmem:[%s3 + $0xc8] sm:$0xf]
  %v4036 = vld [vmem:[%s3 + $0xcc] sm:$0xf]
  %v4037 = vld [vmem:[%s3 + $0xd0] sm:$0xf]
  %v4038 = vld [vmem:[%s3 + $0xd4] sm:$0xf]
  %v4039 = vld [vmem:[%s3 + $0xd8] sm:$0xf]
  %v4040 = vld [vmem:[%s3 + $0xdc] sm:$0xf]
  %v4041 = vld [vmem:[%s3 + $0xe0] sm:$0xf]
  %v4042 = vld [vmem:[%s3 + $0xe4] sm:$0xf]
  %v4043 = vld [vmem:[%s3 + $0xe8] sm:$0xf]
  %v4044 = vld [vmem:[%s3 + $0xec] sm:$0xf]
  %v4045 = vld [vmem:[%s3 + $0xf0] sm:$0xf]
  %v4046 = vld [vmem:[%s3 + $0xf4] sm:$0xf]
  %v4047 = vld [vmem:[%s3 + $0xf8] sm:$0xf]
  %v4048 = vld [vmem:[%s3 + $0xfc] sm:$0xf]
  %v4049 = vld [vmem:[%s3 + $0x100] sm:$0xf]
  %v4050 = vld [vmem:[%s3 + $0x104] sm:$0xf]
  %v4051 = vld [vmem:[%s3 + $0x108] sm:$0xf]
  %v4052 = vld [vmem:[%s3 + $0x10c] sm:$0xf]
  %v4053 = vld [vmem:[%s3 + $0x110] sm:$0xf]
  %v4054 = vld [vmem:[%s3 + $0x114] sm:$0xf]
  %v4055 = vld [vmem:[%s3 + $0x118] sm:$0xf]
  %v4056 = vld [vmem:[%s3 + $0x11c] sm:$0xf]
  %v4057 = vld [vmem:[%s3 + $0x120] sm:$0xf]
  %v4058 = vld [vmem:[%s3 + $0x124] sm:$0xf]
  %v4059 = vld [vmem:[%s3 + $0x128] sm:$0xf]
  %v4060 = vld [vmem:[%s3 + $0x12c] sm:$0xf]
  %v4061 = vld [vmem:[%s3 + $0x130] sm:$0xf]
  %v4062 = vld [vmem:[%s3 + $0x134] sm:$0xf]
  %v4063 = vld [vmem:[%s3 + $0x138] sm:$0xf]
  %v4064 = vld [vmem:[%s3 + $0x13c] sm:$0xf]
  %v4065 = vld [vmem:[%s3 + $0x140] sm:$0xf]
  %v4066 = vld [vmem:[%s3 + $0x144] sm:$0xf]
  %v4067 = vld [vmem:[%s3 + $0x148] sm:$0xf]
  %v4068 = vld [vmem:[%s3 + $0x14c] sm:$0xf]
  %v4069 = vld [vmem:[%s3 + $0x150] sm:$0xf]
  %v4070 = vld [vmem:[%s3 + $0x154] sm:$0xf]
  %v4071 = vld [vmem:[%s3 + $0x158] sm:$0xf]
  %v4072 = vld [vmem:[%s3 + $0x15c] sm:$0xf]
  %v4073 = vld [vmem:[%s3 + $0x160] sm:$0xf]
  %v4074 = vld [vmem:[%s3 + $0x164] sm:$0xf]
  %v4075 = vld [vmem:[%s3 + $0x168] sm:$0xf]
  %v4076 = vld [vmem:[%s3 + $0x16c] sm:$0xf]
  %v4077 = vld [vmem:[%s3 + $0x170] sm:$0xf]
  %v4078 = vld [vmem:[%s3 + $0x174] sm:$0xf]
  %v4079 = vld [vmem:[%s3 + $0x178] sm:$0xf]
  %v4080 = vld [vmem:[%s3 + $0x17c] sm:$0xf]
  %v4081 = vld [vmem:[%s3 + $0x180] sm:$0xf]
  %v4082 = vld [vmem:[%s3 + $0x184] sm:$0xf]
  %v4083 = vld [vmem:[%s3 + $0x188] sm:$0xf]
  %v4084 = vld [vmem:[%s3 + $0x18c] sm:$0xf]
  %v4085 = vld [vmem:[%s3 + $0x190] sm:$0xf]
  %v4086 = vld [vmem:[%s3 + $0x194] sm:$0xf]
  %v4087 = vld [vmem:[%s3 + $0x198] sm:$0xf]
  %v4088 = vld [vmem:[%s3 + $0x19c] sm:$0xf]
  %v4089 = vld [vmem:[%s3 + $0x1a0] sm:$0xf]
  %v4090 = vld [vmem:[%s3 + $0x1a4] sm:$0xf]
  %v4091 = vld [vmem:[%s3 + $0x1a8] sm:$0xf]
  %v4092 = vld [vmem:[%s3 + $0x1ac] sm:$0xf]
  %v4093 = vld [vmem:[%s3 + $0x1b0] sm:$0xf]
  %v4094 = vld [vmem:[%s3 + $0x1b4] sm:$0xf]
  %v4095 = vld [vmem:[%s3 + $0x1b8] sm:$0xf]
  %v4096 = vld [vmem:[%s3 + $0x1bc] sm:$0xf]
  %v4097 = vld [vmem:[%s3 + $0x1c0] sm:$0xf]
  %v4098 = vld [vmem:[%s3 + $0x1c4] sm:$0xf]
  %v4099 = vld [vmem:[%s3 + $0x1c8] sm:$0xf]
  %v4100 = vld [vmem:[%s3 + $0x1cc] sm:$0xf]
  %v4101 = vld [vmem:[%s3 + $0x1d0] sm:$0xf]
  %v4102 = vld [vmem:[%s3 + $0x1d4] sm:$0xf]
  %v4103 = vld [vmem:[%s3 + $0x1d8] sm:$0xf]
  %v4104 = vld [vmem:[%s3 + $0x1dc] sm:$0xf]
  %v4105 = vld [vmem:[%s3 + $0x1e0] sm:$0xf]
  %v4106 = vld [vmem:[%s3 + $0x1e4] sm:$0xf]
  %v4107 = vld [vmem:[%s3 + $0x1e8] sm:$0xf]
  %v4108 = vld [vmem:[%s3 + $0x1ec] sm:$0xf]
  %v4109 = vld [vmem:[%s3 + $0x1f0] sm:$0xf]
  %v4110 = vld [vmem:[%s3 + $0x1f4] sm:$0xf]
  %v4111 = vld [vmem:[%s3 + $0x1f8] sm:$0xf]
  %v4112 = vld [vmem:[%s3 + $0x1fc] sm:$0xf]
  %v4115 = vunpack.c.l.b16 %v3985
  %v4116 = vunpack.c.l.b16 %v3986
  %v4117 = vpack.c.b16 %v4116, %v4115
  %vm4119 = vcmask 130048
  %v4121 = vsel %vm4119, %v3921, 0
  %4123 = vmatpush.bf16.msra.mxu0 0
  %4124 = vmatpush.bf16.msra.mxu0 0
  %4125 = vmatpush.bf16.msra.mxu0 0
  %4126 = vmatpush.bf16.msra.mxu0 0
  %4127 = vmatpush.bf16.msra.mxu0 0
  %4128 = vmatpush.bf16.msra.mxu0 0
  %4129 = vmatpush.bf16.msra.mxu0 0
  %4130 = vmatpush.bf16.msra.mxu0 %v4117
  %4131 = vmatmul.bf16.gmra.mxu0 %v4121
  %v4132 = vpop.f32.mrf.mxu0
  %v4133 = vadd.f32 0.0, %v4132
  %v4134 = vpop.f32.mrf.mxu0
  %4135 = vdwg.mxu0
  %v4138 = vunpack.c.l.b16 %v3987
  %v4139 = vunpack.c.l.b16 %v3988
  %v4140 = vpack.c.b16 %v4139, %v4138
  %v4143 = vsel %vm4119, %v3922, 0
  %4145 = vmatpush.bf16.msra.mxu0 0
  %4146 = vmatpush.bf16.msra.mxu0 0
  %4147 = vmatpush.bf16.msra.mxu0 0
  %4148 = vmatpush.bf16.msra.mxu0 0
  %4149 = vmatpush.bf16.msra.mxu0 0
  %4150 = vmatpush.bf16.msra.mxu0 0
  %4151 = vmatpush.bf16.msra.mxu0 0
  %4152 = vmatpush.bf16.msra.mxu0 %v4140
  %4153 = vmatmul.bf16.gmra.mxu0 %v4143
  %v4154 = vpop.f32.mrf.mxu0
  %v4155 = vadd.f32 0.0, %v4154
  %v4156 = vpop.f32.mrf.mxu0
  %4157 = vdwg.mxu0
  %v4160 = vunpack.c.l.b16 %v3989
  %v4161 = vunpack.c.l.b16 %v3990
  %v4162 = vpack.c.b16 %v4161, %v4160
  %v4165 = vsel %vm4119, %v3923, 0
  %4167 = vmatpush.bf16.msra.mxu0 0
  %4168 = vmatpush.bf16.msra.mxu0 0
  %4169 = vmatpush.bf16.msra.mxu0 0
  %4170 = vmatpush.bf16.msra.mxu0 0
  %4171 = vmatpush.bf16.msra.mxu0 0
  %4172 = vmatpush.bf16.msra.mxu0 0
  %4173 = vmatpush.bf16.msra.mxu0 0
  %4174 = vmatpush.bf16.msra.mxu0 %v4162
  %4175 = vmatmul.bf16.gmra.mxu0 %v4165
  %v4176 = vpop.f32.mrf.mxu0
  %v4177 = vadd.f32 0.0, %v4176
  %v4178 = vpop.f32.mrf.mxu0
  %4179 = vdwg.mxu0
  %v4182 = vunpack.c.l.b16 %v3991
  %v4183 = vunpack.c.l.b16 %v3992
  %v4184 = vpack.c.b16 %v4183, %v4182
  %v4187 = vsel %vm4119, %v3924, 0
  %4189 = vmatpush.bf16.msra.mxu0 0
  %4190 = vmatpush.bf16.msra.mxu0 0
  %4191 = vmatpush.bf16.msra.mxu0 0
  %4192 = vmatpush.bf16.msra.mxu0 0
  %4193 = vmatpush.bf16.msra.mxu0 0
  %4194 = vmatpush.bf16.msra.mxu0 0
  %4195 = vmatpush.bf16.msra.mxu0 0
  %4196 = vmatpush.bf16.msra.mxu0 %v4184
  %4197 = vmatmul.bf16.gmra.mxu0 %v4187
  %v4198 = vpop.f32.mrf.mxu0
  %v4199 = vadd.f32 0.0, %v4198
  %v4200 = vpop.f32.mrf.mxu0
  %4201 = vdwg.mxu0
  %v4204 = vunpack.c.l.b16 %v3993
  %v4205 = vunpack.c.l.b16 %v3994
  %v4206 = vpack.c.b16 %v4205, %v4204
  %v4209 = vsel %vm4119, %v3925, 0
  %4211 = vmatpush.bf16.msra.mxu0 0
  %4212 = vmatpush.bf16.msra.mxu0 0
  %4213 = vmatpush.bf16.msra.mxu0 0
  %4214 = vmatpush.bf16.msra.mxu0 0
  %4215 = vmatpush.bf16.msra.mxu0 0
  %4216 = vmatpush.bf16.msra.mxu0 0
  %4217 = vmatpush.bf16.msra.mxu0 0
  %4218 = vmatpush.bf16.msra.mxu0 %v4206
  %4219 = vmatmul.bf16.gmra.mxu0 %v4209
  %v4220 = vpop.f32.mrf.mxu0
  %v4221 = vadd.f32 0.0, %v4220
  %v4222 = vpop.f32.mrf.mxu0
  %4223 = vdwg.mxu0
  %v4226 = vunpack.c.l.b16 %v3995
  %v4227 = vunpack.c.l.b16 %v3996
  %v4228 = vpack.c.b16 %v4227, %v4226
  %v4231 = vsel %vm4119, %v3926, 0
  %4233 = vmatpush.bf16.msra.mxu0 0
  %4234 = vmatpush.bf16.msra.mxu0 0
  %4235 = vmatpush.bf16.msra.mxu0 0
  %4236 = vmatpush.bf16.msra.mxu0 0
  %4237 = vmatpush.bf16.msra.mxu0 0
  %4238 = vmatpush.bf16.msra.mxu0 0
  %4239 = vmatpush.bf16.msra.mxu0 0
  %4240 = vmatpush.bf16.msra.mxu0 %v4228
  %4241 = vmatmul.bf16.gmra.mxu0 %v4231
  %v4242 = vpop.f32.mrf.mxu0
  %v4243 = vadd.f32 0.0, %v4242
  %v4244 = vpop.f32.mrf.mxu0
  %4245 = vdwg.mxu0
  %v4248 = vunpack.c.l.b16 %v3997
  %v4249 = vunpack.c.l.b16 %v3998
  %v4250 = vpack.c.b16 %v4249, %v4248
  %v4253 = vsel %vm4119, %v3927, 0
  %4255 = vmatpush.bf16.msra.mxu0 0
  %4256 = vmatpush.bf16.msra.mxu0 0
  %4257 = vmatpush.bf16.msra.mxu0 0
  %4258 = vmatpush.bf16.msra.mxu0 0
  %4259 = vmatpush.bf16.msra.mxu0 0
  %4260 = vmatpush.bf16.msra.mxu0 0
  %4261 = vmatpush.bf16.msra.mxu0 0
  %4262 = vmatpush.bf16.msra.mxu0 %v4250
  %4263 = vmatmul.bf16.gmra.mxu0 %v4253
  %v4264 = vpop.f32.mrf.mxu0
  %v4265 = vadd.f32 0.0, %v4264
  %v4266 = vpop.f32.mrf.mxu0
  %4267 = vdwg.mxu0
  %v4270 = vunpack.c.l.b16 %v3999
  %v4271 = vunpack.c.l.b16 %v4000
  %v4272 = vpack.c.b16 %v4271, %v4270
  %v4275 = vsel %vm4119, %v3928, 0
  %4277 = vmatpush.bf16.msra.mxu0 0
  %4278 = vmatpush.bf16.msra.mxu0 0
  %4279 = vmatpush.bf16.msra.mxu0 0
  %4280 = vmatpush.bf16.msra.mxu0 0
  %4281 = vmatpush.bf16.msra.mxu0 0
  %4282 = vmatpush.bf16.msra.mxu0 0
  %4283 = vmatpush.bf16.msra.mxu0 0
  %4284 = vmatpush.bf16.msra.mxu0 %v4272
  %4285 = vmatmul.bf16.gmra.mxu0 %v4275
  %v4286 = vpop.f32.mrf.mxu0
  %v4287 = vadd.f32 0.0, %v4286
  %v4288 = vpop.f32.mrf.mxu0
  %4289 = vdwg.mxu0
  %v4292 = vunpack.c.l.b16 %v4001
  %v4293 = vunpack.c.l.b16 %v4002
  %v4294 = vpack.c.b16 %v4293, %v4292
  %v4297 = vsel %vm4119, %v3929, 0
  %4299 = vmatpush.bf16.msra.mxu0 0
  %4300 = vmatpush.bf16.msra.mxu0 0
  %4301 = vmatpush.bf16.msra.mxu0 0
  %4302 = vmatpush.bf16.msra.mxu0 0
  %4303 = vmatpush.bf16.msra.mxu0 0
  %4304 = vmatpush.bf16.msra.mxu0 0
  %4305 = vmatpush.bf16.msra.mxu0 0
  %4306 = vmatpush.bf16.msra.mxu0 %v4294
  %4307 = vmatmul.bf16.gmra.mxu0 %v4297
  %v4308 = vpop.f32.mrf.mxu0
  %v4309 = vadd.f32 0.0, %v4308
  %v4310 = vpop.f32.mrf.mxu0
  %4311 = vdwg.mxu0
  %v4314 = vunpack.c.l.b16 %v4003
  %v4315 = vunpack.c.l.b16 %v4004
  %v4316 = vpack.c.b16 %v4315, %v4314
  %v4319 = vsel %vm4119, %v3930, 0
  %4321 = vmatpush.bf16.msra.mxu0 0
  %4322 = vmatpush.bf16.msra.mxu0 0
  %4323 = vmatpush.bf16.msra.mxu0 0
  %4324 = vmatpush.bf16.msra.mxu0 0
  %4325 = vmatpush.bf16.msra.mxu0 0
  %4326 = vmatpush.bf16.msra.mxu0 0
  %4327 = vmatpush.bf16.msra.mxu0 0
  %4328 = vmatpush.bf16.msra.mxu0 %v4316
  %4329 = vmatmul.bf16.gmra.mxu0 %v4319
  %v4330 = vpop.f32.mrf.mxu0
  %v4331 = vadd.f32 0.0, %v4330
  %v4332 = vpop.f32.mrf.mxu0
  %4333 = vdwg.mxu0
  %v4336 = vunpack.c.l.b16 %v4005
  %v4337 = vunpack.c.l.b16 %v4006
  %v4338 = vpack.c.b16 %v4337, %v4336
  %v4341 = vsel %vm4119, %v3931, 0
  %4343 = vmatpush.bf16.msra.mxu0 0
  %4344 = vmatpush.bf16.msra.mxu0 0
  %4345 = vmatpush.bf16.msra.mxu0 0
  %4346 = vmatpush.bf16.msra.mxu0 0
  %4347 = vmatpush.bf16.msra.mxu0 0
  %4348 = vmatpush.bf16.msra.mxu0 0
  %4349 = vmatpush.bf16.msra.mxu0 0
  %4350 = vmatpush.bf16.msra.mxu0 %v4338
  %4351 = vmatmul.bf16.gmra.mxu0 %v4341
  %v4352 = vpop.f32.mrf.mxu0
  %v4353 = vadd.f32 0.0, %v4352
  %v4354 = vpop.f32.mrf.mxu0
  %4355 = vdwg.mxu0
  %v4358 = vunpack.c.l.b16 %v4007
  %v4359 = vunpack.c.l.b16 %v4008
  %v4360 = vpack.c.b16 %v4359, %v4358
  %v4363 = vsel %vm4119, %v3932, 0
  %4365 = vmatpush.bf16.msra.mxu0 0
  %4366 = vmatpush.bf16.msra.mxu0 0
  %4367 = vmatpush.bf16.msra.mxu0 0
  %4368 = vmatpush.bf16.msra.mxu0 0
  %4369 = vmatpush.bf16.msra.mxu0 0
  %4370 = vmatpush.bf16.msra.mxu0 0
  %4371 = vmatpush.bf16.msra.mxu0 0
  %4372 = vmatpush.bf16.msra.mxu0 %v4360
  %4373 = vmatmul.bf16.gmra.mxu0 %v4363
  %v4374 = vpop.f32.mrf.mxu0
  %v4375 = vadd.f32 0.0, %v4374
  %v4376 = vpop.f32.mrf.mxu0
  %4377 = vdwg.mxu0
  %v4380 = vunpack.c.l.b16 %v4009
  %v4381 = vunpack.c.l.b16 %v4010
  %v4382 = vpack.c.b16 %v4381, %v4380
  %v4385 = vsel %vm4119, %v3933, 0
  %4387 = vmatpush.bf16.msra.mxu0 0
  %4388 = vmatpush.bf16.msra.mxu0 0
  %4389 = vmatpush.bf16.msra.mxu0 0
  %4390 = vmatpush.bf16.msra.mxu0 0
  %4391 = vmatpush.bf16.msra.mxu0 0
  %4392 = vmatpush.bf16.msra.mxu0 0
  %4393 = vmatpush.bf16.msra.mxu0 0
  %4394 = vmatpush.bf16.msra.mxu0 %v4382
  %4395 = vmatmul.bf16.gmra.mxu0 %v4385
  %v4396 = vpop.f32.mrf.mxu0
  %v4397 = vadd.f32 0.0, %v4396
  %v4398 = vpop.f32.mrf.mxu0
  %4399 = vdwg.mxu0
  %v4402 = vunpack.c.l.b16 %v4011
  %v4403 = vunpack.c.l.b16 %v4012
  %v4404 = vpack.c.b16 %v4403, %v4402
  %v4407 = vsel %vm4119, %v3934, 0
  %4409 = vmatpush.bf16.msra.mxu0 0
  %4410 = vmatpush.bf16.msra.mxu0 0
  %4411 = vmatpush.bf16.msra.mxu0 0
  %4412 = vmatpush.bf16.msra.mxu0 0
  %4413 = vmatpush.bf16.msra.mxu0 0
  %4414 = vmatpush.bf16.msra.mxu0 0
  %4415 = vmatpush.bf16.msra.mxu0 0
  %4416 = vmatpush.bf16.msra.mxu0 %v4404
  %4417 = vmatmul.bf16.gmra.mxu0 %v4407
  %v4418 = vpop.f32.mrf.mxu0
  %v4419 = vadd.f32 0.0, %v4418
  %v4420 = vpop.f32.mrf.mxu0
  %4421 = vdwg.mxu0
  %v4424 = vunpack.c.l.b16 %v4013
  %v4425 = vunpack.c.l.b16 %v4014
  %v4426 = vpack.c.b16 %v4425, %v4424
  %v4429 = vsel %vm4119, %v3935, 0
  %4431 = vmatpush.bf16.msra.mxu0 0
  %4432 = vmatpush.bf16.msra.mxu0 0
  %4433 = vmatpush.bf16.msra.mxu0 0
  %4434 = vmatpush.bf16.msra.mxu0 0
  %4435 = vmatpush.bf16.msra.mxu0 0
  %4436 = vmatpush.bf16.msra.mxu0 0
  %4437 = vmatpush.bf16.msra.mxu0 0
  %4438 = vmatpush.bf16.msra.mxu0 %v4426
  %4439 = vmatmul.bf16.gmra.mxu0 %v4429
  %v4440 = vpop.f32.mrf.mxu0
  %v4441 = vadd.f32 0.0, %v4440
  %v4442 = vpop.f32.mrf.mxu0
  %4443 = vdwg.mxu0
  %v4446 = vunpack.c.l.b16 %v4015
  %v4447 = vunpack.c.l.b16 %v4016
  %v4448 = vpack.c.b16 %v4447, %v4446
  %v4451 = vsel %vm4119, %v3936, 0
  %4453 = vmatpush.bf16.msra.mxu0 0
  %4454 = vmatpush.bf16.msra.mxu0 0
  %4455 = vmatpush.bf16.msra.mxu0 0
  %4456 = vmatpush.bf16.msra.mxu0 0
  %4457 = vmatpush.bf16.msra.mxu0 0
  %4458 = vmatpush.bf16.msra.mxu0 0
  %4459 = vmatpush.bf16.msra.mxu0 0
  %4460 = vmatpush.bf16.msra.mxu0 %v4448
  %4461 = vmatmul.bf16.gmra.mxu0 %v4451
  %v4462 = vpop.f32.mrf.mxu0
  %v4463 = vadd.f32 0.0, %v4462
  %v4464 = vpop.f32.mrf.mxu0
  %4465 = vdwg.mxu0
  %v4468 = vunpack.c.l.b16 %v4017
  %v4469 = vunpack.c.l.b16 %v4018
  %v4470 = vpack.c.b16 %v4469, %v4468
  %v4473 = vsel %vm4119, %v3937, 0
  %4475 = vmatpush.bf16.msra.mxu0 0
  %4476 = vmatpush.bf16.msra.mxu0 0
  %4477 = vmatpush.bf16.msra.mxu0 0
  %4478 = vmatpush.bf16.msra.mxu0 0
  %4479 = vmatpush.bf16.msra.mxu0 0
  %4480 = vmatpush.bf16.msra.mxu0 0
  %4481 = vmatpush.bf16.msra.mxu0 0
  %4482 = vmatpush.bf16.msra.mxu0 %v4470
  %4483 = vmatmul.bf16.gmra.mxu0 %v4473
  %v4484 = vpop.f32.mrf.mxu0
  %v4485 = vadd.f32 0.0, %v4484
  %v4486 = vpop.f32.mrf.mxu0
  %4487 = vdwg.mxu0
  %v4490 = vunpack.c.l.b16 %v4019
  %v4491 = vunpack.c.l.b16 %v4020
  %v4492 = vpack.c.b16 %v4491, %v4490
  %v4495 = vsel %vm4119, %v3938, 0
  %4497 = vmatpush.bf16.msra.mxu0 0
  %4498 = vmatpush.bf16.msra.mxu0 0
  %4499 = vmatpush.bf16.msra.mxu0 0
  %4500 = vmatpush.bf16.msra.mxu0 0
  %4501 = vmatpush.bf16.msra.mxu0 0
  %4502 = vmatpush.bf16.msra.mxu0 0
  %4503 = vmatpush.bf16.msra.mxu0 0
  %4504 = vmatpush.bf16.msra.mxu0 %v4492
  %4505 = vmatmul.bf16.gmra.mxu0 %v4495
  %v4506 = vpop.f32.mrf.mxu0
  %v4507 = vadd.f32 0.0, %v4506
  %v4508 = vpop.f32.mrf.mxu0
  %4509 = vdwg.mxu0
  %v4512 = vunpack.c.l.b16 %v4021
  %v4513 = vunpack.c.l.b16 %v4022
  %v4514 = vpack.c.b16 %v4513, %v4512
  %v4517 = vsel %vm4119, %v3939, 0
  %4519 = vmatpush.bf16.msra.mxu0 0
  %4520 = vmatpush.bf16.msra.mxu0 0
  %4521 = vmatpush.bf16.msra.mxu0 0
  %4522 = vmatpush.bf16.msra.mxu0 0
  %4523 = vmatpush.bf16.msra.mxu0 0
  %4524 = vmatpush.bf16.msra.mxu0 0
  %4525 = vmatpush.bf16.msra.mxu0 0
  %4526 = vmatpush.bf16.msra.mxu0 %v4514
  %4527 = vmatmul.bf16.gmra.mxu0 %v4517
  %v4528 = vpop.f32.mrf.mxu0
  %v4529 = vadd.f32 0.0, %v4528
  %v4530 = vpop.f32.mrf.mxu0
  %4531 = vdwg.mxu0
  %v4534 = vunpack.c.l.b16 %v4023
  %v4535 = vunpack.c.l.b16 %v4024
  %v4536 = vpack.c.b16 %v4535, %v4534
  %v4539 = vsel %vm4119, %v3940, 0
  %4541 = vmatpush.bf16.msra.mxu0 0
  %4542 = vmatpush.bf16.msra.mxu0 0
  %4543 = vmatpush.bf16.msra.mxu0 0
  %4544 = vmatpush.bf16.msra.mxu0 0
  %4545 = vmatpush.bf16.msra.mxu0 0
  %4546 = vmatpush.bf16.msra.mxu0 0
  %4547 = vmatpush.bf16.msra.mxu0 0
  %4548 = vmatpush.bf16.msra.mxu0 %v4536
  %4549 = vmatmul.bf16.gmra.mxu0 %v4539
  %v4550 = vpop.f32.mrf.mxu0
  %v4551 = vadd.f32 0.0, %v4550
  %v4552 = vpop.f32.mrf.mxu0
  %4553 = vdwg.mxu0
  %v4556 = vunpack.c.l.b16 %v4025
  %v4557 = vunpack.c.l.b16 %v4026
  %v4558 = vpack.c.b16 %v4557, %v4556
  %v4561 = vsel %vm4119, %v3941, 0
  %4563 = vmatpush.bf16.msra.mxu0 0
  %4564 = vmatpush.bf16.msra.mxu0 0
  %4565 = vmatpush.bf16.msra.mxu0 0
  %4566 = vmatpush.bf16.msra.mxu0 0
  %4567 = vmatpush.bf16.msra.mxu0 0
  %4568 = vmatpush.bf16.msra.mxu0 0
  %4569 = vmatpush.bf16.msra.mxu0 0
  %4570 = vmatpush.bf16.msra.mxu0 %v4558
  %4571 = vmatmul.bf16.gmra.mxu0 %v4561
  %v4572 = vpop.f32.mrf.mxu0
  %v4573 = vadd.f32 0.0, %v4572
  %v4574 = vpop.f32.mrf.mxu0
  %4575 = vdwg.mxu0
  %v4578 = vunpack.c.l.b16 %v4027
  %v4579 = vunpack.c.l.b16 %v4028
  %v4580 = vpack.c.b16 %v4579, %v4578
  %v4583 = vsel %vm4119, %v3942, 0
  %4585 = vmatpush.bf16.msra.mxu0 0
  %4586 = vmatpush.bf16.msra.mxu0 0
  %4587 = vmatpush.bf16.msra.mxu0 0
  %4588 = vmatpush.bf16.msra.mxu0 0
  %4589 = vmatpush.bf16.msra.mxu0 0
  %4590 = vmatpush.bf16.msra.mxu0 0
  %4591 = vmatpush.bf16.msra.mxu0 0
  %4592 = vmatpush.bf16.msra.mxu0 %v4580
  %4593 = vmatmul.bf16.gmra.mxu0 %v4583
  %v4594 = vpop.f32.mrf.mxu0
  %v4595 = vadd.f32 0.0, %v4594
  %v4596 = vpop.f32.mrf.mxu0
  %4597 = vdwg.mxu0
  %v4600 = vunpack.c.l.b16 %v4029
  %v4601 = vunpack.c.l.b16 %v4030
  %v4602 = vpack.c.b16 %v4601, %v4600
  %v4605 = vsel %vm4119, %v3943, 0
  %4607 = vmatpush.bf16.msra.mxu0 0
  %4608 = vmatpush.bf16.msra.mxu0 0
  %4609 = vmatpush.bf16.msra.mxu0 0
  %4610 = vmatpush.bf16.msra.mxu0 0
  %4611 = vmatpush.bf16.msra.mxu0 0
  %4612 = vmatpush.bf16.msra.mxu0 0
  %4613 = vmatpush.bf16.msra.mxu0 0
  %4614 = vmatpush.bf16.msra.mxu0 %v4602
  %4615 = vmatmul.bf16.gmra.mxu0 %v4605
  %v4616 = vpop.f32.mrf.mxu0
  %v4617 = vadd.f32 0.0, %v4616
  %v4618 = vpop.f32.mrf.mxu0
  %4619 = vdwg.mxu0
  %v4622 = vunpack.c.l.b16 %v4031
  %v4623 = vunpack.c.l.b16 %v4032
  %v4624 = vpack.c.b16 %v4623, %v4622
  %v4627 = vsel %vm4119, %v3944, 0
  %4629 = vmatpush.bf16.msra.mxu0 0
  %4630 = vmatpush.bf16.msra.mxu0 0
  %4631 = vmatpush.bf16.msra.mxu0 0
  %4632 = vmatpush.bf16.msra.mxu0 0
  %4633 = vmatpush.bf16.msra.mxu0 0
  %4634 = vmatpush.bf16.msra.mxu0 0
  %4635 = vmatpush.bf16.msra.mxu0 0
  %4636 = vmatpush.bf16.msra.mxu0 %v4624
  %4637 = vmatmul.bf16.gmra.mxu0 %v4627
  %v4638 = vpop.f32.mrf.mxu0
  %v4639 = vadd.f32 0.0, %v4638
  %v4640 = vpop.f32.mrf.mxu0
  %4641 = vdwg.mxu0
  %v4644 = vunpack.c.l.b16 %v4033
  %v4645 = vunpack.c.l.b16 %v4034
  %v4646 = vpack.c.b16 %v4645, %v4644
  %v4649 = vsel %vm4119, %v3945, 0
  %4651 = vmatpush.bf16.msra.mxu0 0
  %4652 = vmatpush.bf16.msra.mxu0 0
  %4653 = vmatpush.bf16.msra.mxu0 0
  %4654 = vmatpush.bf16.msra.mxu0 0
  %4655 = vmatpush.bf16.msra.mxu0 0
  %4656 = vmatpush.bf16.msra.mxu0 0
  %4657 = vmatpush.bf16.msra.mxu0 0
  %4658 = vmatpush.bf16.msra.mxu0 %v4646
  %4659 = vmatmul.bf16.gmra.mxu0 %v4649
  %v4660 = vpop.f32.mrf.mxu0
  %v4661 = vadd.f32 0.0, %v4660
  %v4662 = vpop.f32.mrf.mxu0
  %4663 = vdwg.mxu0
  %v4666 = vunpack.c.l.b16 %v4035
  %v4667 = vunpack.c.l.b16 %v4036
  %v4668 = vpack.c.b16 %v4667, %v4666
  %v4671 = vsel %vm4119, %v3946, 0
  %4673 = vmatpush.bf16.msra.mxu0 0
  %4674 = vmatpush.bf16.msra.mxu0 0
  %4675 = vmatpush.bf16.msra.mxu0 0
  %4676 = vmatpush.bf16.msra.mxu0 0
  %4677 = vmatpush.bf16.msra.mxu0 0
  %4678 = vmatpush.bf16.msra.mxu0 0
  %4679 = vmatpush.bf16.msra.mxu0 0
  %4680 = vmatpush.bf16.msra.mxu0 %v4668
  %4681 = vmatmul.bf16.gmra.mxu0 %v4671
  %v4682 = vpop.f32.mrf.mxu0
  %v4683 = vadd.f32 0.0, %v4682
  %v4684 = vpop.f32.mrf.mxu0
  %4685 = vdwg.mxu0
  %v4688 = vunpack.c.l.b16 %v4037
  %v4689 = vunpack.c.l.b16 %v4038
  %v4690 = vpack.c.b16 %v4689, %v4688
  %v4693 = vsel %vm4119, %v3947, 0
  %4695 = vmatpush.bf16.msra.mxu0 0
  %4696 = vmatpush.bf16.msra.mxu0 0
  %4697 = vmatpush.bf16.msra.mxu0 0
  %4698 = vmatpush.bf16.msra.mxu0 0
  %4699 = vmatpush.bf16.msra.mxu0 0
  %4700 = vmatpush.bf16.msra.mxu0 0
  %4701 = vmatpush.bf16.msra.mxu0 0
  %4702 = vmatpush.bf16.msra.mxu0 %v4690
  %4703 = vmatmul.bf16.gmra.mxu0 %v4693
  %v4704 = vpop.f32.mrf.mxu0
  %v4705 = vadd.f32 0.0, %v4704
  %v4706 = vpop.f32.mrf.mxu0
  %4707 = vdwg.mxu0
  %v4710 = vunpack.c.l.b16 %v4039
  %v4711 = vunpack.c.l.b16 %v4040
  %v4712 = vpack.c.b16 %v4711, %v4710
  %v4715 = vsel %vm4119, %v3948, 0
  %4717 = vmatpush.bf16.msra.mxu0 0
  %4718 = vmatpush.bf16.msra.mxu0 0
  %4719 = vmatpush.bf16.msra.mxu0 0
  %4720 = vmatpush.bf16.msra.mxu0 0
  %4721 = vmatpush.bf16.msra.mxu0 0
  %4722 = vmatpush.bf16.msra.mxu0 0
  %4723 = vmatpush.bf16.msra.mxu0 0
  %4724 = vmatpush.bf16.msra.mxu0 %v4712
  %4725 = vmatmul.bf16.gmra.mxu0 %v4715
  %v4726 = vpop.f32.mrf.mxu0
  %v4727 = vadd.f32 0.0, %v4726
  %v4728 = vpop.f32.mrf.mxu0
  %4729 = vdwg.mxu0
  %v4732 = vunpack.c.l.b16 %v4041
  %v4733 = vunpack.c.l.b16 %v4042
  %v4734 = vpack.c.b16 %v4733, %v4732
  %v4737 = vsel %vm4119, %v3949, 0
  %4739 = vmatpush.bf16.msra.mxu0 0
  %4740 = vmatpush.bf16.msra.mxu0 0
  %4741 = vmatpush.bf16.msra.mxu0 0
  %4742 = vmatpush.bf16.msra.mxu0 0
  %4743 = vmatpush.bf16.msra.mxu0 0
  %4744 = vmatpush.bf16.msra.mxu0 0
  %4745 = vmatpush.bf16.msra.mxu0 0
  %4746 = vmatpush.bf16.msra.mxu0 %v4734
  %4747 = vmatmul.bf16.gmra.mxu0 %v4737
  %v4748 = vpop.f32.mrf.mxu0
  %v4749 = vadd.f32 0.0, %v4748
  %v4750 = vpop.f32.mrf.mxu0
  %4751 = vdwg.mxu0
  %v4754 = vunpack.c.l.b16 %v4043
  %v4755 = vunpack.c.l.b16 %v4044
  %v4756 = vpack.c.b16 %v4755, %v4754
  %v4759 = vsel %vm4119, %v3950, 0
  %4761 = vmatpush.bf16.msra.mxu0 0
  %4762 = vmatpush.bf16.msra.mxu0 0
  %4763 = vmatpush.bf16.msra.mxu0 0
  %4764 = vmatpush.bf16.msra.mxu0 0
  %4765 = vmatpush.bf16.msra.mxu0 0
  %4766 = vmatpush.bf16.msra.mxu0 0
  %4767 = vmatpush.bf16.msra.mxu0 0
  %4768 = vmatpush.bf16.msra.mxu0 %v4756
  %4769 = vmatmul.bf16.gmra.mxu0 %v4759
  %v4770 = vpop.f32.mrf.mxu0
  %v4771 = vadd.f32 0.0, %v4770
  %v4772 = vpop.f32.mrf.mxu0
  %4773 = vdwg.mxu0
  %v4776 = vunpack.c.l.b16 %v4045
  %v4777 = vunpack.c.l.b16 %v4046
  %v4778 = vpack.c.b16 %v4777, %v4776
  %v4781 = vsel %vm4119, %v3951, 0
  %4783 = vmatpush.bf16.msra.mxu0 0
  %4784 = vmatpush.bf16.msra.mxu0 0
  %4785 = vmatpush.bf16.msra.mxu0 0
  %4786 = vmatpush.bf16.msra.mxu0 0
  %4787 = vmatpush.bf16.msra.mxu0 0
  %4788 = vmatpush.bf16.msra.mxu0 0
  %4789 = vmatpush.bf16.msra.mxu0 0
  %4790 = vmatpush.bf16.msra.mxu0 %v4778
  %4791 = vmatmul.bf16.gmra.mxu0 %v4781
  %v4792 = vpop.f32.mrf.mxu0
  %v4793 = vadd.f32 0.0, %v4792
  %v4794 = vpop.f32.mrf.mxu0
  %4795 = vdwg.mxu0
  %v4798 = vunpack.c.l.b16 %v4047
  %v4799 = vunpack.c.l.b16 %v4048
  %v4800 = vpack.c.b16 %v4799, %v4798
  %v4803 = vsel %vm4119, %v3952, 0
  %4805 = vmatpush.bf16.msra.mxu0 0
  %4806 = vmatpush.bf16.msra.mxu0 0
  %4807 = vmatpush.bf16.msra.mxu0 0
  %4808 = vmatpush.bf16.msra.mxu0 0
  %4809 = vmatpush.bf16.msra.mxu0 0
  %4810 = vmatpush.bf16.msra.mxu0 0
  %4811 = vmatpush.bf16.msra.mxu0 0
  %4812 = vmatpush.bf16.msra.mxu0 %v4800
  %4813 = vmatmul.bf16.gmra.mxu0 %v4803
  %v4814 = vpop.f32.mrf.mxu0
  %v4815 = vadd.f32 0.0, %v4814
  %v4816 = vpop.f32.mrf.mxu0
  %4817 = vdwg.mxu0
  %v4820 = vunpack.c.l.b16 %v4049
  %v4821 = vunpack.c.l.b16 %v4050
  %v4822 = vpack.c.b16 %v4821, %v4820
  %v4825 = vsel %vm4119, %v3953, 0
  %4827 = vmatpush.bf16.msra.mxu0 0
  %4828 = vmatpush.bf16.msra.mxu0 0
  %4829 = vmatpush.bf16.msra.mxu0 0
  %4830 = vmatpush.bf16.msra.mxu0 0
  %4831 = vmatpush.bf16.msra.mxu0 0
  %4832 = vmatpush.bf16.msra.mxu0 0
  %4833 = vmatpush.bf16.msra.mxu0 0
  %4834 = vmatpush.bf16.msra.mxu0 %v4822
  %4835 = vmatmul.bf16.gmra.mxu0 %v4825
  %v4836 = vpop.f32.mrf.mxu0
  %v4837 = vadd.f32 0.0, %v4836
  %v4838 = vpop.f32.mrf.mxu0
  %4839 = vdwg.mxu0
  %v4842 = vunpack.c.l.b16 %v4051
  %v4843 = vunpack.c.l.b16 %v4052
  %v4844 = vpack.c.b16 %v4843, %v4842
  %v4847 = vsel %vm4119, %v3954, 0
  %4849 = vmatpush.bf16.msra.mxu0 0
  %4850 = vmatpush.bf16.msra.mxu0 0
  %4851 = vmatpush.bf16.msra.mxu0 0
  %4852 = vmatpush.bf16.msra.mxu0 0
  %4853 = vmatpush.bf16.msra.mxu0 0
  %4854 = vmatpush.bf16.msra.mxu0 0
  %4855 = vmatpush.bf16.msra.mxu0 0
  %4856 = vmatpush.bf16.msra.mxu0 %v4844
  %4857 = vmatmul.bf16.gmra.mxu0 %v4847
  %v4858 = vpop.f32.mrf.mxu0
  %v4859 = vadd.f32 0.0, %v4858
  %v4860 = vpop.f32.mrf.mxu0
  %4861 = vdwg.mxu0
  %v4864 = vunpack.c.l.b16 %v4053
  %v4865 = vunpack.c.l.b16 %v4054
  %v4866 = vpack.c.b16 %v4865, %v4864
  %v4869 = vsel %vm4119, %v3955, 0
  %4871 = vmatpush.bf16.msra.mxu0 0
  %4872 = vmatpush.bf16.msra.mxu0 0
  %4873 = vmatpush.bf16.msra.mxu0 0
  %4874 = vmatpush.bf16.msra.mxu0 0
  %4875 = vmatpush.bf16.msra.mxu0 0
  %4876 = vmatpush.bf16.msra.mxu0 0
  %4877 = vmatpush.bf16.msra.mxu0 0
  %4878 = vmatpush.bf16.msra.mxu0 %v4866
  %4879 = vmatmul.bf16.gmra.mxu0 %v4869
  %v4880 = vpop.f32.mrf.mxu0
  %v4881 = vadd.f32 0.0, %v4880
  %v4882 = vpop.f32.mrf.mxu0
  %4883 = vdwg.mxu0
  %v4886 = vunpack.c.l.b16 %v4055
  %v4887 = vunpack.c.l.b16 %v4056
  %v4888 = vpack.c.b16 %v4887, %v4886
  %v4891 = vsel %vm4119, %v3956, 0
  %4893 = vmatpush.bf16.msra.mxu0 0
  %4894 = vmatpush.bf16.msra.mxu0 0
  %4895 = vmatpush.bf16.msra.mxu0 0
  %4896 = vmatpush.bf16.msra.mxu0 0
  %4897 = vmatpush.bf16.msra.mxu0 0
  %4898 = vmatpush.bf16.msra.mxu0 0
  %4899 = vmatpush.bf16.msra.mxu0 0
  %4900 = vmatpush.bf16.msra.mxu0 %v4888
  %4901 = vmatmul.bf16.gmra.mxu0 %v4891
  %v4902 = vpop.f32.mrf.mxu0
  %v4903 = vadd.f32 0.0, %v4902
  %v4904 = vpop.f32.mrf.mxu0
  %4905 = vdwg.mxu0
  %v4908 = vunpack.c.l.b16 %v4057
  %v4909 = vunpack.c.l.b16 %v4058
  %v4910 = vpack.c.b16 %v4909, %v4908
  %v4913 = vsel %vm4119, %v3957, 0
  %4915 = vmatpush.bf16.msra.mxu0 0
  %4916 = vmatpush.bf16.msra.mxu0 0
  %4917 = vmatpush.bf16.msra.mxu0 0
  %4918 = vmatpush.bf16.msra.mxu0 0
  %4919 = vmatpush.bf16.msra.mxu0 0
  %4920 = vmatpush.bf16.msra.mxu0 0
  %4921 = vmatpush.bf16.msra.mxu0 0
  %4922 = vmatpush.bf16.msra.mxu0 %v4910
  %4923 = vmatmul.bf16.gmra.mxu0 %v4913
  %v4924 = vpop.f32.mrf.mxu0
  %v4925 = vadd.f32 0.0, %v4924
  %v4926 = vpop.f32.mrf.mxu0
  %4927 = vdwg.mxu0
  %v4930 = vunpack.c.l.b16 %v4059
  %v4931 = vunpack.c.l.b16 %v4060
  %v4932 = vpack.c.b16 %v4931, %v4930
  %v4935 = vsel %vm4119, %v3958, 0
  %4937 = vmatpush.bf16.msra.mxu0 0
  %4938 = vmatpush.bf16.msra.mxu0 0
  %4939 = vmatpush.bf16.msra.mxu0 0
  %4940 = vmatpush.bf16.msra.mxu0 0
  %4941 = vmatpush.bf16.msra.mxu0 0
  %4942 = vmatpush.bf16.msra.mxu0 0
  %4943 = vmatpush.bf16.msra.mxu0 0
  %4944 = vmatpush.bf16.msra.mxu0 %v4932
  %4945 = vmatmul.bf16.gmra.mxu0 %v4935
  %v4946 = vpop.f32.mrf.mxu0
  %v4947 = vadd.f32 0.0, %v4946
  %v4948 = vpop.f32.mrf.mxu0
  %4949 = vdwg.mxu0
  %v4952 = vunpack.c.l.b16 %v4061
  %v4953 = vunpack.c.l.b16 %v4062
  %v4954 = vpack.c.b16 %v4953, %v4952
  %v4957 = vsel %vm4119, %v3959, 0
  %4959 = vmatpush.bf16.msra.mxu0 0
  %4960 = vmatpush.bf16.msra.mxu0 0
  %4961 = vmatpush.bf16.msra.mxu0 0
  %4962 = vmatpush.bf16.msra.mxu0 0
  %4963 = vmatpush.bf16.msra.mxu0 0
  %4964 = vmatpush.bf16.msra.mxu0 0
  %4965 = vmatpush.bf16.msra.mxu0 0
  %4966 = vmatpush.bf16.msra.mxu0 %v4954
  %4967 = vmatmul.bf16.gmra.mxu0 %v4957
  %v4968 = vpop.f32.mrf.mxu0
  %v4969 = vadd.f32 0.0, %v4968
  %v4970 = vpop.f32.mrf.mxu0
  %4971 = vdwg.mxu0
  %v4974 = vunpack.c.l.b16 %v4063
  %v4975 = vunpack.c.l.b16 %v4064
  %v4976 = vpack.c.b16 %v4975, %v4974
  %v4979 = vsel %vm4119, %v3960, 0
  %4981 = vmatpush.bf16.msra.mxu0 0
  %4982 = vmatpush.bf16.msra.mxu0 0
  %4983 = vmatpush.bf16.msra.mxu0 0
  %4984 = vmatpush.bf16.msra.mxu0 0
  %4985 = vmatpush.bf16.msra.mxu0 0
  %4986 = vmatpush.bf16.msra.mxu0 0
  %4987 = vmatpush.bf16.msra.mxu0 0
  %4988 = vmatpush.bf16.msra.mxu0 %v4976
  %4989 = vmatmul.bf16.gmra.mxu0 %v4979
  %v4990 = vpop.f32.mrf.mxu0
  %v4991 = vadd.f32 0.0, %v4990
  %v4992 = vpop.f32.mrf.mxu0
  %4993 = vdwg.mxu0
  %v4996 = vunpack.c.l.b16 %v4065
  %v4997 = vunpack.c.l.b16 %v4066
  %v4998 = vpack.c.b16 %v4997, %v4996
  %v5001 = vsel %vm4119, %v3961, 0
  %5003 = vmatpush.bf16.msra.mxu0 0
  %5004 = vmatpush.bf16.msra.mxu0 0
  %5005 = vmatpush.bf16.msra.mxu0 0
  %5006 = vmatpush.bf16.msra.mxu0 0
  %5007 = vmatpush.bf16.msra.mxu0 0
  %5008 = vmatpush.bf16.msra.mxu0 0
  %5009 = vmatpush.bf16.msra.mxu0 0
  %5010 = vmatpush.bf16.msra.mxu0 %v4998
  %5011 = vmatmul.bf16.gmra.mxu0 %v5001
  %v5012 = vpop.f32.mrf.mxu0
  %v5013 = vadd.f32 0.0, %v5012
  %v5014 = vpop.f32.mrf.mxu0
  %5015 = vdwg.mxu0
  %v5018 = vunpack.c.l.b16 %v4067
  %v5019 = vunpack.c.l.b16 %v4068
  %v5020 = vpack.c.b16 %v5019, %v5018
  %v5023 = vsel %vm4119, %v3962, 0
  %5025 = vmatpush.bf16.msra.mxu0 0
  %5026 = vmatpush.bf16.msra.mxu0 0
  %5027 = vmatpush.bf16.msra.mxu0 0
  %5028 = vmatpush.bf16.msra.mxu0 0
  %5029 = vmatpush.bf16.msra.mxu0 0
  %5030 = vmatpush.bf16.msra.mxu0 0
  %5031 = vmatpush.bf16.msra.mxu0 0
  %5032 = vmatpush.bf16.msra.mxu0 %v5020
  %5033 = vmatmul.bf16.gmra.mxu0 %v5023
  %v5034 = vpop.f32.mrf.mxu0
  %v5035 = vadd.f32 0.0, %v5034
  %v5036 = vpop.f32.mrf.mxu0
  %5037 = vdwg.mxu0
  %v5040 = vunpack.c.l.b16 %v4069
  %v5041 = vunpack.c.l.b16 %v4070
  %v5042 = vpack.c.b16 %v5041, %v5040
  %v5045 = vsel %vm4119, %v3963, 0
  %5047 = vmatpush.bf16.msra.mxu0 0
  %5048 = vmatpush.bf16.msra.mxu0 0
  %5049 = vmatpush.bf16.msra.mxu0 0
  %5050 = vmatpush.bf16.msra.mxu0 0
  %5051 = vmatpush.bf16.msra.mxu0 0
  %5052 = vmatpush.bf16.msra.mxu0 0
  %5053 = vmatpush.bf16.msra.mxu0 0
  %5054 = vmatpush.bf16.msra.mxu0 %v5042
  %5055 = vmatmul.bf16.gmra.mxu0 %v5045
  %v5056 = vpop.f32.mrf.mxu0
  %v5057 = vadd.f32 0.0, %v5056
  %v5058 = vpop.f32.mrf.mxu0
  %5059 = vdwg.mxu0
  %v5062 = vunpack.c.l.b16 %v4071
  %v5063 = vunpack.c.l.b16 %v4072
  %v5064 = vpack.c.b16 %v5063, %v5062
  %v5067 = vsel %vm4119, %v3964, 0
  %5069 = vmatpush.bf16.msra.mxu0 0
  %5070 = vmatpush.bf16.msra.mxu0 0
  %5071 = vmatpush.bf16.msra.mxu0 0
  %5072 = vmatpush.bf16.msra.mxu0 0
  %5073 = vmatpush.bf16.msra.mxu0 0
  %5074 = vmatpush.bf16.msra.mxu0 0
  %5075 = vmatpush.bf16.msra.mxu0 0
  %5076 = vmatpush.bf16.msra.mxu0 %v5064
  %5077 = vmatmul.bf16.gmra.mxu0 %v5067
  %v5078 = vpop.f32.mrf.mxu0
  %v5079 = vadd.f32 0.0, %v5078
  %v5080 = vpop.f32.mrf.mxu0
  %5081 = vdwg.mxu0
  %v5084 = vunpack.c.l.b16 %v4073
  %v5085 = vunpack.c.l.b16 %v4074
  %v5086 = vpack.c.b16 %v5085, %v5084
  %v5089 = vsel %vm4119, %v3965, 0
  %5091 = vmatpush.bf16.msra.mxu0 0
  %5092 = vmatpush.bf16.msra.mxu0 0
  %5093 = vmatpush.bf16.msra.mxu0 0
  %5094 = vmatpush.bf16.msra.mxu0 0
  %5095 = vmatpush.bf16.msra.mxu0 0
  %5096 = vmatpush.bf16.msra.mxu0 0
  %5097 = vmatpush.bf16.msra.mxu0 0
  %5098 = vmatpush.bf16.msra.mxu0 %v5086
  %5099 = vmatmul.bf16.gmra.mxu0 %v5089
  %v5100 = vpop.f32.mrf.mxu0
  %v5101 = vadd.f32 0.0, %v5100
  %v5102 = vpop.f32.mrf.mxu0
  %5103 = vdwg.mxu0
  %v5106 = vunpack.c.l.b16 %v4075
  %v5107 = vunpack.c.l.b16 %v4076
  %v5108 = vpack.c.b16 %v5107, %v5106
  %v5111 = vsel %vm4119, %v3966, 0
  %5113 = vmatpush.bf16.msra.mxu0 0
  %5114 = vmatpush.bf16.msra.mxu0 0
  %5115 = vmatpush.bf16.msra.mxu0 0
  %5116 = vmatpush.bf16.msra.mxu0 0
  %5117 = vmatpush.bf16.msra.mxu0 0
  %5118 = vmatpush.bf16.msra.mxu0 0
  %5119 = vmatpush.bf16.msra.mxu0 0
  %5120 = vmatpush.bf16.msra.mxu0 %v5108
  %5121 = vmatmul.bf16.gmra.mxu0 %v5111
  %v5122 = vpop.f32.mrf.mxu0
  %v5123 = vadd.f32 0.0, %v5122
  %v5124 = vpop.f32.mrf.mxu0
  %5125 = vdwg.mxu0
  %v5128 = vunpack.c.l.b16 %v4077
  %v5129 = vunpack.c.l.b16 %v4078
  %v5130 = vpack.c.b16 %v5129, %v5128
  %v5133 = vsel %vm4119, %v3967, 0
  %5135 = vmatpush.bf16.msra.mxu0 0
  %5136 = vmatpush.bf16.msra.mxu0 0
  %5137 = vmatpush.bf16.msra.mxu0 0
  %5138 = vmatpush.bf16.msra.mxu0 0
  %5139 = vmatpush.bf16.msra.mxu0 0
  %5140 = vmatpush.bf16.msra.mxu0 0
  %5141 = vmatpush.bf16.msra.mxu0 0
  %5142 = vmatpush.bf16.msra.mxu0 %v5130
  %5143 = vmatmul.bf16.gmra.mxu0 %v5133
  %v5144 = vpop.f32.mrf.mxu0
  %v5145 = vadd.f32 0.0, %v5144
  %v5146 = vpop.f32.mrf.mxu0
  %5147 = vdwg.mxu0
  %v5150 = vunpack.c.l.b16 %v4079
  %v5151 = vunpack.c.l.b16 %v4080
  %v5152 = vpack.c.b16 %v5151, %v5150
  %v5155 = vsel %vm4119, %v3968, 0
  %5157 = vmatpush.bf16.msra.mxu0 0
  %5158 = vmatpush.bf16.msra.mxu0 0
  %5159 = vmatpush.bf16.msra.mxu0 0
  %5160 = vmatpush.bf16.msra.mxu0 0
  %5161 = vmatpush.bf16.msra.mxu0 0
  %5162 = vmatpush.bf16.msra.mxu0 0
  %5163 = vmatpush.bf16.msra.mxu0 0
  %5164 = vmatpush.bf16.msra.mxu0 %v5152
  %5165 = vmatmul.bf16.gmra.mxu0 %v5155
  %v5166 = vpop.f32.mrf.mxu0
  %v5167 = vadd.f32 0.0, %v5166
  %v5168 = vpop.f32.mrf.mxu0
  %5169 = vdwg.mxu0
  %v5172 = vunpack.c.l.b16 %v4081
  %v5173 = vunpack.c.l.b16 %v4082
  %v5174 = vpack.c.b16 %v5173, %v5172
  %v5177 = vsel %vm4119, %v3969, 0
  %5179 = vmatpush.bf16.msra.mxu0 0
  %5180 = vmatpush.bf16.msra.mxu0 0
  %5181 = vmatpush.bf16.msra.mxu0 0
  %5182 = vmatpush.bf16.msra.mxu0 0
  %5183 = vmatpush.bf16.msra.mxu0 0
  %5184 = vmatpush.bf16.msra.mxu0 0
  %5185 = vmatpush.bf16.msra.mxu0 0
  %5186 = vmatpush.bf16.msra.mxu0 %v5174
  %5187 = vmatmul.bf16.gmra.mxu0 %v5177
  %v5188 = vpop.f32.mrf.mxu0
  %v5189 = vadd.f32 0.0, %v5188
  %v5190 = vpop.f32.mrf.mxu0
  %5191 = vdwg.mxu0
  %v5194 = vunpack.c.l.b16 %v4083
  %v5195 = vunpack.c.l.b16 %v4084
  %v5196 = vpack.c.b16 %v5195, %v5194
  %v5199 = vsel %vm4119, %v3970, 0
  %5201 = vmatpush.bf16.msra.mxu0 0
  %5202 = vmatpush.bf16.msra.mxu0 0
  %5203 = vmatpush.bf16.msra.mxu0 0
  %5204 = vmatpush.bf16.msra.mxu0 0
  %5205 = vmatpush.bf16.msra.mxu0 0
  %5206 = vmatpush.bf16.msra.mxu0 0
  %5207 = vmatpush.bf16.msra.mxu0 0
  %5208 = vmatpush.bf16.msra.mxu0 %v5196
  %5209 = vmatmul.bf16.gmra.mxu0 %v5199
  %v5210 = vpop.f32.mrf.mxu0
  %v5211 = vadd.f32 0.0, %v5210
  %v5212 = vpop.f32.mrf.mxu0
  %5213 = vdwg.mxu0
  %v5216 = vunpack.c.l.b16 %v4085
  %v5217 = vunpack.c.l.b16 %v4086
  %v5218 = vpack.c.b16 %v5217, %v5216
  %v5221 = vsel %vm4119, %v3971, 0
  %5223 = vmatpush.bf16.msra.mxu0 0
  %5224 = vmatpush.bf16.msra.mxu0 0
  %5225 = vmatpush.bf16.msra.mxu0 0
  %5226 = vmatpush.bf16.msra.mxu0 0
  %5227 = vmatpush.bf16.msra.mxu0 0
  %5228 = vmatpush.bf16.msra.mxu0 0
  %5229 = vmatpush.bf16.msra.mxu0 0
  %5230 = vmatpush.bf16.msra.mxu0 %v5218
  %5231 = vmatmul.bf16.gmra.mxu0 %v5221
  %v5232 = vpop.f32.mrf.mxu0
  %v5233 = vadd.f32 0.0, %v5232
  %v5234 = vpop.f32.mrf.mxu0
  %5235 = vdwg.mxu0
  %v5238 = vunpack.c.l.b16 %v4087
  %v5239 = vunpack.c.l.b16 %v4088
  %v5240 = vpack.c.b16 %v5239, %v5238
  %v5243 = vsel %vm4119, %v3972, 0
  %5245 = vmatpush.bf16.msra.mxu0 0
  %5246 = vmatpush.bf16.msra.mxu0 0
  %5247 = vmatpush.bf16.msra.mxu0 0
  %5248 = vmatpush.bf16.msra.mxu0 0
  %5249 = vmatpush.bf16.msra.mxu0 0
  %5250 = vmatpush.bf16.msra.mxu0 0
  %5251 = vmatpush.bf16.msra.mxu0 0
  %5252 = vmatpush.bf16.msra.mxu0 %v5240
  %5253 = vmatmul.bf16.gmra.mxu0 %v5243
  %v5254 = vpop.f32.mrf.mxu0
  %v5255 = vadd.f32 0.0, %v5254
  %v5256 = vpop.f32.mrf.mxu0
  %5257 = vdwg.mxu0
  %v5260 = vunpack.c.l.b16 %v4089
  %v5261 = vunpack.c.l.b16 %v4090
  %v5262 = vpack.c.b16 %v5261, %v5260
  %v5265 = vsel %vm4119, %v3973, 0
  %5267 = vmatpush.bf16.msra.mxu0 0
  %5268 = vmatpush.bf16.msra.mxu0 0
  %5269 = vmatpush.bf16.msra.mxu0 0
  %5270 = vmatpush.bf16.msra.mxu0 0
  %5271 = vmatpush.bf16.msra.mxu0 0
  %5272 = vmatpush.bf16.msra.mxu0 0
  %5273 = vmatpush.bf16.msra.mxu0 0
  %5274 = vmatpush.bf16.msra.mxu0 %v5262
  %5275 = vmatmul.bf16.gmra.mxu0 %v5265
  %v5276 = vpop.f32.mrf.mxu0
  %v5277 = vadd.f32 0.0, %v5276
  %v5278 = vpop.f32.mrf.mxu0
  %5279 = vdwg.mxu0
  %v5282 = vunpack.c.l.b16 %v4091
  %v5283 = vunpack.c.l.b16 %v4092
  %v5284 = vpack.c.b16 %v5283, %v5282
  %v5287 = vsel %vm4119, %v3974, 0
  %5289 = vmatpush.bf16.msra.mxu0 0
  %5290 = vmatpush.bf16.msra.mxu0 0
  %5291 = vmatpush.bf16.msra.mxu0 0
  %5292 = vmatpush.bf16.msra.mxu0 0
  %5293 = vmatpush.bf16.msra.mxu0 0
  %5294 = vmatpush.bf16.msra.mxu0 0
  %5295 = vmatpush.bf16.msra.mxu0 0
  %5296 = vmatpush.bf16.msra.mxu0 %v5284
  %5297 = vmatmul.bf16.gmra.mxu0 %v5287
  %v5298 = vpop.f32.mrf.mxu0
  %v5299 = vadd.f32 0.0, %v5298
  %v5300 = vpop.f32.mrf.mxu0
  %5301 = vdwg.mxu0
  %v5304 = vunpack.c.l.b16 %v4093
  %v5305 = vunpack.c.l.b16 %v4094
  %v5306 = vpack.c.b16 %v5305, %v5304
  %v5309 = vsel %vm4119, %v3975, 0
  %5311 = vmatpush.bf16.msra.mxu0 0
  %5312 = vmatpush.bf16.msra.mxu0 0
  %5313 = vmatpush.bf16.msra.mxu0 0
  %5314 = vmatpush.bf16.msra.mxu0 0
  %5315 = vmatpush.bf16.msra.mxu0 0
  %5316 = vmatpush.bf16.msra.mxu0 0
  %5317 = vmatpush.bf16.msra.mxu0 0
  %5318 = vmatpush.bf16.msra.mxu0 %v5306
  %5319 = vmatmul.bf16.gmra.mxu0 %v5309
  %v5320 = vpop.f32.mrf.mxu0
  %v5321 = vadd.f32 0.0, %v5320
  %v5322 = vpop.f32.mrf.mxu0
  %5323 = vdwg.mxu0
  %v5326 = vunpack.c.l.b16 %v4095
  %v5327 = vunpack.c.l.b16 %v4096
  %v5328 = vpack.c.b16 %v5327, %v5326
  %v5331 = vsel %vm4119, %v3976, 0
  %5333 = vmatpush.bf16.msra.mxu0 0
  %5334 = vmatpush.bf16.msra.mxu0 0
  %5335 = vmatpush.bf16.msra.mxu0 0
  %5336 = vmatpush.bf16.msra.mxu0 0
  %5337 = vmatpush.bf16.msra.mxu0 0
  %5338 = vmatpush.bf16.msra.mxu0 0
  %5339 = vmatpush.bf16.msra.mxu0 0
  %5340 = vmatpush.bf16.msra.mxu0 %v5328
  %5341 = vmatmul.bf16.gmra.mxu0 %v5331
  %v5342 = vpop.f32.mrf.mxu0
  %v5343 = vadd.f32 0.0, %v5342
  %v5344 = vpop.f32.mrf.mxu0
  %5345 = vdwg.mxu0
  %v5348 = vunpack.c.l.b16 %v4097
  %v5349 = vunpack.c.l.b16 %v4098
  %v5350 = vpack.c.b16 %v5349, %v5348
  %v5353 = vsel %vm4119, %v3977, 0
  %5355 = vmatpush.bf16.msra.mxu0 0
  %5356 = vmatpush.bf16.msra.mxu0 0
  %5357 = vmatpush.bf16.msra.mxu0 0
  %5358 = vmatpush.bf16.msra.mxu0 0
  %5359 = vmatpush.bf16.msra.mxu0 0
  %5360 = vmatpush.bf16.msra.mxu0 0
  %5361 = vmatpush.bf16.msra.mxu0 0
  %5362 = vmatpush.bf16.msra.mxu0 %v5350
  %5363 = vmatmul.bf16.gmra.mxu0 %v5353
  %v5364 = vpop.f32.mrf.mxu0
  %v5365 = vadd.f32 0.0, %v5364
  %v5366 = vpop.f32.mrf.mxu0
  %5367 = vdwg.mxu0
  %v5370 = vunpack.c.l.b16 %v4099
  %v5371 = vunpack.c.l.b16 %v4100
  %v5372 = vpack.c.b16 %v5371, %v5370
  %v5375 = vsel %vm4119, %v3978, 0
  %5377 = vmatpush.bf16.msra.mxu0 0
  %5378 = vmatpush.bf16.msra.mxu0 0
  %5379 = vmatpush.bf16.msra.mxu0 0
  %5380 = vmatpush.bf16.msra.mxu0 0
  %5381 = vmatpush.bf16.msra.mxu0 0
  %5382 = vmatpush.bf16.msra.mxu0 0
  %5383 = vmatpush.bf16.msra.mxu0 0
  %5384 = vmatpush.bf16.msra.mxu0 %v5372
  %5385 = vmatmul.bf16.gmra.mxu0 %v5375
  %v5386 = vpop.f32.mrf.mxu0
  %v5387 = vadd.f32 0.0, %v5386
  %v5388 = vpop.f32.mrf.mxu0
  %5389 = vdwg.mxu0
  %v5392 = vunpack.c.l.b16 %v4101
  %v5393 = vunpack.c.l.b16 %v4102
  %v5394 = vpack.c.b16 %v5393, %v5392
  %v5397 = vsel %vm4119, %v3979, 0
  %5399 = vmatpush.bf16.msra.mxu0 0
  %5400 = vmatpush.bf16.msra.mxu0 0
  %5401 = vmatpush.bf16.msra.mxu0 0
  %5402 = vmatpush.bf16.msra.mxu0 0
  %5403 = vmatpush.bf16.msra.mxu0 0
  %5404 = vmatpush.bf16.msra.mxu0 0
  %5405 = vmatpush.bf16.msra.mxu0 0
  %5406 = vmatpush.bf16.msra.mxu0 %v5394
  %5407 = vmatmul.bf16.gmra.mxu0 %v5397
  %v5408 = vpop.f32.mrf.mxu0
  %v5409 = vadd.f32 0.0, %v5408
  %v5410 = vpop.f32.mrf.mxu0
  %5411 = vdwg.mxu0
  %v5414 = vunpack.c.l.b16 %v4103
  %v5415 = vunpack.c.l.b16 %v4104
  %v5416 = vpack.c.b16 %v5415, %v5414
  %v5419 = vsel %vm4119, %v3980, 0
  %5421 = vmatpush.bf16.msra.mxu0 0
  %5422 = vmatpush.bf16.msra.mxu0 0
  %5423 = vmatpush.bf16.msra.mxu0 0
  %5424 = vmatpush.bf16.msra.mxu0 0
  %5425 = vmatpush.bf16.msra.mxu0 0
  %5426 = vmatpush.bf16.msra.mxu0 0
  %5427 = vmatpush.bf16.msra.mxu0 0
  %5428 = vmatpush.bf16.msra.mxu0 %v5416
  %5429 = vmatmul.bf16.gmra.mxu0 %v5419
  %v5430 = vpop.f32.mrf.mxu0
  %v5431 = vadd.f32 0.0, %v5430
  %v5432 = vpop.f32.mrf.mxu0
  %5433 = vdwg.mxu0
  %v5436 = vunpack.c.l.b16 %v4105
  %v5437 = vunpack.c.l.b16 %v4106
  %v5438 = vpack.c.b16 %v5437, %v5436
  %v5441 = vsel %vm4119, %v3981, 0
  %5443 = vmatpush.bf16.msra.mxu0 0
  %5444 = vmatpush.bf16.msra.mxu0 0
  %5445 = vmatpush.bf16.msra.mxu0 0
  %5446 = vmatpush.bf16.msra.mxu0 0
  %5447 = vmatpush.bf16.msra.mxu0 0
  %5448 = vmatpush.bf16.msra.mxu0 0
  %5449 = vmatpush.bf16.msra.mxu0 0
  %5450 = vmatpush.bf16.msra.mxu0 %v5438
  %5451 = vmatmul.bf16.gmra.mxu0 %v5441
  %v5452 = vpop.f32.mrf.mxu0
  %v5453 = vadd.f32 0.0, %v5452
  %v5454 = vpop.f32.mrf.mxu0
  %5455 = vdwg.mxu0
  %v5458 = vunpack.c.l.b16 %v4107
  %v5459 = vunpack.c.l.b16 %v4108
  %v5460 = vpack.c.b16 %v5459, %v5458
  %v5463 = vsel %vm4119, %v3982, 0
  %5465 = vmatpush.bf16.msra.mxu0 0
  %5466 = vmatpush.bf16.msra.mxu0 0
  %5467 = vmatpush.bf16.msra.mxu0 0
  %5468 = vmatpush.bf16.msra.mxu0 0
  %5469 = vmatpush.bf16.msra.mxu0 0
  %5470 = vmatpush.bf16.msra.mxu0 0
  %5471 = vmatpush.bf16.msra.mxu0 0
  %5472 = vmatpush.bf16.msra.mxu0 %v5460
  %5473 = vmatmul.bf16.gmra.mxu0 %v5463
  %v5474 = vpop.f32.mrf.mxu0
  %v5475 = vadd.f32 0.0, %v5474
  %v5476 = vpop.f32.mrf.mxu0
  %5477 = vdwg.mxu0
  %v5480 = vunpack.c.l.b16 %v4109
  %v5481 = vunpack.c.l.b16 %v4110
  %v5482 = vpack.c.b16 %v5481, %v5480
  %v5485 = vsel %vm4119, %v3983, 0
  %5487 = vmatpush.bf16.msra.mxu0 0
  %5488 = vmatpush.bf16.msra.mxu0 0
  %5489 = vmatpush.bf16.msra.mxu0 0
  %5490 = vmatpush.bf16.msra.mxu0 0
  %5491 = vmatpush.bf16.msra.mxu0 0
  %5492 = vmatpush.bf16.msra.mxu0 0
  %5493 = vmatpush.bf16.msra.mxu0 0
  %5494 = vmatpush.bf16.msra.mxu0 %v5482
  %5495 = vmatmul.bf16.gmra.mxu0 %v5485
  %v5496 = vpop.f32.mrf.mxu0
  %v5497 = vadd.f32 0.0, %v5496
  %v5498 = vpop.f32.mrf.mxu0
  %5499 = vdwg.mxu0
  %v5502 = vunpack.c.l.b16 %v4111
  %v5503 = vunpack.c.l.b16 %v4112
  %v5504 = vpack.c.b16 %v5503, %v5502
  %v5507 = vsel %vm4119, %v3984, 0
  %5509 = vmatpush.bf16.msra.mxu0 0
  %5510 = vmatpush.bf16.msra.mxu0 0
  %5511 = vmatpush.bf16.msra.mxu0 0
  %5512 = vmatpush.bf16.msra.mxu0 0
  %5513 = vmatpush.bf16.msra.mxu0 0
  %5514 = vmatpush.bf16.msra.mxu0 0
  %5515 = vmatpush.bf16.msra.mxu0 0
  %5516 = vmatpush.bf16.msra.mxu0 %v5504
  %5517 = vmatmul.bf16.gmra.mxu0 %v5507
  %v5518 = vpop.f32.mrf.mxu0
  %v5519 = vadd.f32 0.0, %v5518
  %v5520 = vpop.f32.mrf.mxu0
  %5521 = vdwg.mxu0
  %vm5522 = vcmask 1041408
  %v5523 = vsel %vm5522, %v4133, 0.0
  %v5524 = vsel %vm5522, %v4155, 0.0
  %v5525 = vadd.f32 %v5523, %v5524
  %v5526 = vsel %vm5522, %v4177, 0.0
  %v5527 = vadd.f32 %v5525, %v5526
  %v5528 = vsel %vm5522, %v4199, 0.0
  %v5529 = vadd.f32 %v5527, %v5528
  %v5530 = vsel %vm5522, %v4221, 0.0
  %v5531 = vadd.f32 %v5529, %v5530
  %v5532 = vsel %vm5522, %v4243, 0.0
  %v5533 = vadd.f32 %v5531, %v5532
  %v5534 = vsel %vm5522, %v4265, 0.0
  %v5535 = vadd.f32 %v5533, %v5534
  %v5536 = vsel %vm5522, %v4287, 0.0
  %v5537 = vadd.f32 %v5535, %v5536
  %v5538 = vsel %vm5522, %v4309, 0.0
  %v5539 = vadd.f32 %v5537, %v5538
  %v5540 = vsel %vm5522, %v4331, 0.0
  %v5541 = vadd.f32 %v5539, %v5540
  %v5542 = vsel %vm5522, %v4353, 0.0
  %v5543 = vadd.f32 %v5541, %v5542
  %v5544 = vsel %vm5522, %v4375, 0.0
  %v5545 = vadd.f32 %v5543, %v5544
  %v5546 = vsel %vm5522, %v4397, 0.0
  %v5547 = vadd.f32 %v5545, %v5546
  %v5548 = vsel %vm5522, %v4419, 0.0
  %v5549 = vadd.f32 %v5547, %v5548
  %v5550 = vsel %vm5522, %v4441, 0.0
  %v5551 = vadd.f32 %v5549, %v5550
  %v5552 = vsel %vm5522, %v4463, 0.0
  %v5553 = vadd.f32 %v5551, %v5552
  %v5554 = vsel %vm5522, %v4485, 0.0
  %v5555 = vadd.f32 %v5553, %v5554
  %v5556 = vsel %vm5522, %v4507, 0.0
  %v5557 = vadd.f32 %v5555, %v5556
  %v5558 = vsel %vm5522, %v4529, 0.0
  %v5559 = vadd.f32 %v5557, %v5558
  %v5560 = vsel %vm5522, %v4551, 0.0
  %v5561 = vadd.f32 %v5559, %v5560
  %v5562 = vsel %vm5522, %v4573, 0.0
  %v5563 = vadd.f32 %v5561, %v5562
  %v5564 = vsel %vm5522, %v4595, 0.0
  %v5565 = vadd.f32 %v5563, %v5564
  %v5566 = vsel %vm5522, %v4617, 0.0
  %v5567 = vadd.f32 %v5565, %v5566
  %v5568 = vsel %vm5522, %v4639, 0.0
  %v5569 = vadd.f32 %v5567, %v5568
  %v5570 = vsel %vm5522, %v4661, 0.0
  %v5571 = vadd.f32 %v5569, %v5570
  %v5572 = vsel %vm5522, %v4683, 0.0
  %v5573 = vadd.f32 %v5571, %v5572
  %v5574 = vsel %vm5522, %v4705, 0.0
  %v5575 = vadd.f32 %v5573, %v5574
  %v5576 = vsel %vm5522, %v4727, 0.0
  %v5577 = vadd.f32 %v5575, %v5576
  %v5578 = vsel %vm5522, %v4749, 0.0
  %v5579 = vadd.f32 %v5577, %v5578
  %v5580 = vsel %vm5522, %v4771, 0.0
  %v5581 = vadd.f32 %v5579, %v5580
  %v5582 = vsel %vm5522, %v4793, 0.0
  %v5583 = vadd.f32 %v5581, %v5582
  %v5584 = vsel %vm5522, %v4815, 0.0
  %v5585 = vadd.f32 %v5583, %v5584
  %v5586 = vsel %vm5522, %v4837, 0.0
  %v5587 = vadd.f32 %v5585, %v5586
  %v5588 = vsel %vm5522, %v4859, 0.0
  %v5589 = vadd.f32 %v5587, %v5588
  %v5590 = vsel %vm5522, %v4881, 0.0
  %v5591 = vadd.f32 %v5589, %v5590
  %v5592 = vsel %vm5522, %v4903, 0.0
  %v5593 = vadd.f32 %v5591, %v5592
  %v5594 = vsel %vm5522, %v4925, 0.0
  %v5595 = vadd.f32 %v5593, %v5594
  %v5596 = vsel %vm5522, %v4947, 0.0
  %v5597 = vadd.f32 %v5595, %v5596
  %v5598 = vsel %vm5522, %v4969, 0.0
  %v5599 = vadd.f32 %v5597, %v5598
  %v5600 = vsel %vm5522, %v4991, 0.0
  %v5601 = vadd.f32 %v5599, %v5600
  %v5602 = vsel %vm5522, %v5013, 0.0
  %v5603 = vadd.f32 %v5601, %v5602
  %v5604 = vsel %vm5522, %v5035, 0.0
  %v5605 = vadd.f32 %v5603, %v5604
  %v5606 = vsel %vm5522, %v5057, 0.0
  %v5607 = vadd.f32 %v5605, %v5606
  %v5608 = vsel %vm5522, %v5079, 0.0
  %v5609 = vadd.f32 %v5607, %v5608
  %v5610 = vsel %vm5522, %v5101, 0.0
  %v5611 = vadd.f32 %v5609, %v5610
  %v5612 = vsel %vm5522, %v5123, 0.0
  %v5613 = vadd.f32 %v5611, %v5612
  %v5614 = vsel %vm5522, %v5145, 0.0
  %v5615 = vadd.f32 %v5613, %v5614
  %v5616 = vsel %vm5522, %v5167, 0.0
  %v5617 = vadd.f32 %v5615, %v5616
  %v5618 = vsel %vm5522, %v5189, 0.0
  %v5619 = vadd.f32 %v5617, %v5618
  %v5620 = vsel %vm5522, %v5211, 0.0
  %v5621 = vadd.f32 %v5619, %v5620
  %v5622 = vsel %vm5522, %v5233, 0.0
  %v5623 = vadd.f32 %v5621, %v5622
  %v5624 = vsel %vm5522, %v5255, 0.0
  %v5625 = vadd.f32 %v5623, %v5624
  %v5626 = vsel %vm5522, %v5277, 0.0
  %v5627 = vadd.f32 %v5625, %v5626
  %v5628 = vsel %vm5522, %v5299, 0.0
  %v5629 = vadd.f32 %v5627, %v5628
  %v5630 = vsel %vm5522, %v5321, 0.0
  %v5631 = vadd.f32 %v5629, %v5630
  %v5632 = vsel %vm5522, %v5343, 0.0
  %v5633 = vadd.f32 %v5631, %v5632
  %v5634 = vsel %vm5522, %v5365, 0.0
  %v5635 = vadd.f32 %v5633, %v5634
  %v5636 = vsel %vm5522, %v5387, 0.0
  %v5637 = vadd.f32 %v5635, %v5636
  %v5638 = vsel %vm5522, %v5409, 0.0
  %v5639 = vadd.f32 %v5637, %v5638
  %v5640 = vsel %vm5522, %v5431, 0.0
  %v5641 = vadd.f32 %v5639, %v5640
  %v5642 = vsel %vm5522, %v5453, 0.0
  %v5643 = vadd.f32 %v5641, %v5642
  %v5644 = vsel %vm5522, %v5475, 0.0
  %v5645 = vadd.f32 %v5643, %v5644
  %v5646 = vsel %vm5522, %v5497, 0.0
  %v5647 = vadd.f32 %v5645, %v5646
  %v5648 = vsel %vm5522, %v5519, 0.0
  %v5649 = vadd.f32 %v5647, %v5648
  %v5650 = vld [vmem:[%s4] sm:$0x1]
  %v5651 = vperm.slane %v5650, 0
  %v5652 = vadd.f32 %v5649, %v5651
  %vm5653 = vcmp.gt.f32.partialorder %v5652, 0.0
  %v5654 = vmul.f32 %v5652, 0.1
  %v5655 = vsel %vm5653, %v5652, %v5654
  %v5656 = vld [vmem:[%s4 + $0x1] sm:$0x1]
  %v5657 = vperm.slane %v5656, 0
  %v5658 = vmul.f32 %v5655, %v5657
  %v5659 = vsel %vm5522, %v5658, 0.0
  %5660 = vadd.xlane.f32.xlu0 %v5659
  %v5661 = vpop.xlane.xlu0 %5660
  %v5662 = vld [vmem:[%s4 + $0x2] sm:$0x1]
  %v5663 = vperm.slane %v5662, 0
  %v5664 = vadd.f32 %v5661, %v5663
  %v5665 = vxor.u32 %v5664, 2147483648
  %v5666 = vmul.f32 %v5665, 1.442695
  %v5667 = vpow.pop %v5666
  %v5668 = vadd.f32 %v5667, 1.0
  %v5669 = vrcp.pop %v5668
  %v5670 = vmul.f32 %v5668, %v5669
  %v5671 = vsub.f32 1.0, %v5670
  %v5672 = vmul.f32 %v5669, %v5671
  %v5673 = vadd.f32 %v5669, %v5672
  %vm5674 = vweird.f32 %v5668
  %vm5675 = vweird.f32 %v5669
  %vm5676 = vmor %vm5674, %vm5675
  %v5677 = vsel %vm5676, %v5669, %v5673
  %v5678 = vand.u32 2147483647, %v5668
  %vm5679 = vcmp.eq.f32.partialorder %v5678, 8.507059e+37
  %v5680 = vand.u32 %v5668, 2147483648
  %v5681 = vor.u32 1.1754944e-38, %v5680
  %v5682 = vsel %vm5679, %v5681, %v5677
  %v5683 = vmul.f32 1.0, %v5682
  %vm5684 = vcmask 1024
  %5685 = vst.msk [vmem:[%s5] sm:$0x3] %vm5684, %v5683
  // Predicated region
  $region22: #{discriminator_forward.1} parent=0 // pred_check
    _
  $region23: #{discriminator_forward.1} parent=0 // pred_check_branch
    %5687 = sbr.rel (0) target = $region25
  $region24: #{discriminator_forward.1} parent=0 // pred_region
    _
  $region25: #{discriminator_forward.1} parent=0 // pred_fallthru
    _
  // Predicated region
  $region26: #{discriminator_forward.1} parent=0 // pred_check
    _
  $region27: #{discriminator_forward.1} parent=0 // pred_check_branch
    %5689 = sbr.rel (0) target = $region29
  $region28: #{discriminator_forward.1} parent=0 // pred_region
    _
  $region29: #{discriminator_forward.1} parent=0 // pred_fallthru
    _

</llo_original>
